<compile_context>
chip_gen: v6e
topology: v6e:2x2x1
jax: 0.10.0
libtpu: 0.0.40
codegen_flags: <defaults>
</compile_context>

<pallas_src>
import jax
import jax.numpy as jnp
from jax.experimental import pallas as pl
from jax.experimental.pallas import tpu as pltpu

# ----- model dims (configs: enc_in=4, d_model=32, seq_len=8, pred_len=4) ----
B = 2          # logical batch
B_PAD = 8      # batch padded to a full sublane group in the wrapper
H = 32         # hidden_dim
F = 4          # n_features
LAGS = 8       # encoder length
HORIZONS = 4   # decoder steps
H3 = 3 * H

# Params the kernel consumes.  linear_decoder (w_ld/b_ld) and the decoder half
# of attn (w_attn_d) provably cannot change the output on this forward path
# (softmax shift-invariance, see header) and are exercised only by the
# reference check below.
KERNEL_PARAMS = [
    "wih_e", "whh_e", "bih_e", "bhh_e",      # encoder GRU (fused, torch r,z,n)
    "w_le", "b_le",                          # linear_encoder
    "w_emb", "b_emb",                        # embed
    "w_attn_e", "b_attn", "w_v",             # encoder half of attn + v (w_v: (H,1))
    "wih_d", "whh_d", "bih_d", "bhh_d",      # decoder GRU (fused)
    "w_fc4", "b_fc4",                        # fc4
]


def _sigmoid(x):
    # exact: 1/(1+exp(-x)) == 0.5*(tanh(x/2)+1); tanh is a single EUP op, so
    # there is no divide on the recurrence critical path.
    return 0.5 * (jnp.tanh(0.5 * x) + 1.0)


def _gru_cell_fused(gi, h, whh, bhh):
    """gi: (Bp, 3H) precomputed input gates (x @ W_ih + b_ih) in torch (r,z,n)
    order.  One fused (Bp,H)@(H,3H) hidden matmul instead of three."""
    gh = jnp.dot(h, whh, preferred_element_type=jnp.float32) + bhh      # (Bp, 3H)
    r = _sigmoid(gi[:, 0:H] + gh[:, 0:H])
    z = _sigmoid(gi[:, H:2 * H] + gh[:, H:2 * H])
    n = jnp.tanh(gi[:, 2 * H:H3] + r * gh[:, 2 * H:H3])
    return (1.0 - z) * n + z * h


def seq2seq_kernel(src_ref,
                   wih_e_ref, whh_e_ref, bih_e_ref, bhh_e_ref,
                   w_le_ref, b_le_ref,
                   w_emb_ref, b_emb_ref,
                   w_attn_e_ref, b_attn_ref, w_v_ref,
                   wih_d_ref, whh_d_ref, bih_d_ref, bhh_d_ref,
                   w_fc4_ref, b_fc4_ref,
                   out_ref):
    src = src_ref[...]                      # (LAGS*Bp, F), row = t*Bp + b
    wih_e = wih_e_ref[...]; whh_e = whh_e_ref[...]
    bih_e = bih_e_ref[...]; bhh_e = bhh_e_ref[...]
    w_le = w_le_ref[...]; b_le = b_le_ref[...]
    w_emb = w_emb_ref[...]; b_emb = b_emb_ref[...]
    w_attn_e = w_attn_e_ref[...]; b_attn = b_attn_ref[...]; w_v = w_v_ref[...]
    wih_d = wih_d_ref[...]; whh_d = whh_d_ref[...]
    bih_d = bih_d_ref[...]; bhh_d = bhh_d_ref[...]
    w_fc4 = w_fc4_ref[...]; b_fc4 = b_fc4_ref[...]

    # ------------------- encoder GRU (recurrence only) ----------------------
    # input-to-hidden gates for all LAGS steps in one batched matmul
    gi_all = jnp.dot(src, wih_e, preferred_element_type=jnp.float32) + bih_e  # (LAGS*Bp, 3H)

    h = jnp.zeros((B_PAD, H), jnp.float32)
    h_rows = []
    for t in range(LAGS):                                  # fully unrolled
        h = _gru_cell_fused(gi_all[t * B_PAD:(t + 1) * B_PAD, :], h, whh_e, bhh_e)
        h_rows.append(h)
    h_all = jnp.concatenate(h_rows, axis=0)                # (LAGS*Bp, H)

    # -------- attention, hoisted out of the decoder loop (exact) ------------
    # E = linear_encoder(encoder_outputs); scores = v(attn(tanh(cat(d_rep,E))))
    # The decoder-dependent part of the score is constant over lags for each
    # batch row and softmax over lags is shift-invariant, so the attention
    # weights / context are decoder-independent and computed once.
    E = jnp.dot(h_all, w_le, preferred_element_type=jnp.float32) + b_le       # (LAGS*Bp, H)
    w_ev = jnp.dot(w_attn_e, w_v, preferred_element_type=jnp.float32)         # (H, 1)
    b_v = jnp.dot(b_attn, w_v, preferred_element_type=jnp.float32)            # (1, 1)
    score = jnp.dot(jnp.tanh(E), w_ev,
                    preferred_element_type=jnp.float32) + b_v                 # (LAGS*Bp, 1)
    # regroup the score column into (Bp, LAGS): lags on the lane axis
    scores = jnp.concatenate(
        [score[t * B_PAD:(t + 1) * B_PAD, :] for t in range(LAGS)], axis=1)   # (Bp, LAGS)
    scores = scores - jnp.max(scores, axis=1, keepdims=True)
    p = jnp.exp(scores)
    att = p / jnp.sum(p, axis=1, keepdims=True)                               # (Bp, LAGS)
    # context_vector = bmm(att, E)
    context = att[:, 0:1] * E[0:B_PAD, :]
    for t in range(1, LAGS):
        context = context + att[:, t:t + 1] * E[t * B_PAD:(t + 1) * B_PAD, :]  # (Bp, H)

    # ------------------- decoder (fully unrolled) ---------------------------
    h_dec = h                                               # encoder final hidden
    inp = src[(LAGS - 1) * B_PAD:LAGS * B_PAD, :]           # input_trg = src[:, -1, :]
    for t in range(HORIZONS):
        x_emb = jnp.tanh(jnp.dot(inp, w_emb,
                                 preferred_element_type=jnp.float32) + b_emb)  # (Bp, H)
        rnn_in = context + x_emb
        gi = jnp.dot(rnn_in, wih_d, preferred_element_type=jnp.float32) + bih_d
        h_dec = _gru_cell_fused(gi, h_dec, whh_d, bhh_d)
        out4 = jnp.dot(h_dec, w_fc4, preferred_element_type=jnp.float32) + b_fc4  # (Bp, F)
        out_ref[t] = out4
        inp = out4                                          # fed back as next input


def gru_seq2seq_att_forward(src, params):
    """src: (B, LAGS, F) batch-first (PyTorch convention). Returns (B, HORIZONS, F)."""
    b = src.shape[0]
    src_t = jnp.transpose(src, (1, 0, 2)).astype(jnp.float32)     # time-major (LAGS, b, F)
    src_t = jnp.pad(src_t, ((0, 0), (0, B_PAD - b), (0, 0)))      # pad batch to 8 sublanes
    src_flat = src_t.reshape(LAGS * B_PAD, F)                     # row = t*B_PAD + batch
    args = [src_flat] + [params[k] for k in KERNEL_PARAMS]
    vmem = pl.BlockSpec(memory_space=pltpu.MemorySpace.VMEM)
    out_t = pl.pallas_call(
        seq2seq_kernel,
        out_shape=jax.ShapeDtypeStruct((HORIZONS, B_PAD, F), jnp.float32),
        in_specs=[vmem] * len(args),
        out_specs=vmem,
    )(*args)
    return jnp.transpose(out_t, (1, 0, 2))[:b]                    # (b, HORIZONS, F)


# ----------------------- deterministic parameter init -----------------------
def init_params(key):
    def u(k, shape, scale):
        return jax.random.uniform(k, shape, jnp.float32, -scale, scale)
    ks = jax.random.split(key, 20)
    sH = 1.0 / float(H) ** 0.5
    sF = 1.0 / float(F) ** 0.5
    s2H = 1.0 / float(2 * H) ** 0.5
    return {
        # GRU weights fused along the output dim in torch (r, z, n) order:
        # wih = concat([W_ir, W_iz, W_in], axis=1), etc.
        "wih_e": u(ks[0], (F, H3), sH), "whh_e": u(ks[1], (H, H3), sH),
        "bih_e": u(ks[2], (1, H3), sH), "bhh_e": u(ks[3], (1, H3), sH),
        "w_le": u(ks[4], (H, H), sH), "b_le": u(ks[5], (1, H), sH),
        "w_ld": u(ks[6], (H, H), sH), "b_ld": u(ks[7], (1, H), sH),       # reference only
        "w_emb": u(ks[8], (F, H), sF), "b_emb": u(ks[9], (1, H), sF),
        "w_attn_d": u(ks[10], (H, H), s2H),                               # reference only
        "w_attn_e": u(ks[11], (H, H), s2H), "b_attn": u(ks[12], (1, H), s2H),
        "w_v": u(ks[13], (H, 1), sH),                     # nn.Linear(H, 1, bias=False)
        "wih_d": u(ks[14], (H, H3), sH), "whh_d": u(ks[15], (H, H3), sH),
        "bih_d": u(ks[16], (1, H3), sH), "bhh_d": u(ks[17], (1, H3), sH),
        "w_fc4": u(ks[18], (H, F), sH), "b_fc4": u(ks[19], (1, F), sH),
    }


# -------------- plain-JAX reference (full per-step attention) ---------------
def reference_forward(src, p):
    def gru_cell(x, h, wih, whh, bih, bhh):
        gi = x @ wih + bih
        gh = h @ whh + bhh
        r = jax.nn.sigmoid(gi[:, :H] + gh[:, :H])
        z = jax.nn.sigmoid(gi[:, H:2 * H] + gh[:, H:2 * H])
        n = jnp.tanh(gi[:, 2 * H:] + r * gh[:, 2 * H:])
        return (1.0 - z) * n + z * h

    Bn, L, _ = src.shape
    h = jnp.zeros((Bn, H), jnp.float32)
    enc = []
    for t in range(L):
        h = gru_cell(src[:, t], h, p["wih_e"], p["whh_e"], p["bih_e"], p["bhh_e"])
        enc.append(h)
    enc = jnp.stack(enc, axis=1)                           # (B, L, H)
    E = enc @ p["w_le"] + p["b_le"]                        # linear_encoder(encoder_outputs)
    w_attn_full = jnp.concatenate([p["w_attn_d"], p["w_attn_e"]], axis=0)   # (2H, H)

    h_dec, dec_out, inp = h, h, src[:, -1]
    outs = []
    for _ in range(HORIZONS):
        d = dec_out @ p["w_ld"] + p["b_ld"]                # linear_decoder(decoder_repeat)
        d_rep = jnp.broadcast_to(d[:, None, :], (Bn, L, H))
        nonl = jnp.tanh(jnp.concatenate([d_rep, E], axis=2))
        energy = nonl @ w_attn_full + p["b_attn"]
        scores = jnp.squeeze(energy @ p["w_v"], -1)        # (B, L)
        att = jax.nn.softmax(scores, axis=1)
        context = jnp.einsum("bl,blh->bh", att, E)
        x_emb = jnp.tanh(inp @ p["w_emb"] + p["b_emb"])
        h_dec = gru_cell(context + x_emb, h_dec,
                         p["wih_d"], p["whh_d"], p["bih_d"], p["bhh_d"])
        dec_out = h_dec
        out4 = h_dec @ p["w_fc4"] + p["b_fc4"]
        outs.append(out4)
        inp = out4
    return jnp.stack(outs, axis=1)                         # (B, HORIZONS, F)


if __name__ == "__main__":
    key = jax.random.PRNGKey(0)
    kp, kx = jax.random.split(key)
    params = init_params(kp)
    src = jax.random.normal(kx, (B, LAGS, F), jnp.float32)
    # trg / x_dec / x_mark_dec are unused on the train=False path.

    out = gru_seq2seq_att_forward(src, params)
    out = jax.block_until_ready(out)

    # Reference at full f32 matmul precision (XLA's default TPU precision
    # would otherwise round matmul operands to bf16 and dominate the error).
    with jax.default_matmul_precision("highest"):
        ref = reference_forward(src, params)
        ref = jax.block_until_ready(ref)

    assert out.shape == (B, HORIZONS, F), out.shape
    max_diff = float(jnp.max(jnp.abs(out - ref)))
    if not bool(jnp.isfinite(out).all()) or max_diff > 1e-4:
        raise AssertionError(f"kernel/reference mismatch, max abs diff = {max_diff}")
    print("KERNEL_OK")
</pallas_src>

<mosaic_0001>
module attributes {stable_mosaic.version = 11 : i64} {
  func.func @seq2seq_kernel(%arg0: memref<64x4xf32, #tpu.memory_space<vmem>>, %arg1: memref<4x96xf32, #tpu.memory_space<vmem>>, %arg2: memref<32x96xf32, #tpu.memory_space<vmem>>, %arg3: memref<1x96xf32, #tpu.memory_space<vmem>>, %arg4: memref<1x96xf32, #tpu.memory_space<vmem>>, %arg5: memref<32x32xf32, #tpu.memory_space<vmem>>, %arg6: memref<1x32xf32, #tpu.memory_space<vmem>>, %arg7: memref<4x32xf32, #tpu.memory_space<vmem>>, %arg8: memref<1x32xf32, #tpu.memory_space<vmem>>, %arg9: memref<32x32xf32, #tpu.memory_space<vmem>>, %arg10: memref<1x32xf32, #tpu.memory_space<vmem>>, %arg11: memref<32x1xf32, #tpu.memory_space<vmem>>, %arg12: memref<32x96xf32, #tpu.memory_space<vmem>>, %arg13: memref<32x96xf32, #tpu.memory_space<vmem>>, %arg14: memref<1x96xf32, #tpu.memory_space<vmem>>, %arg15: memref<1x96xf32, #tpu.memory_space<vmem>>, %arg16: memref<32x4xf32, #tpu.memory_space<vmem>>, %arg17: memref<1x4xf32, #tpu.memory_space<vmem>>, %arg18: memref<4x8x4xf32, #tpu.memory_space<vmem>>) attributes {dimension_semantics = [], scalar_prefetch = 0 : i64, scratch_operands = 0 : i64, tpu.core_type = #tpu.core_type<tc>} {
    %c0 = arith.constant 0 : index
    %c0_0 = arith.constant 0 : index
    %0 = vector.load %arg0[%c0, %c0_0] : memref<64x4xf32, #tpu.memory_space<vmem>>, vector<64x4xf32>
    %c0_1 = arith.constant 0 : index
    %c0_2 = arith.constant 0 : index
    %1 = vector.load %arg1[%c0_1, %c0_2] : memref<4x96xf32, #tpu.memory_space<vmem>>, vector<4x96xf32>
    %c0_3 = arith.constant 0 : index
    %c0_4 = arith.constant 0 : index
    %2 = vector.load %arg2[%c0_3, %c0_4] : memref<32x96xf32, #tpu.memory_space<vmem>>, vector<32x96xf32>
    %c0_5 = arith.constant 0 : index
    %c0_6 = arith.constant 0 : index
    %3 = vector.load %arg3[%c0_5, %c0_6] : memref<1x96xf32, #tpu.memory_space<vmem>>, vector<1x96xf32>
    %c0_7 = arith.constant 0 : index
    %c0_8 = arith.constant 0 : index
    %4 = vector.load %arg4[%c0_7, %c0_8] : memref<1x96xf32, #tpu.memory_space<vmem>>, vector<1x96xf32>
    %c0_9 = arith.constant 0 : index
    %c0_10 = arith.constant 0 : index
    %5 = vector.load %arg5[%c0_9, %c0_10] : memref<32x32xf32, #tpu.memory_space<vmem>>, vector<32x32xf32>
    %c0_11 = arith.constant 0 : index
    %c0_12 = arith.constant 0 : index
    %6 = vector.load %arg6[%c0_11, %c0_12] : memref<1x32xf32, #tpu.memory_space<vmem>>, vector<1x32xf32>
    %c0_13 = arith.constant 0 : index
    %c0_14 = arith.constant 0 : index
    %7 = vector.load %arg7[%c0_13, %c0_14] : memref<4x32xf32, #tpu.memory_space<vmem>>, vector<4x32xf32>
    %c0_15 = arith.constant 0 : index
    %c0_16 = arith.constant 0 : index
    %8 = vector.load %arg8[%c0_15, %c0_16] : memref<1x32xf32, #tpu.memory_space<vmem>>, vector<1x32xf32>
    %c0_17 = arith.constant 0 : index
    %c0_18 = arith.constant 0 : index
    %9 = vector.load %arg9[%c0_17, %c0_18] : memref<32x32xf32, #tpu.memory_space<vmem>>, vector<32x32xf32>
    %c0_19 = arith.constant 0 : index
    %c0_20 = arith.constant 0 : index
    %10 = vector.load %arg10[%c0_19, %c0_20] : memref<1x32xf32, #tpu.memory_space<vmem>>, vector<1x32xf32>
    %c0_21 = arith.constant 0 : index
    %c0_22 = arith.constant 0 : index
    %11 = vector.load %arg11[%c0_21, %c0_22] : memref<32x1xf32, #tpu.memory_space<vmem>>, vector<32x1xf32>
    %c0_23 = arith.constant 0 : index
    %c0_24 = arith.constant 0 : index
    %12 = vector.load %arg12[%c0_23, %c0_24] : memref<32x96xf32, #tpu.memory_space<vmem>>, vector<32x96xf32>
    %c0_25 = arith.constant 0 : index
    %c0_26 = arith.constant 0 : index
    %13 = vector.load %arg13[%c0_25, %c0_26] : memref<32x96xf32, #tpu.memory_space<vmem>>, vector<32x96xf32>
    %c0_27 = arith.constant 0 : index
    %c0_28 = arith.constant 0 : index
    %14 = vector.load %arg14[%c0_27, %c0_28] : memref<1x96xf32, #tpu.memory_space<vmem>>, vector<1x96xf32>
    %c0_29 = arith.constant 0 : index
    %c0_30 = arith.constant 0 : index
    %15 = vector.load %arg15[%c0_29, %c0_30] : memref<1x96xf32, #tpu.memory_space<vmem>>, vector<1x96xf32>
    %c0_31 = arith.constant 0 : index
    %c0_32 = arith.constant 0 : index
    %16 = vector.load %arg16[%c0_31, %c0_32] : memref<32x4xf32, #tpu.memory_space<vmem>>, vector<32x4xf32>
    %c0_33 = arith.constant 0 : index
    %c0_34 = arith.constant 0 : index
    %17 = vector.load %arg17[%c0_33, %c0_34] : memref<1x4xf32, #tpu.memory_space<vmem>>, vector<1x4xf32>
    %cst = arith.constant dense<0.000000e+00> : vector<64x96xf32>
    %18 = tpu.matmul %0, %1, %cst {dimension_numbers = #tpu.dot_dimension_numbers<[1], [0], [0], [1], [0, 0, 1, 1], [], []>} : vector<64x4xf32>, vector<4x96xf32>, vector<64x96xf32> -> vector<64x96xf32>
    %19 = vector.broadcast %3 : vector<1x96xf32> to vector<64x96xf32>
    %20 = arith.addf %18, %19 : vector<64x96xf32>
    %cst_35 = arith.constant 0.000000e+00 : f32
    %21 = vector.broadcast %cst_35 : f32 to vector<8x32xf32>
    %22 = vector.extract_strided_slice %20 {offsets = [0, 0], sizes = [8, 96], strides = [1, 1]} : vector<64x96xf32> to vector<8x96xf32>
    %cst_36 = arith.constant dense<0.000000e+00> : vector<8x96xf32>
    %23 = tpu.matmul %21, %2, %cst_36 {dimension_numbers = #tpu.dot_dimension_numbers<[1], [0], [0], [1], [0, 0, 1, 1], [], []>} : vector<8x32xf32>, vector<32x96xf32>, vector<8x96xf32> -> vector<8x96xf32>
    %24 = vector.broadcast %4 : vector<1x96xf32> to vector<8x96xf32>
    %25 = arith.addf %23, %24 : vector<8x96xf32>
    %26 = vector.extract_strided_slice %22 {offsets = [0, 0], sizes = [8, 32], strides = [1, 1]} : vector<8x96xf32> to vector<8x32xf32>
    %27 = vector.extract_strided_slice %25 {offsets = [0, 0], sizes = [8, 32], strides = [1, 1]} : vector<8x96xf32> to vector<8x32xf32>
    %28 = arith.addf %26, %27 : vector<8x32xf32>
    %cst_37 = arith.constant 5.000000e-01 : f32
    %29 = vector.broadcast %cst_37 : f32 to vector<8x32xf32>
    %30 = arith.mulf %29, %28 : vector<8x32xf32>
    %31 = math.tanh %30 : vector<8x32xf32>
    %cst_38 = arith.constant 1.000000e+00 : f32
    %32 = vector.broadcast %cst_38 : f32 to vector<8x32xf32>
    %33 = arith.addf %31, %32 : vector<8x32xf32>
    %cst_39 = arith.constant 5.000000e-01 : f32
    %34 = vector.broadcast %cst_39 : f32 to vector<8x32xf32>
    %35 = arith.mulf %34, %33 : vector<8x32xf32>
    %36 = vector.extract_strided_slice %22 {offsets = [0, 32], sizes = [8, 32], strides = [1, 1]} : vector<8x96xf32> to vector<8x32xf32>
    %37 = vector.extract_strided_slice %25 {offsets = [0, 32], sizes = [8, 32], strides = [1, 1]} : vector<8x96xf32> to vector<8x32xf32>
    %38 = arith.addf %36, %37 : vector<8x32xf32>
    %cst_40 = arith.constant 5.000000e-01 : f32
    %39 = vector.broadcast %cst_40 : f32 to vector<8x32xf32>
    %40 = arith.mulf %39, %38 : vector<8x32xf32>
    %41 = math.tanh %40 : vector<8x32xf32>
    %cst_41 = arith.constant 1.000000e+00 : f32
    %42 = vector.broadcast %cst_41 : f32 to vector<8x32xf32>
    %43 = arith.addf %41, %42 : vector<8x32xf32>
    %cst_42 = arith.constant 5.000000e-01 : f32
    %44 = vector.broadcast %cst_42 : f32 to vector<8x32xf32>
    %45 = arith.mulf %44, %43 : vector<8x32xf32>
    %46 = vector.extract_strided_slice %22 {offsets = [0, 64], sizes = [8, 32], strides = [1, 1]} : vector<8x96xf32> to vector<8x32xf32>
    %47 = vector.extract_strided_slice %25 {offsets = [0, 64], sizes = [8, 32], strides = [1, 1]} : vector<8x96xf32> to vector<8x32xf32>
    %48 = arith.mulf %35, %47 : vector<8x32xf32>
    %49 = arith.addf %46, %48 : vector<8x32xf32>
    %50 = math.tanh %49 : vector<8x32xf32>
    %cst_43 = arith.constant 1.000000e+00 : f32
    %51 = vector.broadcast %cst_43 : f32 to vector<8x32xf32>
    %52 = arith.subf %51, %45 : vector<8x32xf32>
    %53 = arith.mulf %52, %50 : vector<8x32xf32>
    %54 = arith.mulf %45, %21 : vector<8x32xf32>
    %55 = arith.addf %53, %54 : vector<8x32xf32>
    %56 = vector.extract_strided_slice %20 {offsets = [8, 0], sizes = [8, 96], strides = [1, 1]} : vector<64x96xf32> to vector<8x96xf32>
    %cst_44 = arith.constant dense<0.000000e+00> : vector<8x96xf32>
    %57 = tpu.matmul %55, %2, %cst_44 {dimension_numbers = #tpu.dot_dimension_numbers<[1], [0], [0], [1], [0, 0, 1, 1], [], []>} : vector<8x32xf32>, vector<32x96xf32>, vector<8x96xf32> -> vector<8x96xf32>
    %58 = vector.broadcast %4 : vector<1x96xf32> to vector<8x96xf32>
    %59 = arith.addf %57, %58 : vector<8x96xf32>
    %60 = vector.extract_strided_slice %56 {offsets = [0, 0], sizes = [8, 32], strides = [1, 1]} : vector<8x96xf32> to vector<8x32xf32>
    %61 = vector.extract_strided_slice %59 {offsets = [0, 0], sizes = [8, 32], strides = [1, 1]} : vector<8x96xf32> to vector<8x32xf32>
    %62 = arith.addf %60, %61 : vector<8x32xf32>
    %cst_45 = arith.constant 5.000000e-01 : f32
    %63 = vector.broadcast %cst_45 : f32 to vector<8x32xf32>
    %64 = arith.mulf %63, %62 : vector<8x32xf32>
    %65 = math.tanh %64 : vector<8x32xf32>
    %cst_46 = arith.constant 1.000000e+00 : f32
    %66 = vector.broadcast %cst_46 : f32 to vector<8x32xf32>
    %67 = arith.addf %65, %66 : vector<8x32xf32>
    %cst_47 = arith.constant 5.000000e-01 : f32
    %68 = vector.broadcast %cst_47 : f32 to vector<8x32xf32>
    %69 = arith.mulf %68, %67 : vector<8x32xf32>
    %70 = vector.extract_strided_slice %56 {offsets = [0, 32], sizes = [8, 32], strides = [1, 1]} : vector<8x96xf32> to vector<8x32xf32>
    %71 = vector.extract_strided_slice %59 {offsets = [0, 32], sizes = [8, 32], strides = [1, 1]} : vector<8x96xf32> to vector<8x32xf32>
    %72 = arith.addf %70, %71 : vector<8x32xf32>
    %cst_48 = arith.constant 5.000000e-01 : f32
    %73 = vector.broadcast %cst_48 : f32 to vector<8x32xf32>
    %74 = arith.mulf %73, %72 : vector<8x32xf32>
    %75 = math.tanh %74 : vector<8x32xf32>
    %cst_49 = arith.constant 1.000000e+00 : f32
    %76 = vector.broadcast %cst_49 : f32 to vector<8x32xf32>
    %77 = arith.addf %75, %76 : vector<8x32xf32>
    %cst_50 = arith.constant 5.000000e-01 : f32
    %78 = vector.broadcast %cst_50 : f32 to vector<8x32xf32>
    %79 = arith.mulf %78, %77 : vector<8x32xf32>
    %80 = vector.extract_strided_slice %56 {offsets = [0, 64], sizes = [8, 32], strides = [1, 1]} : vector<8x96xf32> to vector<8x32xf32>
    %81 = vector.extract_strided_slice %59 {offsets = [0, 64], sizes = [8, 32], strides = [1, 1]} : vector<8x96xf32> to vector<8x32xf32>
    %82 = arith.mulf %69, %81 : vector<8x32xf32>
    %83 = arith.addf %80, %82 : vector<8x32xf32>
    %84 = math.tanh %83 : vector<8x32xf32>
    %cst_51 = arith.constant 1.000000e+00 : f32
    %85 = vector.broadcast %cst_51 : f32 to vector<8x32xf32>
    %86 = arith.subf %85, %79 : vector<8x32xf32>
    %87 = arith.mulf %86, %84 : vector<8x32xf32>
    %88 = arith.mulf %79, %55 : vector<8x32xf32>
    %89 = arith.addf %87, %88 : vector<8x32xf32>
    %90 = vector.extract_strided_slice %20 {offsets = [16, 0], sizes = [8, 96], strides = [1, 1]} : vector<64x96xf32> to vector<8x96xf32>
    %cst_52 = arith.constant dense<0.000000e+00> : vector<8x96xf32>
    %91 = tpu.matmul %89, %2, %cst_52 {dimension_numbers = #tpu.dot_dimension_numbers<[1], [0], [0], [1], [0, 0, 1, 1], [], []>} : vector<8x32xf32>, vector<32x96xf32>, vector<8x96xf32> -> vector<8x96xf32>
    %92 = vector.broadcast %4 : vector<1x96xf32> to vector<8x96xf32>
    %93 = arith.addf %91, %92 : vector<8x96xf32>
    %94 = vector.extract_strided_slice %90 {offsets = [0, 0], sizes = [8, 32], strides = [1, 1]} : vector<8x96xf32> to vector<8x32xf32>
    %95 = vector.extract_strided_slice %93 {offsets = [0, 0], sizes = [8, 32], strides = [1, 1]} : vector<8x96xf32> to vector<8x32xf32>
    %96 = arith.addf %94, %95 : vector<8x32xf32>
    %cst_53 = arith.constant 5.000000e-01 : f32
    %97 = vector.broadcast %cst_53 : f32 to vector<8x32xf32>
    %98 = arith.mulf %97, %96 : vector<8x32xf32>
    %99 = math.tanh %98 : vector<8x32xf32>
    %cst_54 = arith.constant 1.000000e+00 : f32
    %100 = vector.broadcast %cst_54 : f32 to vector<8x32xf32>
    %101 = arith.addf %99, %100 : vector<8x32xf32>
    %cst_55 = arith.constant 5.000000e-01 : f32
    %102 = vector.broadcast %cst_55 : f32 to vector<8x32xf32>
    %103 = arith.mulf %102, %101 : vector<8x32xf32>
    %104 = vector.extract_strided_slice %90 {offsets = [0, 32], sizes = [8, 32], strides = [1, 1]} : vector<8x96xf32> to vector<8x32xf32>
    %105 = vector.extract_strided_slice %93 {offsets = [0, 32], sizes = [8, 32], strides = [1, 1]} : vector<8x96xf32> to vector<8x32xf32>
    %106 = arith.addf %104, %105 : vector<8x32xf32>
    %cst_56 = arith.constant 5.000000e-01 : f32
    %107 = vector.broadcast %cst_56 : f32 to vector<8x32xf32>
    %108 = arith.mulf %107, %106 : vector<8x32xf32>
    %109 = math.tanh %108 : vector<8x32xf32>
    %cst_57 = arith.constant 1.000000e+00 : f32
    %110 = vector.broadcast %cst_57 : f32 to vector<8x32xf32>
    %111 = arith.addf %109, %110 : vector<8x32xf32>
    %cst_58 = arith.constant 5.000000e-01 : f32
    %112 = vector.broadcast %cst_58 : f32 to vector<8x32xf32>
    %113 = arith.mulf %112, %111 : vector<8x32xf32>
    %114 = vector.extract_strided_slice %90 {offsets = [0, 64], sizes = [8, 32], strides = [1, 1]} : vector<8x96xf32> to vector<8x32xf32>
    %115 = vector.extract_strided_slice %93 {offsets = [0, 64], sizes = [8, 32], strides = [1, 1]} : vector<8x96xf32> to vector<8x32xf32>
    %116 = arith.mulf %103, %115 : vector<8x32xf32>
    %117 = arith.addf %114, %116 : vector<8x32xf32>
    %118 = math.tanh %117 : vector<8x32xf32>
    %cst_59 = arith.constant 1.000000e+00 : f32
    %119 = vector.broadcast %cst_59 : f32 to vector<8x32xf32>
    %120 = arith.subf %119, %113 : vector<8x32xf32>
    %121 = arith.mulf %120, %118 : vector<8x32xf32>
    %122 = arith.mulf %113, %89 : vector<8x32xf32>
    %123 = arith.addf %121, %122 : vector<8x32xf32>
    %124 = vector.extract_strided_slice %20 {offsets = [24, 0], sizes = [8, 96], strides = [1, 1]} : vector<64x96xf32> to vector<8x96xf32>
    %cst_60 = arith.constant dense<0.000000e+00> : vector<8x96xf32>
    %125 = tpu.matmul %123, %2, %cst_60 {dimension_numbers = #tpu.dot_dimension_numbers<[1], [0], [0], [1], [0, 0, 1, 1], [], []>} : vector<8x32xf32>, vector<32x96xf32>, vector<8x96xf32> -> vector<8x96xf32>
    %126 = vector.broadcast %4 : vector<1x96xf32> to vector<8x96xf32>
    %127 = arith.addf %125, %126 : vector<8x96xf32>
    %128 = vector.extract_strided_slice %124 {offsets = [0, 0], sizes = [8, 32], strides = [1, 1]} : vector<8x96xf32> to vector<8x32xf32>
    %129 = vector.extract_strided_slice %127 {offsets = [0, 0], sizes = [8, 32], strides = [1, 1]} : vector<8x96xf32> to vector<8x32xf32>
    %130 = arith.addf %128, %129 : vector<8x32xf32>
    %cst_61 = arith.constant 5.000000e-01 : f32
    %131 = vector.broadcast %cst_61 : f32 to vector<8x32xf32>
    %132 = arith.mulf %131, %130 : vector<8x32xf32>
    %133 = math.tanh %132 : vector<8x32xf32>
    %cst_62 = arith.constant 1.000000e+00 : f32
    %134 = vector.broadcast %cst_62 : f32 to vector<8x32xf32>
    %135 = arith.addf %133, %134 : vector<8x32xf32>
    %cst_63 = arith.constant 5.000000e-01 : f32
    %136 = vector.broadcast %cst_63 : f32 to vector<8x32xf32>
    %137 = arith.mulf %136, %135 : vector<8x32xf32>
    %138 = vector.extract_strided_slice %124 {offsets = [0, 32], sizes = [8, 32], strides = [1, 1]} : vector<8x96xf32> to vector<8x32xf32>
    %139 = vector.extract_strided_slice %127 {offsets = [0, 32], sizes = [8, 32], strides = [1, 1]} : vector<8x96xf32> to vector<8x32xf32>
    %140 = arith.addf %138, %139 : vector<8x32xf32>
    %cst_64 = arith.constant 5.000000e-01 : f32
    %141 = vector.broadcast %cst_64 : f32 to vector<8x32xf32>
    %142 = arith.mulf %141, %140 : vector<8x32xf32>
    %143 = math.tanh %142 : vector<8x32xf32>
    %cst_65 = arith.constant 1.000000e+00 : f32
    %144 = vector.broadcast %cst_65 : f32 to vector<8x32xf32>
    %145 = arith.addf %143, %144 : vector<8x32xf32>
    %cst_66 = arith.constant 5.000000e-01 : f32
    %146 = vector.broadcast %cst_66 : f32 to vector<8x32xf32>
    %147 = arith.mulf %146, %145 : vector<8x32xf32>
    %148 = vector.extract_strided_slice %124 {offsets = [0, 64], sizes = [8, 32], strides = [1, 1]} : vector<8x96xf32> to vector<8x32xf32>
    %149 = vector.extract_strided_slice %127 {offsets = [0, 64], sizes = [8, 32], strides = [1, 1]} : vector<8x96xf32> to vector<8x32xf32>
    %150 = arith.mulf %137, %149 : vector<8x32xf32>
    %151 = arith.addf %148, %150 : vector<8x32xf32>
    %152 = math.tanh %151 : vector<8x32xf32>
    %cst_67 = arith.constant 1.000000e+00 : f32
    %153 = vector.broadcast %cst_67 : f32 to vector<8x32xf32>
    %154 = arith.subf %153, %147 : vector<8x32xf32>
    %155 = arith.mulf %154, %152 : vector<8x32xf32>
    %156 = arith.mulf %147, %123 : vector<8x32xf32>
    %157 = arith.addf %155, %156 : vector<8x32xf32>
    %158 = vector.extract_strided_slice %20 {offsets = [32, 0], sizes = [8, 96], strides = [1, 1]} : vector<64x96xf32> to vector<8x96xf32>
    %cst_68 = arith.constant dense<0.000000e+00> : vector<8x96xf32>
    %159 = tpu.matmul %157, %2, %cst_68 {dimension_numbers = #tpu.dot_dimension_numbers<[1], [0], [0], [1], [0, 0, 1, 1], [], []>} : vector<8x32xf32>, vector<32x96xf32>, vector<8x96xf32> -> vector<8x96xf32>
    %160 = vector.broadcast %4 : vector<1x96xf32> to vector<8x96xf32>
    %161 = arith.addf %159, %160 : vector<8x96xf32>
    %162 = vector.extract_strided_slice %158 {offsets = [0, 0], sizes = [8, 32], strides = [1, 1]} : vector<8x96xf32> to vector<8x32xf32>
    %163 = vector.extract_strided_slice %161 {offsets = [0, 0], sizes = [8, 32], strides = [1, 1]} : vector<8x96xf32> to vector<8x32xf32>
    %164 = arith.addf %162, %163 : vector<8x32xf32>
    %cst_69 = arith.constant 5.000000e-01 : f32
    %165 = vector.broadcast %cst_69 : f32 to vector<8x32xf32>
    %166 = arith.mulf %165, %164 : vector<8x32xf32>
    %167 = math.tanh %166 : vector<8x32xf32>
    %cst_70 = arith.constant 1.000000e+00 : f32
    %168 = vector.broadcast %cst_70 : f32 to vector<8x32xf32>
    %169 = arith.addf %167, %168 : vector<8x32xf32>
    %cst_71 = arith.constant 5.000000e-01 : f32
    %170 = vector.broadcast %cst_71 : f32 to vector<8x32xf32>
    %171 = arith.mulf %170, %169 : vector<8x32xf32>
    %172 = vector.extract_strided_slice %158 {offsets = [0, 32], sizes = [8, 32], strides = [1, 1]} : vector<8x96xf32> to vector<8x32xf32>
    %173 = vector.extract_strided_slice %161 {offsets = [0, 32], sizes = [8, 32], strides = [1, 1]} : vector<8x96xf32> to vector<8x32xf32>
    %174 = arith.addf %172, %173 : vector<8x32xf32>
    %cst_72 = arith.constant 5.000000e-01 : f32
    %175 = vector.broadcast %cst_72 : f32 to vector<8x32xf32>
    %176 = arith.mulf %175, %174 : vector<8x32xf32>
    %177 = math.tanh %176 : vector<8x32xf32>
    %cst_73 = arith.constant 1.000000e+00 : f32
    %178 = vector.broadcast %cst_73 : f32 to vector<8x32xf32>
    %179 = arith.addf %177, %178 : vector<8x32xf32>
    %cst_74 = arith.constant 5.000000e-01 : f32
    %180 = vector.broadcast %cst_74 : f32 to vector<8x32xf32>
    %181 = arith.mulf %180, %179 : vector<8x32xf32>
    %182 = vector.extract_strided_slice %158 {offsets = [0, 64], sizes = [8, 32], strides = [1, 1]} : vector<8x96xf32> to vector<8x32xf32>
    %183 = vector.extract_strided_slice %161 {offsets = [0, 64], sizes = [8, 32], strides = [1, 1]} : vector<8x96xf32> to vector<8x32xf32>
    %184 = arith.mulf %171, %183 : vector<8x32xf32>
    %185 = arith.addf %182, %184 : vector<8x32xf32>
    %186 = math.tanh %185 : vector<8x32xf32>
    %cst_75 = arith.constant 1.000000e+00 : f32
    %187 = vector.broadcast %cst_75 : f32 to vector<8x32xf32>
    %188 = arith.subf %187, %181 : vector<8x32xf32>
    %189 = arith.mulf %188, %186 : vector<8x32xf32>
    %190 = arith.mulf %181, %157 : vector<8x32xf32>
    %191 = arith.addf %189, %190 : vector<8x32xf32>
    %192 = vector.extract_strided_slice %20 {offsets = [40, 0], sizes = [8, 96], strides = [1, 1]} : vector<64x96xf32> to vector<8x96xf32>
    %cst_76 = arith.constant dense<0.000000e+00> : vector<8x96xf32>
    %193 = tpu.matmul %191, %2, %cst_76 {dimension_numbers = #tpu.dot_dimension_numbers<[1], [0], [0], [1], [0, 0, 1, 1], [], []>} : vector<8x32xf32>, vector<32x96xf32>, vector<8x96xf32> -> vector<8x96xf32>
    %194 = vector.broadcast %4 : vector<1x96xf32> to vector<8x96xf32>
    %195 = arith.addf %193, %194 : vector<8x96xf32>
    %196 = vector.extract_strided_slice %192 {offsets = [0, 0], sizes = [8, 32], strides = [1, 1]} : vector<8x96xf32> to vector<8x32xf32>
    %197 = vector.extract_strided_slice %195 {offsets = [0, 0], sizes = [8, 32], strides = [1, 1]} : vector<8x96xf32> to vector<8x32xf32>
    %198 = arith.addf %196, %197 : vector<8x32xf32>
    %cst_77 = arith.constant 5.000000e-01 : f32
    %199 = vector.broadcast %cst_77 : f32 to vector<8x32xf32>
    %200 = arith.mulf %199, %198 : vector<8x32xf32>
    %201 = math.tanh %200 : vector<8x32xf32>
    %cst_78 = arith.constant 1.000000e+00 : f32
    %202 = vector.broadcast %cst_78 : f32 to vector<8x32xf32>
    %203 = arith.addf %201, %202 : vector<8x32xf32>
    %cst_79 = arith.constant 5.000000e-01 : f32
    %204 = vector.broadcast %cst_79 : f32 to vector<8x32xf32>
    %205 = arith.mulf %204, %203 : vector<8x32xf32>
    %206 = vector.extract_strided_slice %192 {offsets = [0, 32], sizes = [8, 32], strides = [1, 1]} : vector<8x96xf32> to vector<8x32xf32>
    %207 = vector.extract_strided_slice %195 {offsets = [0, 32], sizes = [8, 32], strides = [1, 1]} : vector<8x96xf32> to vector<8x32xf32>
    %208 = arith.addf %206, %207 : vector<8x32xf32>
    %cst_80 = arith.constant 5.000000e-01 : f32
    %209 = vector.broadcast %cst_80 : f32 to vector<8x32xf32>
    %210 = arith.mulf %209, %208 : vector<8x32xf32>
    %211 = math.tanh %210 : vector<8x32xf32>
    %cst_81 = arith.constant 1.000000e+00 : f32
    %212 = vector.broadcast %cst_81 : f32 to vector<8x32xf32>
    %213 = arith.addf %211, %212 : vector<8x32xf32>
    %cst_82 = arith.constant 5.000000e-01 : f32
    %214 = vector.broadcast %cst_82 : f32 to vector<8x32xf32>
    %215 = arith.mulf %214, %213 : vector<8x32xf32>
    %216 = vector.extract_strided_slice %192 {offsets = [0, 64], sizes = [8, 32], strides = [1, 1]} : vector<8x96xf32> to vector<8x32xf32>
    %217 = vector.extract_strided_slice %195 {offsets = [0, 64], sizes = [8, 32], strides = [1, 1]} : vector<8x96xf32> to vector<8x32xf32>
    %218 = arith.mulf %205, %217 : vector<8x32xf32>
    %219 = arith.addf %216, %218 : vector<8x32xf32>
    %220 = math.tanh %219 : vector<8x32xf32>
    %cst_83 = arith.constant 1.000000e+00 : f32
    %221 = vector.broadcast %cst_83 : f32 to vector<8x32xf32>
    %222 = arith.subf %221, %215 : vector<8x32xf32>
    %223 = arith.mulf %222, %220 : vector<8x32xf32>
    %224 = arith.mulf %215, %191 : vector<8x32xf32>
    %225 = arith.addf %223, %224 : vector<8x32xf32>
    %226 = vector.extract_strided_slice %20 {offsets = [48, 0], sizes = [8, 96], strides = [1, 1]} : vector<64x96xf32> to vector<8x96xf32>
    %cst_84 = arith.constant dense<0.000000e+00> : vector<8x96xf32>
    %227 = tpu.matmul %225, %2, %cst_84 {dimension_numbers = #tpu.dot_dimension_numbers<[1], [0], [0], [1], [0, 0, 1, 1], [], []>} : vector<8x32xf32>, vector<32x96xf32>, vector<8x96xf32> -> vector<8x96xf32>
    %228 = vector.broadcast %4 : vector<1x96xf32> to vector<8x96xf32>
    %229 = arith.addf %227, %228 : vector<8x96xf32>
    %230 = vector.extract_strided_slice %226 {offsets = [0, 0], sizes = [8, 32], strides = [1, 1]} : vector<8x96xf32> to vector<8x32xf32>
    %231 = vector.extract_strided_slice %229 {offsets = [0, 0], sizes = [8, 32], strides = [1, 1]} : vector<8x96xf32> to vector<8x32xf32>
    %232 = arith.addf %230, %231 : vector<8x32xf32>
    %cst_85 = arith.constant 5.000000e-01 : f32
    %233 = vector.broadcast %cst_85 : f32 to vector<8x32xf32>
    %234 = arith.mulf %233, %232 : vector<8x32xf32>
    %235 = math.tanh %234 : vector<8x32xf32>
    %cst_86 = arith.constant 1.000000e+00 : f32
    %236 = vector.broadcast %cst_86 : f32 to vector<8x32xf32>
    %237 = arith.addf %235, %236 : vector<8x32xf32>
    %cst_87 = arith.constant 5.000000e-01 : f32
    %238 = vector.broadcast %cst_87 : f32 to vector<8x32xf32>
    %239 = arith.mulf %238, %237 : vector<8x32xf32>
    %240 = vector.extract_strided_slice %226 {offsets = [0, 32], sizes = [8, 32], strides = [1, 1]} : vector<8x96xf32> to vector<8x32xf32>
    %241 = vector.extract_strided_slice %229 {offsets = [0, 32], sizes = [8, 32], strides = [1, 1]} : vector<8x96xf32> to vector<8x32xf32>
    %242 = arith.addf %240, %241 : vector<8x32xf32>
    %cst_88 = arith.constant 5.000000e-01 : f32
    %243 = vector.broadcast %cst_88 : f32 to vector<8x32xf32>
    %244 = arith.mulf %243, %242 : vector<8x32xf32>
    %245 = math.tanh %244 : vector<8x32xf32>
    %cst_89 = arith.constant 1.000000e+00 : f32
    %246 = vector.broadcast %cst_89 : f32 to vector<8x32xf32>
    %247 = arith.addf %245, %246 : vector<8x32xf32>
    %cst_90 = arith.constant 5.000000e-01 : f32
    %248 = vector.broadcast %cst_90 : f32 to vector<8x32xf32>
    %249 = arith.mulf %248, %247 : vector<8x32xf32>
    %250 = vector.extract_strided_slice %226 {offsets = [0, 64], sizes = [8, 32], strides = [1, 1]} : vector<8x96xf32> to vector<8x32xf32>
    %251 = vector.extract_strided_slice %229 {offsets = [0, 64], sizes = [8, 32], strides = [1, 1]} : vector<8x96xf32> to vector<8x32xf32>
    %252 = arith.mulf %239, %251 : vector<8x32xf32>
    %253 = arith.addf %250, %252 : vector<8x32xf32>
    %254 = math.tanh %253 : vector<8x32xf32>
    %cst_91 = arith.constant 1.000000e+00 : f32
    %255 = vector.broadcast %cst_91 : f32 to vector<8x32xf32>
    %256 = arith.subf %255, %249 : vector<8x32xf32>
    %257 = arith.mulf %256, %254 : vector<8x32xf32>
    %258 = arith.mulf %249, %225 : vector<8x32xf32>
    %259 = arith.addf %257, %258 : vector<8x32xf32>
    %260 = vector.extract_strided_slice %20 {offsets = [56, 0], sizes = [8, 96], strides = [1, 1]} : vector<64x96xf32> to vector<8x96xf32>
    %cst_92 = arith.constant dense<0.000000e+00> : vector<8x96xf32>
    %261 = tpu.matmul %259, %2, %cst_92 {dimension_numbers = #tpu.dot_dimension_numbers<[1], [0], [0], [1], [0, 0, 1, 1], [], []>} : vector<8x32xf32>, vector<32x96xf32>, vector<8x96xf32> -> vector<8x96xf32>
    %262 = vector.broadcast %4 : vector<1x96xf32> to vector<8x96xf32>
    %263 = arith.addf %261, %262 : vector<8x96xf32>
    %264 = vector.extract_strided_slice %260 {offsets = [0, 0], sizes = [8, 32], strides = [1, 1]} : vector<8x96xf32> to vector<8x32xf32>
    %265 = vector.extract_strided_slice %263 {offsets = [0, 0], sizes = [8, 32], strides = [1, 1]} : vector<8x96xf32> to vector<8x32xf32>
    %266 = arith.addf %264, %265 : vector<8x32xf32>
    %cst_93 = arith.constant 5.000000e-01 : f32
    %267 = vector.broadcast %cst_93 : f32 to vector<8x32xf32>
    %268 = arith.mulf %267, %266 : vector<8x32xf32>
    %269 = math.tanh %268 : vector<8x32xf32>
    %cst_94 = arith.constant 1.000000e+00 : f32
    %270 = vector.broadcast %cst_94 : f32 to vector<8x32xf32>
    %271 = arith.addf %269, %270 : vector<8x32xf32>
    %cst_95 = arith.constant 5.000000e-01 : f32
    %272 = vector.broadcast %cst_95 : f32 to vector<8x32xf32>
    %273 = arith.mulf %272, %271 : vector<8x32xf32>
    %274 = vector.extract_strided_slice %260 {offsets = [0, 32], sizes = [8, 32], strides = [1, 1]} : vector<8x96xf32> to vector<8x32xf32>
    %275 = vector.extract_strided_slice %263 {offsets = [0, 32], sizes = [8, 32], strides = [1, 1]} : vector<8x96xf32> to vector<8x32xf32>
    %276 = arith.addf %274, %275 : vector<8x32xf32>
    %cst_96 = arith.constant 5.000000e-01 : f32
    %277 = vector.broadcast %cst_96 : f32 to vector<8x32xf32>
    %278 = arith.mulf %277, %276 : vector<8x32xf32>
    %279 = math.tanh %278 : vector<8x32xf32>
    %cst_97 = arith.constant 1.000000e+00 : f32
    %280 = vector.broadcast %cst_97 : f32 to vector<8x32xf32>
    %281 = arith.addf %279, %280 : vector<8x32xf32>
    %cst_98 = arith.constant 5.000000e-01 : f32
    %282 = vector.broadcast %cst_98 : f32 to vector<8x32xf32>
    %283 = arith.mulf %282, %281 : vector<8x32xf32>
    %284 = vector.extract_strided_slice %260 {offsets = [0, 64], sizes = [8, 32], strides = [1, 1]} : vector<8x96xf32> to vector<8x32xf32>
    %285 = vector.extract_strided_slice %263 {offsets = [0, 64], sizes = [8, 32], strides = [1, 1]} : vector<8x96xf32> to vector<8x32xf32>
    %286 = arith.mulf %273, %285 : vector<8x32xf32>
    %287 = arith.addf %284, %286 : vector<8x32xf32>
    %288 = math.tanh %287 : vector<8x32xf32>
    %cst_99 = arith.constant 1.000000e+00 : f32
    %289 = vector.broadcast %cst_99 : f32 to vector<8x32xf32>
    %290 = arith.subf %289, %283 : vector<8x32xf32>
    %291 = arith.mulf %290, %288 : vector<8x32xf32>
    %292 = arith.mulf %283, %259 : vector<8x32xf32>
    %293 = arith.addf %291, %292 : vector<8x32xf32>
    %294 = tpu.concatenate %55, %89, %123, %157, %191, %225, %259, %293 in 0 : vector<8x32xf32>, vector<8x32xf32>, vector<8x32xf32>, vector<8x32xf32>, vector<8x32xf32>, vector<8x32xf32>, vector<8x32xf32>, vector<8x32xf32> -> vector<64x32xf32>
    %cst_100 = arith.constant dense<0.000000e+00> : vector<64x32xf32>
    %295 = tpu.matmul %294, %5, %cst_100 {dimension_numbers = #tpu.dot_dimension_numbers<[1], [0], [0], [1], [0, 0, 1, 1], [], []>} : vector<64x32xf32>, vector<32x32xf32>, vector<64x32xf32> -> vector<64x32xf32>
    %296 = vector.broadcast %6 : vector<1x32xf32> to vector<64x32xf32>
    %297 = arith.addf %295, %296 : vector<64x32xf32>
    %cst_101 = arith.constant dense<0.000000e+00> : vector<32x1xf32>
    %298 = tpu.matmul %9, %11, %cst_101 {dimension_numbers = #tpu.dot_dimension_numbers<[1], [0], [0], [1], [0, 0, 1, 1], [], []>} : vector<32x32xf32>, vector<32x1xf32>, vector<32x1xf32> -> vector<32x1xf32>
    %cst_102 = arith.constant dense<0.000000e+00> : vector<1x1xf32>
    %299 = tpu.matmul %10, %11, %cst_102 {dimension_numbers = #tpu.dot_dimension_numbers<[1], [0], [0], [1], [0, 0, 1, 1], [], []>} : vector<1x32xf32>, vector<32x1xf32>, vector<1x1xf32> -> vector<1x1xf32>
    %300 = math.tanh %297 : vector<64x32xf32>
    %cst_103 = arith.constant dense<0.000000e+00> : vector<64x1xf32>
    %301 = tpu.matmul %300, %298, %cst_103 {dimension_numbers = #tpu.dot_dimension_numbers<[1], [0], [0], [1], [0, 0, 1, 1], [], []>} : vector<64x32xf32>, vector<32x1xf32>, vector<64x1xf32> -> vector<64x1xf32>
    %302 = vector.broadcast %299 : vector<1x1xf32> to vector<64x1xf32>
    %303 = arith.addf %301, %302 : vector<64x1xf32>
    %304 = vector.extract_strided_slice %303 {offsets = [0, 0], sizes = [8, 1], strides = [1, 1]} : vector<64x1xf32> to vector<8x1xf32>
    %305 = vector.extract_strided_slice %303 {offsets = [8, 0], sizes = [8, 1], strides = [1, 1]} : vector<64x1xf32> to vector<8x1xf32>
    %306 = vector.extract_strided_slice %303 {offsets = [16, 0], sizes = [8, 1], strides = [1, 1]} : vector<64x1xf32> to vector<8x1xf32>
    %307 = vector.extract_strided_slice %303 {offsets = [24, 0], sizes = [8, 1], strides = [1, 1]} : vector<64x1xf32> to vector<8x1xf32>
    %308 = vector.extract_strided_slice %303 {offsets = [32, 0], sizes = [8, 1], strides = [1, 1]} : vector<64x1xf32> to vector<8x1xf32>
    %309 = vector.extract_strided_slice %303 {offsets = [40, 0], sizes = [8, 1], strides = [1, 1]} : vector<64x1xf32> to vector<8x1xf32>
    %310 = vector.extract_strided_slice %303 {offsets = [48, 0], sizes = [8, 1], strides = [1, 1]} : vector<64x1xf32> to vector<8x1xf32>
    %311 = vector.extract_strided_slice %303 {offsets = [56, 0], sizes = [8, 1], strides = [1, 1]} : vector<64x1xf32> to vector<8x1xf32>
    %312 = tpu.concatenate %304, %305, %306, %307, %308, %309, %310, %311 in 1 : vector<8x1xf32>, vector<8x1xf32>, vector<8x1xf32>, vector<8x1xf32>, vector<8x1xf32>, vector<8x1xf32>, vector<8x1xf32>, vector<8x1xf32> -> vector<8x8xf32>
    %cst_104 = arith.constant dense<0xFF800000> : vector<8xf32>
    %313 = vector.multi_reduction <maximumf>, %312, %cst_104 [1] : vector<8x8xf32> to vector<8xf32>
    %314 = vector.shape_cast %313 : vector<8xf32> to vector<8x1xf32>
    %315 = vector.broadcast %314 : vector<8x1xf32> to vector<8x8xf32>
    %316 = arith.subf %312, %315 : vector<8x8xf32>
    %317 = math.exp %316 : vector<8x8xf32>
    %cst_105 = arith.constant dense<0.000000e+00> : vector<8xf32>
    %318 = vector.multi_reduction <add>, %317, %cst_105 [1] : vector<8x8xf32> to vector<8xf32>
    %319 = vector.shape_cast %318 : vector<8xf32> to vector<8x1xf32>
    %320 = vector.broadcast %319 : vector<8x1xf32> to vector<8x8xf32>
    %321 = arith.divf %317, %320 : vector<8x8xf32>
    %322 = vector.extract_strided_slice %321 {offsets = [0, 0], sizes = [8, 1], strides = [1, 1]} : vector<8x8xf32> to vector<8x1xf32>
    %323 = vector.extract_strided_slice %297 {offsets = [0, 0], sizes = [8, 32], strides = [1, 1]} : vector<64x32xf32> to vector<8x32xf32>
    %324 = vector.broadcast %322 : vector<8x1xf32> to vector<8x32xf32>
    %325 = arith.mulf %324, %323 : vector<8x32xf32>
    %326 = vector.extract_strided_slice %321 {offsets = [0, 1], sizes = [8, 1], strides = [1, 1]} : vector<8x8xf32> to vector<8x1xf32>
    %327 = vector.extract_strided_slice %297 {offsets = [8, 0], sizes = [8, 32], strides = [1, 1]} : vector<64x32xf32> to vector<8x32xf32>
    %328 = vector.broadcast %326 : vector<8x1xf32> to vector<8x32xf32>
    %329 = arith.mulf %328, %327 : vector<8x32xf32>
    %330 = arith.addf %325, %329 : vector<8x32xf32>
    %331 = vector.extract_strided_slice %321 {offsets = [0, 2], sizes = [8, 1], strides = [1, 1]} : vector<8x8xf32> to vector<8x1xf32>
    %332 = vector.extract_strided_slice %297 {offsets = [16, 0], sizes = [8, 32], strides = [1, 1]} : vector<64x32xf32> to vector<8x32xf32>
    %333 = vector.broadcast %331 : vector<8x1xf32> to vector<8x32xf32>
    %334 = arith.mulf %333, %332 : vector<8x32xf32>
    %335 = arith.addf %330, %334 : vector<8x32xf32>
    %336 = vector.extract_strided_slice %321 {offsets = [0, 3], sizes = [8, 1], strides = [1, 1]} : vector<8x8xf32> to vector<8x1xf32>
    %337 = vector.extract_strided_slice %297 {offsets = [24, 0], sizes = [8, 32], strides = [1, 1]} : vector<64x32xf32> to vector<8x32xf32>
    %338 = vector.broadcast %336 : vector<8x1xf32> to vector<8x32xf32>
    %339 = arith.mulf %338, %337 : vector<8x32xf32>
    %340 = arith.addf %335, %339 : vector<8x32xf32>
    %341 = vector.extract_strided_slice %321 {offsets = [0, 4], sizes = [8, 1], strides = [1, 1]} : vector<8x8xf32> to vector<8x1xf32>
    %342 = vector.extract_strided_slice %297 {offsets = [32, 0], sizes = [8, 32], strides = [1, 1]} : vector<64x32xf32> to vector<8x32xf32>
    %343 = vector.broadcast %341 : vector<8x1xf32> to vector<8x32xf32>
    %344 = arith.mulf %343, %342 : vector<8x32xf32>
    %345 = arith.addf %340, %344 : vector<8x32xf32>
    %346 = vector.extract_strided_slice %321 {offsets = [0, 5], sizes = [8, 1], strides = [1, 1]} : vector<8x8xf32> to vector<8x1xf32>
    %347 = vector.extract_strided_slice %297 {offsets = [40, 0], sizes = [8, 32], strides = [1, 1]} : vector<64x32xf32> to vector<8x32xf32>
    %348 = vector.broadcast %346 : vector<8x1xf32> to vector<8x32xf32>
    %349 = arith.mulf %348, %347 : vector<8x32xf32>
    %350 = arith.addf %345, %349 : vector<8x32xf32>
    %351 = vector.extract_strided_slice %321 {offsets = [0, 6], sizes = [8, 1], strides = [1, 1]} : vector<8x8xf32> to vector<8x1xf32>
    %352 = vector.extract_strided_slice %297 {offsets = [48, 0], sizes = [8, 32], strides = [1, 1]} : vector<64x32xf32> to vector<8x32xf32>
    %353 = vector.broadcast %351 : vector<8x1xf32> to vector<8x32xf32>
    %354 = arith.mulf %353, %352 : vector<8x32xf32>
    %355 = arith.addf %350, %354 : vector<8x32xf32>
    %356 = vector.extract_strided_slice %321 {offsets = [0, 7], sizes = [8, 1], strides = [1, 1]} : vector<8x8xf32> to vector<8x1xf32>
    %357 = vector.extract_strided_slice %297 {offsets = [56, 0], sizes = [8, 32], strides = [1, 1]} : vector<64x32xf32> to vector<8x32xf32>
    %358 = vector.broadcast %356 : vector<8x1xf32> to vector<8x32xf32>
    %359 = arith.mulf %358, %357 : vector<8x32xf32>
    %360 = arith.addf %355, %359 : vector<8x32xf32>
    %361 = vector.extract_strided_slice %0 {offsets = [56, 0], sizes = [8, 4], strides = [1, 1]} : vector<64x4xf32> to vector<8x4xf32>
    %cst_106 = arith.constant dense<0.000000e+00> : vector<8x32xf32>
    %362 = tpu.matmul %361, %7, %cst_106 {dimension_numbers = #tpu.dot_dimension_numbers<[1], [0], [0], [1], [0, 0, 1, 1], [], []>} : vector<8x4xf32>, vector<4x32xf32>, vector<8x32xf32> -> vector<8x32xf32>
    %363 = vector.broadcast %8 : vector<1x32xf32> to vector<8x32xf32>
    %364 = arith.addf %362, %363 : vector<8x32xf32>
    %365 = math.tanh %364 : vector<8x32xf32>
    %366 = arith.addf %360, %365 : vector<8x32xf32>
    %cst_107 = arith.constant dense<0.000000e+00> : vector<8x96xf32>
    %367 = tpu.matmul %366, %12, %cst_107 {dimension_numbers = #tpu.dot_dimension_numbers<[1], [0], [0], [1], [0, 0, 1, 1], [], []>} : vector<8x32xf32>, vector<32x96xf32>, vector<8x96xf32> -> vector<8x96xf32>
    %368 = vector.broadcast %14 : vector<1x96xf32> to vector<8x96xf32>
    %369 = arith.addf %367, %368 : vector<8x96xf32>
    %cst_108 = arith.constant dense<0.000000e+00> : vector<8x96xf32>
    %370 = tpu.matmul %293, %13, %cst_108 {dimension_numbers = #tpu.dot_dimension_numbers<[1], [0], [0], [1], [0, 0, 1, 1], [], []>} : vector<8x32xf32>, vector<32x96xf32>, vector<8x96xf32> -> vector<8x96xf32>
    %371 = vector.broadcast %15 : vector<1x96xf32> to vector<8x96xf32>
    %372 = arith.addf %370, %371 : vector<8x96xf32>
    %373 = vector.extract_strided_slice %369 {offsets = [0, 0], sizes = [8, 32], strides = [1, 1]} : vector<8x96xf32> to vector<8x32xf32>
    %374 = vector.extract_strided_slice %372 {offsets = [0, 0], sizes = [8, 32], strides = [1, 1]} : vector<8x96xf32> to vector<8x32xf32>
    %375 = arith.addf %373, %374 : vector<8x32xf32>
    %cst_109 = arith.constant 5.000000e-01 : f32
    %376 = vector.broadcast %cst_109 : f32 to vector<8x32xf32>
    %377 = arith.mulf %376, %375 : vector<8x32xf32>
    %378 = math.tanh %377 : vector<8x32xf32>
    %cst_110 = arith.constant 1.000000e+00 : f32
    %379 = vector.broadcast %cst_110 : f32 to vector<8x32xf32>
    %380 = arith.addf %378, %379 : vector<8x32xf32>
    %cst_111 = arith.constant 5.000000e-01 : f32
    %381 = vector.broadcast %cst_111 : f32 to vector<8x32xf32>
    %382 = arith.mulf %381, %380 : vector<8x32xf32>
    %383 = vector.extract_strided_slice %369 {offsets = [0, 32], sizes = [8, 32], strides = [1, 1]} : vector<8x96xf32> to vector<8x32xf32>
    %384 = vector.extract_strided_slice %372 {offsets = [0, 32], sizes = [8, 32], strides = [1, 1]} : vector<8x96xf32> to vector<8x32xf32>
    %385 = arith.addf %383, %384 : vector<8x32xf32>
    %cst_112 = arith.constant 5.000000e-01 : f32
    %386 = vector.broadcast %cst_112 : f32 to vector<8x32xf32>
    %387 = arith.mulf %386, %385 : vector<8x32xf32>
    %388 = math.tanh %387 : vector<8x32xf32>
    %cst_113 = arith.constant 1.000000e+00 : f32
    %389 = vector.broadcast %cst_113 : f32 to vector<8x32xf32>
    %390 = arith.addf %388, %389 : vector<8x32xf32>
    %cst_114 = arith.constant 5.000000e-01 : f32
    %391 = vector.broadcast %cst_114 : f32 to vector<8x32xf32>
    %392 = arith.mulf %391, %390 : vector<8x32xf32>
    %393 = vector.extract_strided_slice %369 {offsets = [0, 64], sizes = [8, 32], strides = [1, 1]} : vector<8x96xf32> to vector<8x32xf32>
    %394 = vector.extract_strided_slice %372 {offsets = [0, 64], sizes = [8, 32], strides = [1, 1]} : vector<8x96xf32> to vector<8x32xf32>
    %395 = arith.mulf %382, %394 : vector<8x32xf32>
    %396 = arith.addf %393, %395 : vector<8x32xf32>
    %397 = math.tanh %396 : vector<8x32xf32>
    %cst_115 = arith.constant 1.000000e+00 : f32
    %398 = vector.broadcast %cst_115 : f32 to vector<8x32xf32>
    %399 = arith.subf %398, %392 : vector<8x32xf32>
    %400 = arith.mulf %399, %397 : vector<8x32xf32>
    %401 = arith.mulf %392, %293 : vector<8x32xf32>
    %402 = arith.addf %400, %401 : vector<8x32xf32>
    %cst_116 = arith.constant dense<0.000000e+00> : vector<8x4xf32>
    %403 = tpu.matmul %402, %16, %cst_116 {dimension_numbers = #tpu.dot_dimension_numbers<[1], [0], [0], [1], [0, 0, 1, 1], [], []>} : vector<8x32xf32>, vector<32x4xf32>, vector<8x4xf32> -> vector<8x4xf32>
    %404 = vector.broadcast %17 : vector<1x4xf32> to vector<8x4xf32>
    %405 = arith.addf %403, %404 : vector<8x4xf32>
    %c0_117 = arith.constant 0 : index
    %c0_118 = arith.constant 0 : index
    %c0_119 = arith.constant 0 : index
    %406 = vector.load %arg18[%c0_117, %c0_118, %c0_119] : memref<4x8x4xf32, #tpu.memory_space<vmem>>, vector<1x8x4xf32>
    %407 = vector.shape_cast %406 : vector<1x8x4xf32> to vector<8x4xf32>
    %408 = vector.shape_cast %405 : vector<8x4xf32> to vector<1x8x4xf32>
    tpu.vector_store %arg18[%c0_117, %c0_118, %c0_119], %408 {strides = array<i32>} : memref<4x8x4xf32, #tpu.memory_space<vmem>>, vector<1x8x4xf32>,
    %cst_120 = arith.constant dense<0.000000e+00> : vector<8x32xf32>
    %409 = tpu.matmul %405, %7, %cst_120 {dimension_numbers = #tpu.dot_dimension_numbers<[1], [0], [0], [1], [0, 0, 1, 1], [], []>} : vector<8x4xf32>, vector<4x32xf32>, vector<8x32xf32> -> vector<8x32xf32>
    %410 = vector.broadcast %8 : vector<1x32xf32> to vector<8x32xf32>
    %411 = arith.addf %409, %410 : vector<8x32xf32>
    %412 = math.tanh %411 : vector<8x32xf32>
    %413 = arith.addf %360, %412 : vector<8x32xf32>
    %cst_121 = arith.constant dense<0.000000e+00> : vector<8x96xf32>
    %414 = tpu.matmul %413, %12, %cst_121 {dimension_numbers = #tpu.dot_dimension_numbers<[1], [0], [0], [1], [0, 0, 1, 1], [], []>} : vector<8x32xf32>, vector<32x96xf32>, vector<8x96xf32> -> vector<8x96xf32>
    %415 = vector.broadcast %14 : vector<1x96xf32> to vector<8x96xf32>
    %416 = arith.addf %414, %415 : vector<8x96xf32>
    %cst_122 = arith.constant dense<0.000000e+00> : vector<8x96xf32>
    %417 = tpu.matmul %402, %13, %cst_122 {dimension_numbers = #tpu.dot_dimension_numbers<[1], [0], [0], [1], [0, 0, 1, 1], [], []>} : vector<8x32xf32>, vector<32x96xf32>, vector<8x96xf32> -> vector<8x96xf32>
    %418 = vector.broadcast %15 : vector<1x96xf32> to vector<8x96xf32>
    %419 = arith.addf %417, %418 : vector<8x96xf32>
    %420 = vector.extract_strided_slice %416 {offsets = [0, 0], sizes = [8, 32], strides = [1, 1]} : vector<8x96xf32> to vector<8x32xf32>
    %421 = vector.extract_strided_slice %419 {offsets = [0, 0], sizes = [8, 32], strides = [1, 1]} : vector<8x96xf32> to vector<8x32xf32>
    %422 = arith.addf %420, %421 : vector<8x32xf32>
    %cst_123 = arith.constant 5.000000e-01 : f32
    %423 = vector.broadcast %cst_123 : f32 to vector<8x32xf32>
    %424 = arith.mulf %423, %422 : vector<8x32xf32>
    %425 = math.tanh %424 : vector<8x32xf32>
    %cst_124 = arith.constant 1.000000e+00 : f32
    %426 = vector.broadcast %cst_124 : f32 to vector<8x32xf32>
    %427 = arith.addf %425, %426 : vector<8x32xf32>
    %cst_125 = arith.constant 5.000000e-01 : f32
    %428 = vector.broadcast %cst_125 : f32 to vector<8x32xf32>
    %429 = arith.mulf %428, %427 : vector<8x32xf32>
    %430 = vector.extract_strided_slice %416 {offsets = [0, 32], sizes = [8, 32], strides = [1, 1]} : vector<8x96xf32> to vector<8x32xf32>
    %431 = vector.extract_strided_slice %419 {offsets = [0, 32], sizes = [8, 32], strides = [1, 1]} : vector<8x96xf32> to vector<8x32xf32>
    %432 = arith.addf %430, %431 : vector<8x32xf32>
    %cst_126 = arith.constant 5.000000e-01 : f32
    %433 = vector.broadcast %cst_126 : f32 to vector<8x32xf32>
    %434 = arith.mulf %433, %432 : vector<8x32xf32>
    %435 = math.tanh %434 : vector<8x32xf32>
    %cst_127 = arith.constant 1.000000e+00 : f32
    %436 = vector.broadcast %cst_127 : f32 to vector<8x32xf32>
    %437 = arith.addf %435, %436 : vector<8x32xf32>
    %cst_128 = arith.constant 5.000000e-01 : f32
    %438 = vector.broadcast %cst_128 : f32 to vector<8x32xf32>
    %439 = arith.mulf %438, %437 : vector<8x32xf32>
    %440 = vector.extract_strided_slice %416 {offsets = [0, 64], sizes = [8, 32], strides = [1, 1]} : vector<8x96xf32> to vector<8x32xf32>
    %441 = vector.extract_strided_slice %419 {offsets = [0, 64], sizes = [8, 32], strides = [1, 1]} : vector<8x96xf32> to vector<8x32xf32>
    %442 = arith.mulf %429, %441 : vector<8x32xf32>
    %443 = arith.addf %440, %442 : vector<8x32xf32>
    %444 = math.tanh %443 : vector<8x32xf32>
    %cst_129 = arith.constant 1.000000e+00 : f32
    %445 = vector.broadcast %cst_129 : f32 to vector<8x32xf32>
    %446 = arith.subf %445, %439 : vector<8x32xf32>
    %447 = arith.mulf %446, %444 : vector<8x32xf32>
    %448 = arith.mulf %439, %402 : vector<8x32xf32>
    %449 = arith.addf %447, %448 : vector<8x32xf32>
    %cst_130 = arith.constant dense<0.000000e+00> : vector<8x4xf32>
    %450 = tpu.matmul %449, %16, %cst_130 {dimension_numbers = #tpu.dot_dimension_numbers<[1], [0], [0], [1], [0, 0, 1, 1], [], []>} : vector<8x32xf32>, vector<32x4xf32>, vector<8x4xf32> -> vector<8x4xf32>
    %451 = vector.broadcast %17 : vector<1x4xf32> to vector<8x4xf32>
    %452 = arith.addf %450, %451 : vector<8x4xf32>
    %c1 = arith.constant 1 : index
    %c0_131 = arith.constant 0 : index
    %c0_132 = arith.constant 0 : index
    %453 = vector.load %arg18[%c1, %c0_131, %c0_132] : memref<4x8x4xf32, #tpu.memory_space<vmem>>, vector<1x8x4xf32>
    %454 = vector.shape_cast %453 : vector<1x8x4xf32> to vector<8x4xf32>
    %455 = vector.shape_cast %452 : vector<8x4xf32> to vector<1x8x4xf32>
    tpu.vector_store %arg18[%c1, %c0_131, %c0_132], %455 {strides = array<i32>} : memref<4x8x4xf32, #tpu.memory_space<vmem>>, vector<1x8x4xf32>,
    %cst_133 = arith.constant dense<0.000000e+00> : vector<8x32xf32>
    %456 = tpu.matmul %452, %7, %cst_133 {dimension_numbers = #tpu.dot_dimension_numbers<[1], [0], [0], [1], [0, 0, 1, 1], [], []>} : vector<8x4xf32>, vector<4x32xf32>, vector<8x32xf32> -> vector<8x32xf32>
    %457 = vector.broadcast %8 : vector<1x32xf32> to vector<8x32xf32>
    %458 = arith.addf %456, %457 : vector<8x32xf32>
    %459 = math.tanh %458 : vector<8x32xf32>
    %460 = arith.addf %360, %459 : vector<8x32xf32>
    %cst_134 = arith.constant dense<0.000000e+00> : vector<8x96xf32>
    %461 = tpu.matmul %460, %12, %cst_134 {dimension_numbers = #tpu.dot_dimension_numbers<[1], [0], [0], [1], [0, 0, 1, 1], [], []>} : vector<8x32xf32>, vector<32x96xf32>, vector<8x96xf32> -> vector<8x96xf32>
    %462 = vector.broadcast %14 : vector<1x96xf32> to vector<8x96xf32>
    %463 = arith.addf %461, %462 : vector<8x96xf32>
    %cst_135 = arith.constant dense<0.000000e+00> : vector<8x96xf32>
    %464 = tpu.matmul %449, %13, %cst_135 {dimension_numbers = #tpu.dot_dimension_numbers<[1], [0], [0], [1], [0, 0, 1, 1], [], []>} : vector<8x32xf32>, vector<32x96xf32>, vector<8x96xf32> -> vector<8x96xf32>
    %465 = vector.broadcast %15 : vector<1x96xf32> to vector<8x96xf32>
    %466 = arith.addf %464, %465 : vector<8x96xf32>
    %467 = vector.extract_strided_slice %463 {offsets = [0, 0], sizes = [8, 32], strides = [1, 1]} : vector<8x96xf32> to vector<8x32xf32>
    %468 = vector.extract_strided_slice %466 {offsets = [0, 0], sizes = [8, 32], strides = [1, 1]} : vector<8x96xf32> to vector<8x32xf32>
    %469 = arith.addf %467, %468 : vector<8x32xf32>
    %cst_136 = arith.constant 5.000000e-01 : f32
    %470 = vector.broadcast %cst_136 : f32 to vector<8x32xf32>
    %471 = arith.mulf %470, %469 : vector<8x32xf32>
    %472 = math.tanh %471 : vector<8x32xf32>
    %cst_137 = arith.constant 1.000000e+00 : f32
    %473 = vector.broadcast %cst_137 : f32 to vector<8x32xf32>
    %474 = arith.addf %472, %473 : vector<8x32xf32>
    %cst_138 = arith.constant 5.000000e-01 : f32
    %475 = vector.broadcast %cst_138 : f32 to vector<8x32xf32>
    %476 = arith.mulf %475, %474 : vector<8x32xf32>
    %477 = vector.extract_strided_slice %463 {offsets = [0, 32], sizes = [8, 32], strides = [1, 1]} : vector<8x96xf32> to vector<8x32xf32>
    %478 = vector.extract_strided_slice %466 {offsets = [0, 32], sizes = [8, 32], strides = [1, 1]} : vector<8x96xf32> to vector<8x32xf32>
    %479 = arith.addf %477, %478 : vector<8x32xf32>
    %cst_139 = arith.constant 5.000000e-01 : f32
    %480 = vector.broadcast %cst_139 : f32 to vector<8x32xf32>
    %481 = arith.mulf %480, %479 : vector<8x32xf32>
    %482 = math.tanh %481 : vector<8x32xf32>
    %cst_140 = arith.constant 1.000000e+00 : f32
    %483 = vector.broadcast %cst_140 : f32 to vector<8x32xf32>
    %484 = arith.addf %482, %483 : vector<8x32xf32>
    %cst_141 = arith.constant 5.000000e-01 : f32
    %485 = vector.broadcast %cst_141 : f32 to vector<8x32xf32>
    %486 = arith.mulf %485, %484 : vector<8x32xf32>
    %487 = vector.extract_strided_slice %463 {offsets = [0, 64], sizes = [8, 32], strides = [1, 1]} : vector<8x96xf32> to vector<8x32xf32>
    %488 = vector.extract_strided_slice %466 {offsets = [0, 64], sizes = [8, 32], strides = [1, 1]} : vector<8x96xf32> to vector<8x32xf32>
    %489 = arith.mulf %476, %488 : vector<8x32xf32>
    %490 = arith.addf %487, %489 : vector<8x32xf32>
    %491 = math.tanh %490 : vector<8x32xf32>
    %cst_142 = arith.constant 1.000000e+00 : f32
    %492 = vector.broadcast %cst_142 : f32 to vector<8x32xf32>
    %493 = arith.subf %492, %486 : vector<8x32xf32>
    %494 = arith.mulf %493, %491 : vector<8x32xf32>
    %495 = arith.mulf %486, %449 : vector<8x32xf32>
    %496 = arith.addf %494, %495 : vector<8x32xf32>
    %cst_143 = arith.constant dense<0.000000e+00> : vector<8x4xf32>
    %497 = tpu.matmul %496, %16, %cst_143 {dimension_numbers = #tpu.dot_dimension_numbers<[1], [0], [0], [1], [0, 0, 1, 1], [], []>} : vector<8x32xf32>, vector<32x4xf32>, vector<8x4xf32> -> vector<8x4xf32>
    %498 = vector.broadcast %17 : vector<1x4xf32> to vector<8x4xf32>
    %499 = arith.addf %497, %498 : vector<8x4xf32>
    %c2 = arith.constant 2 : index
    %c0_144 = arith.constant 0 : index
    %c0_145 = arith.constant 0 : index
    %500 = vector.load %arg18[%c2, %c0_144, %c0_145] : memref<4x8x4xf32, #tpu.memory_space<vmem>>, vector<1x8x4xf32>
    %501 = vector.shape_cast %500 : vector<1x8x4xf32> to vector<8x4xf32>
    %502 = vector.shape_cast %499 : vector<8x4xf32> to vector<1x8x4xf32>
    tpu.vector_store %arg18[%c2, %c0_144, %c0_145], %502 {strides = array<i32>} : memref<4x8x4xf32, #tpu.memory_space<vmem>>, vector<1x8x4xf32>,
    %cst_146 = arith.constant dense<0.000000e+00> : vector<8x32xf32>
    %503 = tpu.matmul %499, %7, %cst_146 {dimension_numbers = #tpu.dot_dimension_numbers<[1], [0], [0], [1], [0, 0, 1, 1], [], []>} : vector<8x4xf32>, vector<4x32xf32>, vector<8x32xf32> -> vector<8x32xf32>
    %504 = vector.broadcast %8 : vector<1x32xf32> to vector<8x32xf32>
    %505 = arith.addf %503, %504 : vector<8x32xf32>
    %506 = math.tanh %505 : vector<8x32xf32>
    %507 = arith.addf %360, %506 : vector<8x32xf32>
    %cst_147 = arith.constant dense<0.000000e+00> : vector<8x96xf32>
    %508 = tpu.matmul %507, %12, %cst_147 {dimension_numbers = #tpu.dot_dimension_numbers<[1], [0], [0], [1], [0, 0, 1, 1], [], []>} : vector<8x32xf32>, vector<32x96xf32>, vector<8x96xf32> -> vector<8x96xf32>
    %509 = vector.broadcast %14 : vector<1x96xf32> to vector<8x96xf32>
    %510 = arith.addf %508, %509 : vector<8x96xf32>
    %cst_148 = arith.constant dense<0.000000e+00> : vector<8x96xf32>
    %511 = tpu.matmul %496, %13, %cst_148 {dimension_numbers = #tpu.dot_dimension_numbers<[1], [0], [0], [1], [0, 0, 1, 1], [], []>} : vector<8x32xf32>, vector<32x96xf32>, vector<8x96xf32> -> vector<8x96xf32>
    %512 = vector.broadcast %15 : vector<1x96xf32> to vector<8x96xf32>
    %513 = arith.addf %511, %512 : vector<8x96xf32>
    %514 = vector.extract_strided_slice %510 {offsets = [0, 0], sizes = [8, 32], strides = [1, 1]} : vector<8x96xf32> to vector<8x32xf32>
    %515 = vector.extract_strided_slice %513 {offsets = [0, 0], sizes = [8, 32], strides = [1, 1]} : vector<8x96xf32> to vector<8x32xf32>
    %516 = arith.addf %514, %515 : vector<8x32xf32>
    %cst_149 = arith.constant 5.000000e-01 : f32
    %517 = vector.broadcast %cst_149 : f32 to vector<8x32xf32>
    %518 = arith.mulf %517, %516 : vector<8x32xf32>
    %519 = math.tanh %518 : vector<8x32xf32>
    %cst_150 = arith.constant 1.000000e+00 : f32
    %520 = vector.broadcast %cst_150 : f32 to vector<8x32xf32>
    %521 = arith.addf %519, %520 : vector<8x32xf32>
    %cst_151 = arith.constant 5.000000e-01 : f32
    %522 = vector.broadcast %cst_151 : f32 to vector<8x32xf32>
    %523 = arith.mulf %522, %521 : vector<8x32xf32>
    %524 = vector.extract_strided_slice %510 {offsets = [0, 32], sizes = [8, 32], strides = [1, 1]} : vector<8x96xf32> to vector<8x32xf32>
    %525 = vector.extract_strided_slice %513 {offsets = [0, 32], sizes = [8, 32], strides = [1, 1]} : vector<8x96xf32> to vector<8x32xf32>
    %526 = arith.addf %524, %525 : vector<8x32xf32>
    %cst_152 = arith.constant 5.000000e-01 : f32
    %527 = vector.broadcast %cst_152 : f32 to vector<8x32xf32>
    %528 = arith.mulf %527, %526 : vector<8x32xf32>
    %529 = math.tanh %528 : vector<8x32xf32>
    %cst_153 = arith.constant 1.000000e+00 : f32
    %530 = vector.broadcast %cst_153 : f32 to vector<8x32xf32>
    %531 = arith.addf %529, %530 : vector<8x32xf32>
    %cst_154 = arith.constant 5.000000e-01 : f32
    %532 = vector.broadcast %cst_154 : f32 to vector<8x32xf32>
    %533 = arith.mulf %532, %531 : vector<8x32xf32>
    %534 = vector.extract_strided_slice %510 {offsets = [0, 64], sizes = [8, 32], strides = [1, 1]} : vector<8x96xf32> to vector<8x32xf32>
    %535 = vector.extract_strided_slice %513 {offsets = [0, 64], sizes = [8, 32], strides = [1, 1]} : vector<8x96xf32> to vector<8x32xf32>
    %536 = arith.mulf %523, %535 : vector<8x32xf32>
    %537 = arith.addf %534, %536 : vector<8x32xf32>
    %538 = math.tanh %537 : vector<8x32xf32>
    %cst_155 = arith.constant 1.000000e+00 : f32
    %539 = vector.broadcast %cst_155 : f32 to vector<8x32xf32>
    %540 = arith.subf %539, %533 : vector<8x32xf32>
    %541 = arith.mulf %540, %538 : vector<8x32xf32>
    %542 = arith.mulf %533, %496 : vector<8x32xf32>
    %543 = arith.addf %541, %542 : vector<8x32xf32>
    %cst_156 = arith.constant dense<0.000000e+00> : vector<8x4xf32>
    %544 = tpu.matmul %543, %16, %cst_156 {dimension_numbers = #tpu.dot_dimension_numbers<[1], [0], [0], [1], [0, 0, 1, 1], [], []>} : vector<8x32xf32>, vector<32x4xf32>, vector<8x4xf32> -> vector<8x4xf32>
    %545 = vector.broadcast %17 : vector<1x4xf32> to vector<8x4xf32>
    %546 = arith.addf %544, %545 : vector<8x4xf32>
    %c3 = arith.constant 3 : index
    %c0_157 = arith.constant 0 : index
    %c0_158 = arith.constant 0 : index
    %547 = vector.load %arg18[%c3, %c0_157, %c0_158] : memref<4x8x4xf32, #tpu.memory_space<vmem>>, vector<1x8x4xf32>
    %548 = vector.shape_cast %547 : vector<1x8x4xf32> to vector<8x4xf32>
    %549 = vector.shape_cast %546 : vector<8x4xf32> to vector<1x8x4xf32>
    tpu.vector_store %arg18[%c3, %c0_157, %c0_158], %549 {strides = array<i32>} : memref<4x8x4xf32, #tpu.memory_space<vmem>>, vector<1x8x4xf32>,
    return
  }
}

</mosaic_0001>

<llo_original>
// kernel: tpu_custom_call.1
$region0: #{tpu_custom_call.1}
  #allocation0 [shape = 'u32[]', space=smem, size = 0x4, offset = 0x4, fixed_abs, tag = 'smem constant byte address 0x4 - core index']
  #allocation1 [shape = 'u32[144,128]{1,0:T(1,128)}', space=vmem, size = 0x12000, scoped, tag = 'internal scratch']
  %s0 = inlined_call_operand.vmem [shape: f32[64,4], index: 0, kind: input, shape index: {}]
  %s1 = inlined_call_operand.hbm [shape: f32[4,96], index: 1, kind: input, shape index: {}]
  %s2 = inlined_call_operand.vmem [shape: f32[32,96], index: 2, kind: input, shape index: {}]
  %s3 = inlined_call_operand.hbm [shape: f32[1,96], index: 3, kind: input, shape index: {}]
  %s4 = inlined_call_operand.hbm [shape: f32[1,96], index: 4, kind: input, shape index: {}]
  %s5 = inlined_call_operand.vmem [shape: f32[32,32], index: 5, kind: input, shape index: {}]
  %s6 = inlined_call_operand.hbm [shape: f32[1,32], index: 6, kind: input, shape index: {}]
  %s7 = inlined_call_operand.hbm [shape: f32[4,32], index: 7, kind: input, shape index: {}]
  %s8 = inlined_call_operand.hbm [shape: f32[1,32], index: 8, kind: input, shape index: {}]
  %s9 = inlined_call_operand.vmem [shape: f32[32,32], index: 9, kind: input, shape index: {}]
  %s10 = inlined_call_operand.hbm [shape: f32[1,32], index: 10, kind: input, shape index: {}]
  %s11 = inlined_call_operand.vmem [shape: f32[32,1], index: 11, kind: input, shape index: {}]
  %s12 = inlined_call_operand.vmem [shape: f32[32,96], index: 12, kind: input, shape index: {}]
  %s13 = inlined_call_operand.vmem [shape: f32[32,96], index: 13, kind: input, shape index: {}]
  %s14 = inlined_call_operand.hbm [shape: f32[1,96], index: 14, kind: input, shape index: {}]
  %s15 = inlined_call_operand.hbm [shape: f32[1,96], index: 15, kind: input, shape index: {}]
  %s16 = inlined_call_operand.vmem [shape: f32[32,4], index: 16, kind: input, shape index: {}]
  %s17 = inlined_call_operand.vmem [shape: f32[1,4], index: 17, kind: input, shape index: {}]
  %s18 = inlined_call_operand.vmem [shape: f32[4,8,4], index: 18, kind: output, shape index: {}]
  %s19 = sld [smem:[#allocation0]]
  $region118: #{tpu_custom_call.1} parent=0
    _
  %s21 = ssub.s32 1, %s19
  %s22 = scalar_select 0, %s21, %s19
  $region1: #{tpu_custom_call.1} parent=0
    #allocation2 [shape = 'u8[2048]{0}', space=vmem, size = 0x800, scoped, tag = 'input window, operand 1, single buffered']
    #allocation3 [shape = 's32[1]{0}', space=sflag, size = 0x4, scoped, tag = 'scoped memory for tpu_custom_call.1']
    #allocation4 [shape = 'u8[512]{0}', space=vmem, size = 0x400, scoped, tag = 'input window, operand 3, single buffered']
    #allocation5 [shape = 's32[1]{0}', space=sflag, size = 0x4, scoped, tag = 'scoped memory for tpu_custom_call.1']
    #allocation6 [shape = 'u8[512]{0}', space=vmem, size = 0x400, scoped, tag = 'input window, operand 4, single buffered']
    #allocation7 [shape = 'u8[512]{0}', space=vmem, size = 0x400, scoped, tag = 'input window, operand 6, single buffered']
    #allocation8 [shape = 's32[1]{0}', space=sflag, size = 0x4, scoped, tag = 'scoped memory for tpu_custom_call.1']
    #allocation9 [shape = 'u8[2048]{0}', space=vmem, size = 0x800, scoped, tag = 'input window, operand 7, single buffered']
    #allocation10 [shape = 'u8[512]{0}', space=vmem, size = 0x400, scoped, tag = 'input window, operand 8, single buffered']
    #allocation11 [shape = 's32[1]{0}', space=sflag, size = 0x4, scoped, tag = 'scoped memory for tpu_custom_call.1']
    #allocation12 [shape = 'u8[512]{0}', space=vmem, size = 0x400, scoped, tag = 'input window, operand 10, single buffered']
    #allocation13 [shape = 'u8[512]{0}', space=vmem, size = 0x400, scoped, tag = 'input window, operand 14, single buffered']
    #allocation14 [shape = 's32[1]{0}', space=sflag, size = 0x4, scoped, tag = 'scoped memory for tpu_custom_call.1']
    #allocation15 [shape = 'u8[512]{0}', space=vmem, size = 0x400, scoped, tag = 'input window, operand 15, single buffered']
    %23 = vsyncpa [#allocation3], 0
    %24 = vsyncpa [#allocation5], 0
    %25 = vsyncpa [#allocation8], 0
    %26 = vsyncpa [#allocation11], 0
    %27 = vsyncpa [#allocation14], 0
    // Predicated region
    $region2: #{tpu_custom_call.1} parent=1 // pred_check
      _
    $region3: #{tpu_custom_call.1} parent=1 // pred_check_branch
      %29 = sbr.rel (0) target = $region5
    $region4: #{tpu_custom_call.1} parent=1 // pred_region
      _
    $region5: #{tpu_custom_call.1} parent=1 // pred_fallthru
      _
    // Predicated region
    $region6: #{tpu_custom_call.1} parent=1 // pred_check
      _
    $region7: #{tpu_custom_call.1} parent=1 // pred_check_branch
      %31 = sbr.rel (0) target = $region9
    $region8: #{tpu_custom_call.1} parent=1 // pred_region
      %s33 = ssub.s32 64, 64
      %34 = vsyncadd [#allocation3], %s33
      %s36 = sshll.u32 [#allocation2], 4
      %s37 = int_to_ptr.vmem [resolvable:$true] %s36
      %39 = dma.hbm_to_vmem [thread:$0]  %s1, 64, %s37, [#allocation3]
    $region9: #{tpu_custom_call.1} parent=1 // pred_fallthru
      _
    // Predicated region
    $region10: #{tpu_custom_call.1} parent=1 // pred_check
      _
    $region11: #{tpu_custom_call.1} parent=1 // pred_check_branch
      %41 = sbr.rel (0) target = $region13
    $region12: #{tpu_custom_call.1} parent=1 // pred_region
      _
    $region13: #{tpu_custom_call.1} parent=1 // pred_fallthru
      _
    // Predicated region
    $region14: #{tpu_custom_call.1} parent=1 // pred_check
      _
    $region15: #{tpu_custom_call.1} parent=1 // pred_check_branch
      %43 = sbr.rel (0) target = $region17
    $region16: #{tpu_custom_call.1} parent=1 // pred_region
      %s45 = ssub.s32 16, 16
      %46 = vsyncadd [#allocation5], %s45
      %s48 = sshll.u32 [#allocation4], 4
      %s49 = int_to_ptr.vmem [resolvable:$true] %s48
      %51 = dma.hbm_to_vmem [thread:$0]  %s3, 16, %s49, [#allocation5]
    $region17: #{tpu_custom_call.1} parent=1 // pred_fallthru
      _
    // Predicated region
    $region18: #{tpu_custom_call.1} parent=1 // pred_check
      _
    $region19: #{tpu_custom_call.1} parent=1 // pred_check_branch
      %53 = sbr.rel (0) target = $region21
    $region20: #{tpu_custom_call.1} parent=1 // pred_region
      %s55 = ssub.s32 16, 16
      %56 = vsyncadd [#allocation5], %s55
      %s58 = sshll.u32 [#allocation6], 4
      %s59 = int_to_ptr.vmem [resolvable:$true] %s58
      %61 = dma.hbm_to_vmem [thread:$0]  %s4, 16, %s59, [#allocation5]
    $region21: #{tpu_custom_call.1} parent=1 // pred_fallthru
      _
    // Predicated region
    $region22: #{tpu_custom_call.1} parent=1 // pred_check
      _
    $region23: #{tpu_custom_call.1} parent=1 // pred_check_branch
      %63 = sbr.rel (0) target = $region25
    $region24: #{tpu_custom_call.1} parent=1 // pred_region
      _
    $region25: #{tpu_custom_call.1} parent=1 // pred_fallthru
      _
    // Predicated region
    $region26: #{tpu_custom_call.1} parent=1 // pred_check
      _
    $region27: #{tpu_custom_call.1} parent=1 // pred_check_branch
      %65 = sbr.rel (0) target = $region29
    $region28: #{tpu_custom_call.1} parent=1 // pred_region
      %s67 = ssub.s32 16, 16
      %68 = vsyncadd [#allocation8], %s67
      %s70 = sshll.u32 [#allocation7], 4
      %s71 = int_to_ptr.vmem [resolvable:$true] %s70
      %73 = dma.hbm_to_vmem [thread:$0]  %s6, 16, %s71, [#allocation8]
    $region29: #{tpu_custom_call.1} parent=1 // pred_fallthru
      _
    // Predicated region
    $region30: #{tpu_custom_call.1} parent=1 // pred_check
      _
    $region31: #{tpu_custom_call.1} parent=1 // pred_check_branch
      %75 = sbr.rel (0) target = $region33
    $region32: #{tpu_custom_call.1} parent=1 // pred_region
      %s77 = ssub.s32 64, 64
      %78 = vsyncadd [#allocation8], %s77
      %s80 = sshll.u32 [#allocation9], 4
      %s81 = int_to_ptr.vmem [resolvable:$true] %s80
      %83 = dma.hbm_to_vmem [thread:$0]  %s7, 64, %s81, [#allocation8]
    $region33: #{tpu_custom_call.1} parent=1 // pred_fallthru
      _
    // Predicated region
    $region34: #{tpu_custom_call.1} parent=1 // pred_check
      _
    $region35: #{tpu_custom_call.1} parent=1 // pred_check_branch
      %85 = sbr.rel (0) target = $region37
    $region36: #{tpu_custom_call.1} parent=1 // pred_region
      %s87 = ssub.s32 16, 16
      %88 = vsyncadd [#allocation11], %s87
      %s90 = sshll.u32 [#allocation10], 4
      %s91 = int_to_ptr.vmem [resolvable:$true] %s90
      %93 = dma.hbm_to_vmem [thread:$0]  %s8, 16, %s91, [#allocation11]
    $region37: #{tpu_custom_call.1} parent=1 // pred_fallthru
      _
    // Predicated region
    $region38: #{tpu_custom_call.1} parent=1 // pred_check
      _
    $region39: #{tpu_custom_call.1} parent=1 // pred_check_branch
      %95 = sbr.rel (0) target = $region41
    $region40: #{tpu_custom_call.1} parent=1 // pred_region
      _
    $region41: #{tpu_custom_call.1} parent=1 // pred_fallthru
      _
    // Predicated region
    $region42: #{tpu_custom_call.1} parent=1 // pred_check
      _
    $region43: #{tpu_custom_call.1} parent=1 // pred_check_branch
      %97 = sbr.rel (0) target = $region45
    $region44: #{tpu_custom_call.1} parent=1 // pred_region
      %s99 = ssub.s32 16, 16
      %100 = vsyncadd [#allocation11], %s99
      %s102 = sshll.u32 [#allocation12], 4
      %s103 = int_to_ptr.vmem [resolvable:$true] %s102
      %105 = dma.hbm_to_vmem [thread:$0]  %s10, 16, %s103, [#allocation11]
    $region45: #{tpu_custom_call.1} parent=1 // pred_fallthru
      _
    // Predicated region
    $region46: #{tpu_custom_call.1} parent=1 // pred_check
      _
    $region47: #{tpu_custom_call.1} parent=1 // pred_check_branch
      %107 = sbr.rel (0) target = $region49
    $region48: #{tpu_custom_call.1} parent=1 // pred_region
      _
    $region49: #{tpu_custom_call.1} parent=1 // pred_fallthru
      _
    // Predicated region
    $region50: #{tpu_custom_call.1} parent=1 // pred_check
      _
    $region51: #{tpu_custom_call.1} parent=1 // pred_check_branch
      %109 = sbr.rel (0) target = $region53
    $region52: #{tpu_custom_call.1} parent=1 // pred_region
      _
    $region53: #{tpu_custom_call.1} parent=1 // pred_fallthru
      _
    // Predicated region
    $region54: #{tpu_custom_call.1} parent=1 // pred_check
      _
    $region55: #{tpu_custom_call.1} parent=1 // pred_check_branch
      %111 = sbr.rel (0) target = $region57
    $region56: #{tpu_custom_call.1} parent=1 // pred_region
      _
    $region57: #{tpu_custom_call.1} parent=1 // pred_fallthru
      _
    // Predicated region
    $region58: #{tpu_custom_call.1} parent=1 // pred_check
      _
    $region59: #{tpu_custom_call.1} parent=1 // pred_check_branch
      %113 = sbr.rel (0) target = $region61
    $region60: #{tpu_custom_call.1} parent=1 // pred_region
      %s115 = ssub.s32 16, 16
      %116 = vsyncadd [#allocation14], %s115
      %s118 = sshll.u32 [#allocation13], 4
      %s119 = int_to_ptr.vmem [resolvable:$true] %s118
      %121 = dma.hbm_to_vmem [thread:$0]  %s14, 16, %s119, [#allocation14]
    $region61: #{tpu_custom_call.1} parent=1 // pred_fallthru
      _
    // Predicated region
    $region62: #{tpu_custom_call.1} parent=1 // pred_check
      _
    $region63: #{tpu_custom_call.1} parent=1 // pred_check_branch
      %123 = sbr.rel (0) target = $region65
    $region64: #{tpu_custom_call.1} parent=1 // pred_region
      %s125 = ssub.s32 16, 16
      %126 = vsyncadd [#allocation14], %s125
      %s128 = sshll.u32 [#allocation15], 4
      %s129 = int_to_ptr.vmem [resolvable:$true] %s128
      %131 = dma.hbm_to_vmem [thread:$0]  %s15, 16, %s129, [#allocation14]
    $region65: #{tpu_custom_call.1} parent=1 // pred_fallthru
      _
    // Predicated region
    $region66: #{tpu_custom_call.1} parent=1 // pred_check
      _
    $region67: #{tpu_custom_call.1} parent=1 // pred_check_branch
      %133 = sbr.rel (0) target = $region69
    $region68: #{tpu_custom_call.1} parent=1 // pred_region
      _
    $region69: #{tpu_custom_call.1} parent=1 // pred_fallthru
      _
    // Predicated region
    $region70: #{tpu_custom_call.1} parent=1 // pred_check
      _
    $region71: #{tpu_custom_call.1} parent=1 // pred_check_branch
      %135 = sbr.rel (0) target = $region73
    $region72: #{tpu_custom_call.1} parent=1 // pred_region
      _
    $region73: #{tpu_custom_call.1} parent=1 // pred_fallthru
      _
    // Predicated region
    $region74: #{tpu_custom_call.1} parent=1 // pred_check
      _
    $region75: #{tpu_custom_call.1} parent=1 // pred_check_branch
      %137 = sbr.rel (0) target = $region77
    $region76: #{tpu_custom_call.1} parent=1 // pred_region
      %138 = dma.done [#allocation3], 64
    $region77: #{tpu_custom_call.1} parent=1 // pred_fallthru
      _
    // Predicated region
    $region78: #{tpu_custom_call.1} parent=1 // pred_check
      _
    $region79: #{tpu_custom_call.1} parent=1 // pred_check_branch
      %140 = sbr.rel (0) target = $region81
    $region80: #{tpu_custom_call.1} parent=1 // pred_region
      %141 = dma.done [#allocation5], 16
    $region81: #{tpu_custom_call.1} parent=1 // pred_fallthru
      _
    // Predicated region
    $region82: #{tpu_custom_call.1} parent=1 // pred_check
      _
    $region83: #{tpu_custom_call.1} parent=1 // pred_check_branch
      %143 = sbr.rel (0) target = $region85
    $region84: #{tpu_custom_call.1} parent=1 // pred_region
      %144 = dma.done [#allocation5], 16
    $region85: #{tpu_custom_call.1} parent=1 // pred_fallthru
      _
    // Predicated region
    $region86: #{tpu_custom_call.1} parent=1 // pred_check
      _
    $region87: #{tpu_custom_call.1} parent=1 // pred_check_branch
      %146 = sbr.rel (0) target = $region89
    $region88: #{tpu_custom_call.1} parent=1 // pred_region
      %147 = dma.done [#allocation8], 16
    $region89: #{tpu_custom_call.1} parent=1 // pred_fallthru
      _
    // Predicated region
    $region90: #{tpu_custom_call.1} parent=1 // pred_check
      _
    $region91: #{tpu_custom_call.1} parent=1 // pred_check_branch
      %149 = sbr.rel (0) target = $region93
    $region92: #{tpu_custom_call.1} parent=1 // pred_region
      %150 = dma.done [#allocation8], 64
    $region93: #{tpu_custom_call.1} parent=1 // pred_fallthru
      _
    // Predicated region
    $region94: #{tpu_custom_call.1} parent=1 // pred_check
      _
    $region95: #{tpu_custom_call.1} parent=1 // pred_check_branch
      %152 = sbr.rel (0) target = $region97
    $region96: #{tpu_custom_call.1} parent=1 // pred_region
      %153 = dma.done [#allocation11], 16
    $region97: #{tpu_custom_call.1} parent=1 // pred_fallthru
      _
    // Predicated region
    $region98: #{tpu_custom_call.1} parent=1 // pred_check
      _
    $region99: #{tpu_custom_call.1} parent=1 // pred_check_branch
      %155 = sbr.rel (0) target = $region101
    $region100: #{tpu_custom_call.1} parent=1 // pred_region
      %156 = dma.done [#allocation11], 16
    $region101: #{tpu_custom_call.1} parent=1 // pred_fallthru
      _
    // Predicated region
    $region102: #{tpu_custom_call.1} parent=1 // pred_check
      _
    $region103: #{tpu_custom_call.1} parent=1 // pred_check_branch
      %158 = sbr.rel (0) target = $region105
    $region104: #{tpu_custom_call.1} parent=1 // pred_region
      %159 = dma.done [#allocation14], 16
    $region105: #{tpu_custom_call.1} parent=1 // pred_fallthru
      _
    // Predicated region
    $region106: #{tpu_custom_call.1} parent=1 // pred_check
      _
    $region107: #{tpu_custom_call.1} parent=1 // pred_check_branch
      %161 = sbr.rel (0) target = $region109
    $region108: #{tpu_custom_call.1} parent=1 // pred_region
      %162 = dma.done [#allocation14], 16
    $region109: #{tpu_custom_call.1} parent=1 // pred_fallthru
      _
    %v163 = vld [vmem:[%s0] sm:$0xff]
    %v164 = vld [vmem:[%s0 + $0x8] sm:$0xff]
    %v165 = vld [vmem:[%s0 + $0x10] sm:$0xff]
    %v166 = vld [vmem:[%s0 + $0x18] sm:$0xff]
    %v167 = vld [vmem:[%s0 + $0x20] sm:$0xff]
    %v168 = vld [vmem:[%s0 + $0x28] sm:$0xff]
    %v169 = vld [vmem:[%s0 + $0x30] sm:$0xff]
    %v170 = vld [vmem:[%s0 + $0x38] sm:$0xff]
    %v171 = vld [vmem:[#allocation2] sm:$0xf]
    %v172 = vld [vmem:[%s2] sm:$0xff]
    %v173 = vld [vmem:[%s2 + $0x8] sm:$0xff]
    %v174 = vld [vmem:[%s2 + $0x10] sm:$0xff]
    %v175 = vld [vmem:[%s2 + $0x18] sm:$0xff]
    %v176 = vld [vmem:[#allocation4] sm:$0x1]
    %v177 = vld [vmem:[#allocation6] sm:$0x1]
    %v178 = vld [vmem:[%s5] sm:$0xff]
    %v179 = vld [vmem:[%s5 + $0x8] sm:$0xff]
    %v180 = vld [vmem:[%s5 + $0x10] sm:$0xff]
    %v181 = vld [vmem:[%s5 + $0x18] sm:$0xff]
    %v182 = vld [vmem:[#allocation7] sm:$0x1]
    %v183 = vld [vmem:[#allocation9] sm:$0xf]
    %v184 = vld [vmem:[#allocation10] sm:$0x1]
    %v185 = vld [vmem:[%s9] sm:$0xff]
    %v186 = vld [vmem:[%s9 + $0x8] sm:$0xff]
    %v187 = vld [vmem:[%s9 + $0x10] sm:$0xff]
    %v188 = vld [vmem:[%s9 + $0x18] sm:$0xff]
    %v189 = vld [vmem:[#allocation12] sm:$0x1]
    %v190 = vld [vmem:[%s11] sm:$0xff]
    %v191 = vld [vmem:[%s11 + $0x8] sm:$0xff]
    %v192 = vld [vmem:[%s11 + $0x10] sm:$0xff]
    %v193 = vld [vmem:[%s11 + $0x18] sm:$0xff]
    %v194 = vld [vmem:[%s12] sm:$0xff]
    %v195 = vld [vmem:[%s12 + $0x8] sm:$0xff]
    %v196 = vld [vmem:[%s12 + $0x10] sm:$0xff]
    %v197 = vld [vmem:[%s12 + $0x18] sm:$0xff]
    %v198 = vld [vmem:[%s13] sm:$0xff]
    %v199 = vld [vmem:[%s13 + $0x8] sm:$0xff]
    %v200 = vld [vmem:[%s13 + $0x10] sm:$0xff]
    %v201 = vld [vmem:[%s13 + $0x18] sm:$0xff]
    %v202 = vld [vmem:[#allocation13] sm:$0x1]
    %v203 = vld [vmem:[#allocation15] sm:$0x1]
    %v204 = vld [vmem:[%s16] sm:$0xff]
    %v205 = vld [vmem:[%s16 + $0x8] sm:$0xff]
    %v206 = vld [vmem:[%s16 + $0x10] sm:$0xff]
    %v207 = vld [vmem:[%s16 + $0x18] sm:$0xff]
    %v208 = vld [vmem:[%s17] sm:$0x1]
    %v210 = vlaneseq
    %v211 = vshrl.u32 %v210, 7
    %v212 = vsub.s32 0, %v211
    %v213 = vrot.slane %v176, %v212
    %vm215 = vcmask 31744
    %v217 = vsel %vm215, %v163, 0
    %v220 = vsel %vm215, %v164, 0
    %v223 = vsel %vm215, %v165, 0
    %v226 = vsel %vm215, %v166, 0
    %v229 = vsel %vm215, %v167, 0
    %v232 = vsel %vm215, %v168, 0
    %v235 = vsel %vm215, %v169, 0
    %v238 = vsel %vm215, %v170, 0
    %vm240 = vcmask 1043456
    %v242 = vsel %vm240, %v171, 0
    %244 = vmatprep.subr.mxu0 0.0
    %245 = vmatpush1.msra.mxu0 0.0
    %246 = vmatprep.subr.mxu0 0.0
    %247 = vmatpush1.msra.mxu0 0.0
    %248 = vmatprep.subr.mxu0 0.0
    %249 = vmatpush1.msra.mxu0 0.0
    %250 = vmatprep.subr.mxu0 0.0
    %251 = vmatpush1.msra.mxu0 0.0
    %252 = vmatprep.subr.mxu0 0.0
    %253 = vmatpush1.msra.mxu0 0.0
    %254 = vmatprep.subr.mxu0 0.0
    %255 = vmatpush1.msra.mxu0 0.0
    %256 = vmatprep.subr.mxu0 0.0
    %257 = vmatpush1.msra.mxu0 0.0
    %258 = vmatprep.subr.mxu0 0.0
    %259 = vmatpush1.msra.mxu0 0.0
    %260 = vmatprep.subr.mxu0 0.0
    %261 = vmatpush1.msra.mxu0 0.0
    %262 = vmatprep.subr.mxu0 0.0
    %263 = vmatpush1.msra.mxu0 0.0
    %264 = vmatprep.subr.mxu0 0.0
    %265 = vmatpush1.msra.mxu0 0.0
    %266 = vmatprep.subr.mxu0 0.0
    %267 = vmatpush1.msra.mxu0 0.0
    %268 = vmatprep.subr.mxu0 0.0
    %269 = vmatpush1.msra.mxu0 0.0
    %270 = vmatprep.subr.mxu0 0.0
    %271 = vmatpush1.msra.mxu0 0.0
    %272 = vmatprep.subr.mxu0 0.0
    %273 = vmatpush1.msra.mxu0 0.0
    %274 = vmatprep.subr.mxu0 0.0
    %275 = vmatpush1.msra.mxu0 %v242
    %276 = vmatprep.subr.mxu0 0.0
    %277 = vmatpush2.msra.mxu0 0.0
    %278 = vmatprep.subr.mxu0 0.0
    %279 = vmatpush2.msra.mxu0 0.0
    %280 = vmatprep.subr.mxu0 0.0
    %281 = vmatpush2.msra.mxu0 0.0
    %282 = vmatprep.subr.mxu0 0.0
    %283 = vmatpush2.msra.mxu0 0.0
    %284 = vmatprep.subr.mxu0 0.0
    %285 = vmatpush2.msra.mxu0 0.0
    %286 = vmatprep.subr.mxu0 0.0
    %287 = vmatpush2.msra.mxu0 0.0
    %288 = vmatprep.subr.mxu0 0.0
    %289 = vmatpush2.msra.mxu0 0.0
    %290 = vmatprep.subr.mxu0 0.0
    %291 = vmatpush2.msra.mxu0 0.0
    %292 = vmatprep.subr.mxu0 0.0
    %293 = vmatpush2.msra.mxu0 0.0
    %294 = vmatprep.subr.mxu0 0.0
    %295 = vmatpush2.msra.mxu0 0.0
    %296 = vmatprep.subr.mxu0 0.0
    %297 = vmatpush2.msra.mxu0 0.0
    %298 = vmatprep.subr.mxu0 0.0
    %299 = vmatpush2.msra.mxu0 0.0
    %300 = vmatprep.subr.mxu0 0.0
    %301 = vmatpush2.msra.mxu0 0.0
    %302 = vmatprep.subr.mxu0 0.0
    %303 = vmatpush2.msra.mxu0 0.0
    %304 = vmatprep.subr.mxu0 0.0
    %305 = vmatpush2.msra.mxu0 0.0
    %306 = vmatprep.subr.mxu0 0.0
    %307 = vmatpush2.msra.mxu0 0.0
    %308 = vmatprep.mubr.f32.mxu0 0.0
    %309 = vmatmul.mubr.f32.gmra.mxu0 %v217
    %v310 = vpop.f32.mrf.mxu0
    %v311 = vadd.f32 %v213, %v310
    %v312 = vpop.f32.mrf.mxu0
    %313 = vmatprep.mubr.f32.mxu0 0.0
    %314 = vmatmul.mubr.f32.gmra.mxu0 %v220
    %v315 = vpop.f32.mrf.mxu0
    %v316 = vadd.f32 %v213, %v315
    %v317 = vpop.f32.mrf.mxu0
    %318 = vmatprep.mubr.f32.mxu0 0.0
    %319 = vmatmul.mubr.f32.gmra.mxu0 %v223
    %v320 = vpop.f32.mrf.mxu0
    %v321 = vadd.f32 %v213, %v320
    %v322 = vpop.f32.mrf.mxu0
    %323 = vmatprep.mubr.f32.mxu0 0.0
    %324 = vmatmul.mubr.f32.gmra.mxu0 %v226
    %v325 = vpop.f32.mrf.mxu0
    %v326 = vadd.f32 %v213, %v325
    %v327 = vpop.f32.mrf.mxu0
    %328 = vmatprep.mubr.f32.mxu0 0.0
    %329 = vmatmul.mubr.f32.gmra.mxu0 %v229
    %v330 = vpop.f32.mrf.mxu0
    %v331 = vadd.f32 %v213, %v330
    %v332 = vpop.f32.mrf.mxu0
    %333 = vmatprep.mubr.f32.mxu0 0.0
    %334 = vmatmul.mubr.f32.gmra.mxu0 %v232
    %v335 = vpop.f32.mrf.mxu0
    %v336 = vadd.f32 %v213, %v335
    %v337 = vpop.f32.mrf.mxu0
    %338 = vmatprep.mubr.f32.mxu0 0.0
    %339 = vmatmul.mubr.f32.gmra.mxu0 %v235
    %v340 = vpop.f32.mrf.mxu0
    %v341 = vadd.f32 %v213, %v340
    %v342 = vpop.f32.mrf.mxu0
    %343 = vmatprep.mubr.f32.mxu0 0.0
    %344 = vmatmul.mubr.f32.gmra.mxu0 %v238
    %v345 = vpop.f32.mrf.mxu0
    %v346 = vadd.f32 %v213, %v345
    %v347 = vpop.f32.mrf.mxu0
    %348 = vdwg.mxu0
    %v350 = vlaneseq
    %v351 = vshrl.u32 %v350, 7
    %v352 = vsub.s32 0, %v351
    %v353 = vrot.slane %v177, %v352
    %vm355 = vcmask 261120
    %v357 = vsel %vm355, 0.0, 0
    %359 = vmatprep.subr.mxu0 0.0
    %360 = vmatpush1.msra.mxu0 0.0
    %361 = vmatprep.subr.mxu0 0.0
    %362 = vmatpush1.msra.mxu0 0.0
    %363 = vmatprep.subr.mxu0 0.0
    %364 = vmatpush1.msra.mxu0 0.0
    %365 = vmatprep.subr.mxu0 0.0
    %366 = vmatpush1.msra.mxu0 0.0
    %367 = vmatprep.subr.mxu0 0.0
    %368 = vmatpush1.msra.mxu0 0.0
    %369 = vmatprep.subr.mxu0 0.0
    %370 = vmatpush1.msra.mxu0 0.0
    %371 = vmatprep.subr.mxu0 0.0
    %372 = vmatpush1.msra.mxu0 0.0
    %373 = vmatprep.subr.mxu0 0.0
    %374 = vmatpush1.msra.mxu0 0.0
    %375 = vmatprep.subr.mxu0 0.0
    %376 = vmatpush1.msra.mxu0 0.0
    %377 = vmatprep.subr.mxu0 0.0
    %378 = vmatpush1.msra.mxu0 0.0
    %379 = vmatprep.subr.mxu0 0.0
    %380 = vmatpush1.msra.mxu0 0.0
    %381 = vmatprep.subr.mxu0 0.0
    %382 = vmatpush1.msra.mxu0 0.0
    %383 = vmatprep.subr.mxu0 0.0
    %384 = vmatpush1.msra.mxu0 %v175
    %385 = vmatprep.subr.mxu0 0.0
    %386 = vmatpush1.msra.mxu0 %v174
    %387 = vmatprep.subr.mxu0 0.0
    %388 = vmatpush1.msra.mxu0 %v173
    %389 = vmatprep.subr.mxu0 0.0
    %390 = vmatpush1.msra.mxu0 %v172
    %391 = vmatprep.subr.mxu0 0.0
    %392 = vmatpush2.msra.mxu0 0.0
    %393 = vmatprep.subr.mxu0 0.0
    %394 = vmatpush2.msra.mxu0 0.0
    %395 = vmatprep.subr.mxu0 0.0
    %396 = vmatpush2.msra.mxu0 0.0
    %397 = vmatprep.subr.mxu0 0.0
    %398 = vmatpush2.msra.mxu0 0.0
    %399 = vmatprep.subr.mxu0 0.0
    %400 = vmatpush2.msra.mxu0 0.0
    %401 = vmatprep.subr.mxu0 0.0
    %402 = vmatpush2.msra.mxu0 0.0
    %403 = vmatprep.subr.mxu0 0.0
    %404 = vmatpush2.msra.mxu0 0.0
    %405 = vmatprep.subr.mxu0 0.0
    %406 = vmatpush2.msra.mxu0 0.0
    %407 = vmatprep.subr.mxu0 0.0
    %408 = vmatpush2.msra.mxu0 0.0
    %409 = vmatprep.subr.mxu0 0.0
    %410 = vmatpush2.msra.mxu0 0.0
    %411 = vmatprep.subr.mxu0 0.0
    %412 = vmatpush2.msra.mxu0 0.0
    %413 = vmatprep.subr.mxu0 0.0
    %414 = vmatpush2.msra.mxu0 0.0
    %415 = vmatprep.subr.mxu0 0.0
    %416 = vmatpush2.msra.mxu0 0.0
    %417 = vmatprep.subr.mxu0 0.0
    %418 = vmatpush2.msra.mxu0 0.0
    %419 = vmatprep.subr.mxu0 0.0
    %420 = vmatpush2.msra.mxu0 0.0
    %421 = vmatprep.subr.mxu0 0.0
    %422 = vmatpush2.msra.mxu0 0.0
    %423 = vmatprep.mubr.f32.mxu0 0.0
    %424 = vmatmul.mubr.f32.gmra.mxu0 %v357
    %v425 = vpop.f32.mrf.mxu0
    %v426 = vadd.f32 %v353, %v425
    %v427 = vpop.f32.mrf.mxu0
    %428 = vdwg.mxu0
    %v429 = vadd.f32 %v311, %v426
    %v430 = vmul.f32 %v429, 0.5
    %v431 = vtanh.pop %v430
    %v432 = vadd.f32 %v431, 1.0
    %v433 = vmul.f32 %v432, 0.5
    %435 = vrot.lane.b32.xlu0 %v426, 64
    %v436 = vpop.permute.xlu0 %435
    %v438 = vmul.f32 %v433, %v436
    %440 = vrot.lane.b32.xlu0 %v438, 64
    %v441 = vpop.permute.xlu0 %440
    %v443 = vadd.f32 %v311, %v441
    %v444 = vtanh.pop %v443
    %v445 = vsub.f32 1.0, %v433
    %447 = vrot.lane.b32.xlu0 %v444, 96
    %v448 = vpop.permute.xlu0 %447
    %v450 = vmul.f32 %v445, %v448
    %v451 = vmul.f32 %v433, 0.0
    %v452 = vadd.f32 %v450, %v451
    %454 = vrot.lane.b32.xlu0 %v452, 96
    %v455 = vpop.permute.xlu0 %454
    %v456 = vsel %vm355, %v455, 0
    %458 = vmatprep.subr.mxu0 0.0
    %459 = vmatpush1.msra.mxu0 0.0
    %460 = vmatprep.subr.mxu0 0.0
    %461 = vmatpush1.msra.mxu0 0.0
    %462 = vmatprep.subr.mxu0 0.0
    %463 = vmatpush1.msra.mxu0 0.0
    %464 = vmatprep.subr.mxu0 0.0
    %465 = vmatpush1.msra.mxu0 0.0
    %466 = vmatprep.subr.mxu0 0.0
    %467 = vmatpush1.msra.mxu0 0.0
    %468 = vmatprep.subr.mxu0 0.0
    %469 = vmatpush1.msra.mxu0 0.0
    %470 = vmatprep.subr.mxu0 0.0
    %471 = vmatpush1.msra.mxu0 0.0
    %472 = vmatprep.subr.mxu0 0.0
    %473 = vmatpush1.msra.mxu0 0.0
    %474 = vmatprep.subr.mxu0 0.0
    %475 = vmatpush1.msra.mxu0 0.0
    %476 = vmatprep.subr.mxu0 0.0
    %477 = vmatpush1.msra.mxu0 0.0
    %478 = vmatprep.subr.mxu0 0.0
    %479 = vmatpush1.msra.mxu0 0.0
    %480 = vmatprep.subr.mxu0 0.0
    %481 = vmatpush1.msra.mxu0 0.0
    %482 = vmatprep.subr.mxu0 0.0
    %483 = vmatpush1.msra.mxu0 %v175
    %484 = vmatprep.subr.mxu0 0.0
    %485 = vmatpush1.msra.mxu0 %v174
    %486 = vmatprep.subr.mxu0 0.0
    %487 = vmatpush1.msra.mxu0 %v173
    %488 = vmatprep.subr.mxu0 0.0
    %489 = vmatpush1.msra.mxu0 %v172
    %490 = vmatprep.subr.mxu0 0.0
    %491 = vmatpush2.msra.mxu0 0.0
    %492 = vmatprep.subr.mxu0 0.0
    %493 = vmatpush2.msra.mxu0 0.0
    %494 = vmatprep.subr.mxu0 0.0
    %495 = vmatpush2.msra.mxu0 0.0
    %496 = vmatprep.subr.mxu0 0.0
    %497 = vmatpush2.msra.mxu0 0.0
    %498 = vmatprep.subr.mxu0 0.0
    %499 = vmatpush2.msra.mxu0 0.0
    %500 = vmatprep.subr.mxu0 0.0
    %501 = vmatpush2.msra.mxu0 0.0
    %502 = vmatprep.subr.mxu0 0.0
    %503 = vmatpush2.msra.mxu0 0.0
    %504 = vmatprep.subr.mxu0 0.0
    %505 = vmatpush2.msra.mxu0 0.0
    %506 = vmatprep.subr.mxu0 0.0
    %507 = vmatpush2.msra.mxu0 0.0
    %508 = vmatprep.subr.mxu0 0.0
    %509 = vmatpush2.msra.mxu0 0.0
    %510 = vmatprep.subr.mxu0 0.0
    %511 = vmatpush2.msra.mxu0 0.0
    %512 = vmatprep.subr.mxu0 0.0
    %513 = vmatpush2.msra.mxu0 0.0
    %514 = vmatprep.subr.mxu0 0.0
    %515 = vmatpush2.msra.mxu0 0.0
    %516 = vmatprep.subr.mxu0 0.0
    %517 = vmatpush2.msra.mxu0 0.0
    %518 = vmatprep.subr.mxu0 0.0
    %519 = vmatpush2.msra.mxu0 0.0
    %520 = vmatprep.subr.mxu0 0.0
    %521 = vmatpush2.msra.mxu0 0.0
    %522 = vmatprep.mubr.f32.mxu0 0.0
    %523 = vmatmul.mubr.f32.gmra.mxu0 %v456
    %v524 = vpop.f32.mrf.mxu0
    %v525 = vadd.f32 %v353, %v524
    %v526 = vpop.f32.mrf.mxu0
    %527 = vdwg.mxu0
    %v528 = vadd.f32 %v316, %v525
    %v529 = vmul.f32 %v528, 0.5
    %v530 = vtanh.pop %v529
    %v531 = vadd.f32 %v530, 1.0
    %v532 = vmul.f32 %v531, 0.5
    %534 = vrot.lane.b32.xlu0 %v525, 64
    %v535 = vpop.permute.xlu0 %534
    %v537 = vmul.f32 %v532, %v535
    %539 = vrot.lane.b32.xlu0 %v537, 64
    %v540 = vpop.permute.xlu0 %539
    %v542 = vadd.f32 %v316, %v540
    %v543 = vtanh.pop %v542
    %v544 = vsub.f32 1.0, %v532
    %546 = vrot.lane.b32.xlu0 %v543, 96
    %v547 = vpop.permute.xlu0 %546
    %v549 = vmul.f32 %v544, %v547
    %v550 = vmul.f32 %v532, %v452
    %v551 = vadd.f32 %v549, %v550
    %553 = vrot.lane.b32.xlu0 %v551, 96
    %v554 = vpop.permute.xlu0 %553
    %v555 = vsel %vm355, %v554, 0
    %557 = vmatprep.subr.mxu0 0.0
    %558 = vmatpush1.msra.mxu0 0.0
    %559 = vmatprep.subr.mxu0 0.0
    %560 = vmatpush1.msra.mxu0 0.0
    %561 = vmatprep.subr.mxu0 0.0
    %562 = vmatpush1.msra.mxu0 0.0
    %563 = vmatprep.subr.mxu0 0.0
    %564 = vmatpush1.msra.mxu0 0.0
    %565 = vmatprep.subr.mxu0 0.0
    %566 = vmatpush1.msra.mxu0 0.0
    %567 = vmatprep.subr.mxu0 0.0
    %568 = vmatpush1.msra.mxu0 0.0
    %569 = vmatprep.subr.mxu0 0.0
    %570 = vmatpush1.msra.mxu0 0.0
    %571 = vmatprep.subr.mxu0 0.0
    %572 = vmatpush1.msra.mxu0 0.0
    %573 = vmatprep.subr.mxu0 0.0
    %574 = vmatpush1.msra.mxu0 0.0
    %575 = vmatprep.subr.mxu0 0.0
    %576 = vmatpush1.msra.mxu0 0.0
    %577 = vmatprep.subr.mxu0 0.0
    %578 = vmatpush1.msra.mxu0 0.0
    %579 = vmatprep.subr.mxu0 0.0
    %580 = vmatpush1.msra.mxu0 0.0
    %581 = vmatprep.subr.mxu0 0.0
    %582 = vmatpush1.msra.mxu0 %v175
    %583 = vmatprep.subr.mxu0 0.0
    %584 = vmatpush1.msra.mxu0 %v174
    %585 = vmatprep.subr.mxu0 0.0
    %586 = vmatpush1.msra.mxu0 %v173
    %587 = vmatprep.subr.mxu0 0.0
    %588 = vmatpush1.msra.mxu0 %v172
    %589 = vmatprep.subr.mxu0 0.0
    %590 = vmatpush2.msra.mxu0 0.0
    %591 = vmatprep.subr.mxu0 0.0
    %592 = vmatpush2.msra.mxu0 0.0
    %593 = vmatprep.subr.mxu0 0.0
    %594 = vmatpush2.msra.mxu0 0.0
    %595 = vmatprep.subr.mxu0 0.0
    %596 = vmatpush2.msra.mxu0 0.0
    %597 = vmatprep.subr.mxu0 0.0
    %598 = vmatpush2.msra.mxu0 0.0
    %599 = vmatprep.subr.mxu0 0.0
    %600 = vmatpush2.msra.mxu0 0.0
    %601 = vmatprep.subr.mxu0 0.0
    %602 = vmatpush2.msra.mxu0 0.0
    %603 = vmatprep.subr.mxu0 0.0
    %604 = vmatpush2.msra.mxu0 0.0
    %605 = vmatprep.subr.mxu0 0.0
    %606 = vmatpush2.msra.mxu0 0.0
    %607 = vmatprep.subr.mxu0 0.0
    %608 = vmatpush2.msra.mxu0 0.0
    %609 = vmatprep.subr.mxu0 0.0
    %610 = vmatpush2.msra.mxu0 0.0
    %611 = vmatprep.subr.mxu0 0.0
    %612 = vmatpush2.msra.mxu0 0.0
    %613 = vmatprep.subr.mxu0 0.0
    %614 = vmatpush2.msra.mxu0 0.0
    %615 = vmatprep.subr.mxu0 0.0
    %616 = vmatpush2.msra.mxu0 0.0
    %617 = vmatprep.subr.mxu0 0.0
    %618 = vmatpush2.msra.mxu0 0.0
    %619 = vmatprep.subr.mxu0 0.0
    %620 = vmatpush2.msra.mxu0 0.0
    %621 = vmatprep.mubr.f32.mxu0 0.0
    %622 = vmatmul.mubr.f32.gmra.mxu0 %v555
    %v623 = vpop.f32.mrf.mxu0
    %v624 = vadd.f32 %v353, %v623
    %v625 = vpop.f32.mrf.mxu0
    %626 = vdwg.mxu0
    %v627 = vadd.f32 %v321, %v624
    %v628 = vmul.f32 %v627, 0.5
    %v629 = vtanh.pop %v628
    %v630 = vadd.f32 %v629, 1.0
    %v631 = vmul.f32 %v630, 0.5
    %633 = vrot.lane.b32.xlu0 %v624, 64
    %v634 = vpop.permute.xlu0 %633
    %v636 = vmul.f32 %v631, %v634
    %638 = vrot.lane.b32.xlu0 %v636, 64
    %v639 = vpop.permute.xlu0 %638
    %v641 = vadd.f32 %v321, %v639
    %v642 = vtanh.pop %v641
    %v643 = vsub.f32 1.0, %v631
    %645 = vrot.lane.b32.xlu0 %v642, 96
    %v646 = vpop.permute.xlu0 %645
    %v648 = vmul.f32 %v643, %v646
    %v649 = vmul.f32 %v631, %v551
    %v650 = vadd.f32 %v648, %v649
    %652 = vrot.lane.b32.xlu0 %v650, 96
    %v653 = vpop.permute.xlu0 %652
    %v654 = vsel %vm355, %v653, 0
    %656 = vmatprep.subr.mxu0 0.0
    %657 = vmatpush1.msra.mxu0 0.0
    %658 = vmatprep.subr.mxu0 0.0
    %659 = vmatpush1.msra.mxu0 0.0
    %660 = vmatprep.subr.mxu0 0.0
    %661 = vmatpush1.msra.mxu0 0.0
    %662 = vmatprep.subr.mxu0 0.0
    %663 = vmatpush1.msra.mxu0 0.0
    %664 = vmatprep.subr.mxu0 0.0
    %665 = vmatpush1.msra.mxu0 0.0
    %666 = vmatprep.subr.mxu0 0.0
    %667 = vmatpush1.msra.mxu0 0.0
    %668 = vmatprep.subr.mxu0 0.0
    %669 = vmatpush1.msra.mxu0 0.0
    %670 = vmatprep.subr.mxu0 0.0
    %671 = vmatpush1.msra.mxu0 0.0
    %672 = vmatprep.subr.mxu0 0.0
    %673 = vmatpush1.msra.mxu0 0.0
    %674 = vmatprep.subr.mxu0 0.0
    %675 = vmatpush1.msra.mxu0 0.0
    %676 = vmatprep.subr.mxu0 0.0
    %677 = vmatpush1.msra.mxu0 0.0
    %678 = vmatprep.subr.mxu0 0.0
    %679 = vmatpush1.msra.mxu0 0.0
    %680 = vmatprep.subr.mxu0 0.0
    %681 = vmatpush1.msra.mxu0 %v175
    %682 = vmatprep.subr.mxu0 0.0
    %683 = vmatpush1.msra.mxu0 %v174
    %684 = vmatprep.subr.mxu0 0.0
    %685 = vmatpush1.msra.mxu0 %v173
    %686 = vmatprep.subr.mxu0 0.0
    %687 = vmatpush1.msra.mxu0 %v172
    %688 = vmatprep.subr.mxu0 0.0
    %689 = vmatpush2.msra.mxu0 0.0
    %690 = vmatprep.subr.mxu0 0.0
    %691 = vmatpush2.msra.mxu0 0.0
    %692 = vmatprep.subr.mxu0 0.0
    %693 = vmatpush2.msra.mxu0 0.0
    %694 = vmatprep.subr.mxu0 0.0
    %695 = vmatpush2.msra.mxu0 0.0
    %696 = vmatprep.subr.mxu0 0.0
    %697 = vmatpush2.msra.mxu0 0.0
    %698 = vmatprep.subr.mxu0 0.0
    %699 = vmatpush2.msra.mxu0 0.0
    %700 = vmatprep.subr.mxu0 0.0
    %701 = vmatpush2.msra.mxu0 0.0
    %702 = vmatprep.subr.mxu0 0.0
    %703 = vmatpush2.msra.mxu0 0.0
    %704 = vmatprep.subr.mxu0 0.0
    %705 = vmatpush2.msra.mxu0 0.0
    %706 = vmatprep.subr.mxu0 0.0
    %707 = vmatpush2.msra.mxu0 0.0
    %708 = vmatprep.subr.mxu0 0.0
    %709 = vmatpush2.msra.mxu0 0.0
    %710 = vmatprep.subr.mxu0 0.0
    %711 = vmatpush2.msra.mxu0 0.0
    %712 = vmatprep.subr.mxu0 0.0
    %713 = vmatpush2.msra.mxu0 0.0
    %714 = vmatprep.subr.mxu0 0.0
    %715 = vmatpush2.msra.mxu0 0.0
    %716 = vmatprep.subr.mxu0 0.0
    %717 = vmatpush2.msra.mxu0 0.0
    %718 = vmatprep.subr.mxu0 0.0
    %719 = vmatpush2.msra.mxu0 0.0
    %720 = vmatprep.mubr.f32.mxu0 0.0
    %721 = vmatmul.mubr.f32.gmra.mxu0 %v654
    %v722 = vpop.f32.mrf.mxu0
    %v723 = vadd.f32 %v353, %v722
    %v724 = vpop.f32.mrf.mxu0
    %725 = vdwg.mxu0
    %v726 = vadd.f32 %v326, %v723
    %v727 = vmul.f32 %v726, 0.5
    %v728 = vtanh.pop %v727
    %v729 = vadd.f32 %v728, 1.0
    %v730 = vmul.f32 %v729, 0.5
    %732 = vrot.lane.b32.xlu0 %v723, 64
    %v733 = vpop.permute.xlu0 %732
    %v735 = vmul.f32 %v730, %v733
    %737 = vrot.lane.b32.xlu0 %v735, 64
    %v738 = vpop.permute.xlu0 %737
    %v740 = vadd.f32 %v326, %v738
    %v741 = vtanh.pop %v740
    %v742 = vsub.f32 1.0, %v730
    %744 = vrot.lane.b32.xlu0 %v741, 96
    %v745 = vpop.permute.xlu0 %744
    %v747 = vmul.f32 %v742, %v745
    %v748 = vmul.f32 %v730, %v650
    %v749 = vadd.f32 %v747, %v748
    %751 = vrot.lane.b32.xlu0 %v749, 96
    %v752 = vpop.permute.xlu0 %751
    %v753 = vsel %vm355, %v752, 0
    %755 = vmatprep.subr.mxu0 0.0
    %756 = vmatpush1.msra.mxu0 0.0
    %757 = vmatprep.subr.mxu0 0.0
    %758 = vmatpush1.msra.mxu0 0.0
    %759 = vmatprep.subr.mxu0 0.0
    %760 = vmatpush1.msra.mxu0 0.0
    %761 = vmatprep.subr.mxu0 0.0
    %762 = vmatpush1.msra.mxu0 0.0
    %763 = vmatprep.subr.mxu0 0.0
    %764 = vmatpush1.msra.mxu0 0.0
    %765 = vmatprep.subr.mxu0 0.0
    %766 = vmatpush1.msra.mxu0 0.0
    %767 = vmatprep.subr.mxu0 0.0
    %768 = vmatpush1.msra.mxu0 0.0
    %769 = vmatprep.subr.mxu0 0.0
    %770 = vmatpush1.msra.mxu0 0.0
    %771 = vmatprep.subr.mxu0 0.0
    %772 = vmatpush1.msra.mxu0 0.0
    %773 = vmatprep.subr.mxu0 0.0
    %774 = vmatpush1.msra.mxu0 0.0
    %775 = vmatprep.subr.mxu0 0.0
    %776 = vmatpush1.msra.mxu0 0.0
    %777 = vmatprep.subr.mxu0 0.0
    %778 = vmatpush1.msra.mxu0 0.0
    %779 = vmatprep.subr.mxu0 0.0
    %780 = vmatpush1.msra.mxu0 %v175
    %781 = vmatprep.subr.mxu0 0.0
    %782 = vmatpush1.msra.mxu0 %v174
    %783 = vmatprep.subr.mxu0 0.0
    %784 = vmatpush1.msra.mxu0 %v173
    %785 = vmatprep.subr.mxu0 0.0
    %786 = vmatpush1.msra.mxu0 %v172
    %787 = vmatprep.subr.mxu0 0.0
    %788 = vmatpush2.msra.mxu0 0.0
    %789 = vmatprep.subr.mxu0 0.0
    %790 = vmatpush2.msra.mxu0 0.0
    %791 = vmatprep.subr.mxu0 0.0
    %792 = vmatpush2.msra.mxu0 0.0
    %793 = vmatprep.subr.mxu0 0.0
    %794 = vmatpush2.msra.mxu0 0.0
    %795 = vmatprep.subr.mxu0 0.0
    %796 = vmatpush2.msra.mxu0 0.0
    %797 = vmatprep.subr.mxu0 0.0
    %798 = vmatpush2.msra.mxu0 0.0
    %799 = vmatprep.subr.mxu0 0.0
    %800 = vmatpush2.msra.mxu0 0.0
    %801 = vmatprep.subr.mxu0 0.0
    %802 = vmatpush2.msra.mxu0 0.0
    %803 = vmatprep.subr.mxu0 0.0
    %804 = vmatpush2.msra.mxu0 0.0
    %805 = vmatprep.subr.mxu0 0.0
    %806 = vmatpush2.msra.mxu0 0.0
    %807 = vmatprep.subr.mxu0 0.0
    %808 = vmatpush2.msra.mxu0 0.0
    %809 = vmatprep.subr.mxu0 0.0
    %810 = vmatpush2.msra.mxu0 0.0
    %811 = vmatprep.subr.mxu0 0.0
    %812 = vmatpush2.msra.mxu0 0.0
    %813 = vmatprep.subr.mxu0 0.0
    %814 = vmatpush2.msra.mxu0 0.0
    %815 = vmatprep.subr.mxu0 0.0
    %816 = vmatpush2.msra.mxu0 0.0
    %817 = vmatprep.subr.mxu0 0.0
    %818 = vmatpush2.msra.mxu0 0.0
    %819 = vmatprep.mubr.f32.mxu0 0.0
    %820 = vmatmul.mubr.f32.gmra.mxu0 %v753
    %v821 = vpop.f32.mrf.mxu0
    %v822 = vadd.f32 %v353, %v821
    %v823 = vpop.f32.mrf.mxu0
    %824 = vdwg.mxu0
    %v825 = vadd.f32 %v331, %v822
    %v826 = vmul.f32 %v825, 0.5
    %v827 = vtanh.pop %v826
    %v828 = vadd.f32 %v827, 1.0
    %v829 = vmul.f32 %v828, 0.5
    %831 = vrot.lane.b32.xlu0 %v822, 64
    %v832 = vpop.permute.xlu0 %831
    %v834 = vmul.f32 %v829, %v832
    %836 = vrot.lane.b32.xlu0 %v834, 64
    %v837 = vpop.permute.xlu0 %836
    %v839 = vadd.f32 %v331, %v837
    %v840 = vtanh.pop %v839
    %v841 = vsub.f32 1.0, %v829
    %843 = vrot.lane.b32.xlu0 %v840, 96
    %v844 = vpop.permute.xlu0 %843
    %v846 = vmul.f32 %v841, %v844
    %v847 = vmul.f32 %v829, %v749
    %v848 = vadd.f32 %v846, %v847
    %850 = vrot.lane.b32.xlu0 %v848, 96
    %v851 = vpop.permute.xlu0 %850
    %v852 = vsel %vm355, %v851, 0
    %854 = vmatprep.subr.mxu0 0.0
    %855 = vmatpush1.msra.mxu0 0.0
    %856 = vmatprep.subr.mxu0 0.0
    %857 = vmatpush1.msra.mxu0 0.0
    %858 = vmatprep.subr.mxu0 0.0
    %859 = vmatpush1.msra.mxu0 0.0
    %860 = vmatprep.subr.mxu0 0.0
    %861 = vmatpush1.msra.mxu0 0.0
    %862 = vmatprep.subr.mxu0 0.0
    %863 = vmatpush1.msra.mxu0 0.0
    %864 = vmatprep.subr.mxu0 0.0
    %865 = vmatpush1.msra.mxu0 0.0
    %866 = vmatprep.subr.mxu0 0.0
    %867 = vmatpush1.msra.mxu0 0.0
    %868 = vmatprep.subr.mxu0 0.0
    %869 = vmatpush1.msra.mxu0 0.0
    %870 = vmatprep.subr.mxu0 0.0
    %871 = vmatpush1.msra.mxu0 0.0
    %872 = vmatprep.subr.mxu0 0.0
    %873 = vmatpush1.msra.mxu0 0.0
    %874 = vmatprep.subr.mxu0 0.0
    %875 = vmatpush1.msra.mxu0 0.0
    %876 = vmatprep.subr.mxu0 0.0
    %877 = vmatpush1.msra.mxu0 0.0
    %878 = vmatprep.subr.mxu0 0.0
    %879 = vmatpush1.msra.mxu0 %v175
    %880 = vmatprep.subr.mxu0 0.0
    %881 = vmatpush1.msra.mxu0 %v174
    %882 = vmatprep.subr.mxu0 0.0
    %883 = vmatpush1.msra.mxu0 %v173
    %884 = vmatprep.subr.mxu0 0.0
    %885 = vmatpush1.msra.mxu0 %v172
    %886 = vmatprep.subr.mxu0 0.0
    %887 = vmatpush2.msra.mxu0 0.0
    %888 = vmatprep.subr.mxu0 0.0
    %889 = vmatpush2.msra.mxu0 0.0
    %890 = vmatprep.subr.mxu0 0.0
    %891 = vmatpush2.msra.mxu0 0.0
    %892 = vmatprep.subr.mxu0 0.0
    %893 = vmatpush2.msra.mxu0 0.0
    %894 = vmatprep.subr.mxu0 0.0
    %895 = vmatpush2.msra.mxu0 0.0
    %896 = vmatprep.subr.mxu0 0.0
    %897 = vmatpush2.msra.mxu0 0.0
    %898 = vmatprep.subr.mxu0 0.0
    %899 = vmatpush2.msra.mxu0 0.0
    %900 = vmatprep.subr.mxu0 0.0
    %901 = vmatpush2.msra.mxu0 0.0
    %902 = vmatprep.subr.mxu0 0.0
    %903 = vmatpush2.msra.mxu0 0.0
    %904 = vmatprep.subr.mxu0 0.0
    %905 = vmatpush2.msra.mxu0 0.0
    %906 = vmatprep.subr.mxu0 0.0
    %907 = vmatpush2.msra.mxu0 0.0
    %908 = vmatprep.subr.mxu0 0.0
    %909 = vmatpush2.msra.mxu0 0.0
    %910 = vmatprep.subr.mxu0 0.0
    %911 = vmatpush2.msra.mxu0 0.0
    %912 = vmatprep.subr.mxu0 0.0
    %913 = vmatpush2.msra.mxu0 0.0
    %914 = vmatprep.subr.mxu0 0.0
    %915 = vmatpush2.msra.mxu0 0.0
    %916 = vmatprep.subr.mxu0 0.0
    %917 = vmatpush2.msra.mxu0 0.0
    %918 = vmatprep.mubr.f32.mxu0 0.0
    %919 = vmatmul.mubr.f32.gmra.mxu0 %v852
    %v920 = vpop.f32.mrf.mxu0
    %v921 = vadd.f32 %v353, %v920
    %v922 = vpop.f32.mrf.mxu0
    %923 = vdwg.mxu0
    %v924 = vadd.f32 %v336, %v921
    %v925 = vmul.f32 %v924, 0.5
    %v926 = vtanh.pop %v925
    %v927 = vadd.f32 %v926, 1.0
    %v928 = vmul.f32 %v927, 0.5
    %930 = vrot.lane.b32.xlu0 %v921, 64
    %v931 = vpop.permute.xlu0 %930
    %v933 = vmul.f32 %v928, %v931
    %935 = vrot.lane.b32.xlu0 %v933, 64
    %v936 = vpop.permute.xlu0 %935
    %v938 = vadd.f32 %v336, %v936
    %v939 = vtanh.pop %v938
    %v940 = vsub.f32 1.0, %v928
    %942 = vrot.lane.b32.xlu0 %v939, 96
    %v943 = vpop.permute.xlu0 %942
    %v945 = vmul.f32 %v940, %v943
    %v946 = vmul.f32 %v928, %v848
    %v947 = vadd.f32 %v945, %v946
    %949 = vrot.lane.b32.xlu0 %v947, 96
    %v950 = vpop.permute.xlu0 %949
    %v951 = vsel %vm355, %v950, 0
    %953 = vmatprep.subr.mxu0 0.0
    %954 = vmatpush1.msra.mxu0 0.0
    %955 = vmatprep.subr.mxu0 0.0
    %956 = vmatpush1.msra.mxu0 0.0
    %957 = vmatprep.subr.mxu0 0.0
    %958 = vmatpush1.msra.mxu0 0.0
    %959 = vmatprep.subr.mxu0 0.0
    %960 = vmatpush1.msra.mxu0 0.0
    %961 = vmatprep.subr.mxu0 0.0
    %962 = vmatpush1.msra.mxu0 0.0
    %963 = vmatprep.subr.mxu0 0.0
    %964 = vmatpush1.msra.mxu0 0.0
    %965 = vmatprep.subr.mxu0 0.0
    %966 = vmatpush1.msra.mxu0 0.0
    %967 = vmatprep.subr.mxu0 0.0
    %968 = vmatpush1.msra.mxu0 0.0
    %969 = vmatprep.subr.mxu0 0.0
    %970 = vmatpush1.msra.mxu0 0.0
    %971 = vmatprep.subr.mxu0 0.0
    %972 = vmatpush1.msra.mxu0 0.0
    %973 = vmatprep.subr.mxu0 0.0
    %974 = vmatpush1.msra.mxu0 0.0
    %975 = vmatprep.subr.mxu0 0.0
    %976 = vmatpush1.msra.mxu0 0.0
    %977 = vmatprep.subr.mxu0 0.0
    %978 = vmatpush1.msra.mxu0 %v175
    %979 = vmatprep.subr.mxu0 0.0
    %980 = vmatpush1.msra.mxu0 %v174
    %981 = vmatprep.subr.mxu0 0.0
    %982 = vmatpush1.msra.mxu0 %v173
    %983 = vmatprep.subr.mxu0 0.0
    %984 = vmatpush1.msra.mxu0 %v172
    %985 = vmatprep.subr.mxu0 0.0
    %986 = vmatpush2.msra.mxu0 0.0
    %987 = vmatprep.subr.mxu0 0.0
    %988 = vmatpush2.msra.mxu0 0.0
    %989 = vmatprep.subr.mxu0 0.0
    %990 = vmatpush2.msra.mxu0 0.0
    %991 = vmatprep.subr.mxu0 0.0
    %992 = vmatpush2.msra.mxu0 0.0
    %993 = vmatprep.subr.mxu0 0.0
    %994 = vmatpush2.msra.mxu0 0.0
    %995 = vmatprep.subr.mxu0 0.0
    %996 = vmatpush2.msra.mxu0 0.0
    %997 = vmatprep.subr.mxu0 0.0
    %998 = vmatpush2.msra.mxu0 0.0
    %999 = vmatprep.subr.mxu0 0.0
    %1000 = vmatpush2.msra.mxu0 0.0
    %1001 = vmatprep.subr.mxu0 0.0
    %1002 = vmatpush2.msra.mxu0 0.0
    %1003 = vmatprep.subr.mxu0 0.0
    %1004 = vmatpush2.msra.mxu0 0.0
    %1005 = vmatprep.subr.mxu0 0.0
    %1006 = vmatpush2.msra.mxu0 0.0
    %1007 = vmatprep.subr.mxu0 0.0
    %1008 = vmatpush2.msra.mxu0 0.0
    %1009 = vmatprep.subr.mxu0 0.0
    %1010 = vmatpush2.msra.mxu0 0.0
    %1011 = vmatprep.subr.mxu0 0.0
    %1012 = vmatpush2.msra.mxu0 0.0
    %1013 = vmatprep.subr.mxu0 0.0
    %1014 = vmatpush2.msra.mxu0 0.0
    %1015 = vmatprep.subr.mxu0 0.0
    %1016 = vmatpush2.msra.mxu0 0.0
    %1017 = vmatprep.mubr.f32.mxu0 0.0
    %1018 = vmatmul.mubr.f32.gmra.mxu0 %v951
    %v1019 = vpop.f32.mrf.mxu0
    %v1020 = vadd.f32 %v353, %v1019
    %v1021 = vpop.f32.mrf.mxu0
    %1022 = vdwg.mxu0
    %v1023 = vadd.f32 %v341, %v1020
    %v1024 = vmul.f32 %v1023, 0.5
    %v1025 = vtanh.pop %v1024
    %v1026 = vadd.f32 %v1025, 1.0
    %v1027 = vmul.f32 %v1026, 0.5
    %1029 = vrot.lane.b32.xlu0 %v1020, 64
    %v1030 = vpop.permute.xlu0 %1029
    %v1032 = vmul.f32 %v1027, %v1030
    %1034 = vrot.lane.b32.xlu0 %v1032, 64
    %v1035 = vpop.permute.xlu0 %1034
    %v1037 = vadd.f32 %v341, %v1035
    %v1038 = vtanh.pop %v1037
    %v1039 = vsub.f32 1.0, %v1027
    %1041 = vrot.lane.b32.xlu0 %v1038, 96
    %v1042 = vpop.permute.xlu0 %1041
    %v1044 = vmul.f32 %v1039, %v1042
    %v1045 = vmul.f32 %v1027, %v947
    %v1046 = vadd.f32 %v1044, %v1045
    %1048 = vrot.lane.b32.xlu0 %v1046, 96
    %v1049 = vpop.permute.xlu0 %1048
    %v1050 = vsel %vm355, %v1049, 0
    %1052 = vmatprep.subr.mxu0 0.0
    %1053 = vmatpush1.msra.mxu0 0.0
    %1054 = vmatprep.subr.mxu0 0.0
    %1055 = vmatpush1.msra.mxu0 0.0
    %1056 = vmatprep.subr.mxu0 0.0
    %1057 = vmatpush1.msra.mxu0 0.0
    %1058 = vmatprep.subr.mxu0 0.0
    %1059 = vmatpush1.msra.mxu0 0.0
    %1060 = vmatprep.subr.mxu0 0.0
    %1061 = vmatpush1.msra.mxu0 0.0
    %1062 = vmatprep.subr.mxu0 0.0
    %1063 = vmatpush1.msra.mxu0 0.0
    %1064 = vmatprep.subr.mxu0 0.0
    %1065 = vmatpush1.msra.mxu0 0.0
    %1066 = vmatprep.subr.mxu0 0.0
    %1067 = vmatpush1.msra.mxu0 0.0
    %1068 = vmatprep.subr.mxu0 0.0
    %1069 = vmatpush1.msra.mxu0 0.0
    %1070 = vmatprep.subr.mxu0 0.0
    %1071 = vmatpush1.msra.mxu0 0.0
    %1072 = vmatprep.subr.mxu0 0.0
    %1073 = vmatpush1.msra.mxu0 0.0
    %1074 = vmatprep.subr.mxu0 0.0
    %1075 = vmatpush1.msra.mxu0 0.0
    %1076 = vmatprep.subr.mxu0 0.0
    %1077 = vmatpush1.msra.mxu0 %v175
    %1078 = vmatprep.subr.mxu0 0.0
    %1079 = vmatpush1.msra.mxu0 %v174
    %1080 = vmatprep.subr.mxu0 0.0
    %1081 = vmatpush1.msra.mxu0 %v173
    %1082 = vmatprep.subr.mxu0 0.0
    %1083 = vmatpush1.msra.mxu0 %v172
    %1084 = vmatprep.subr.mxu0 0.0
    %1085 = vmatpush2.msra.mxu0 0.0
    %1086 = vmatprep.subr.mxu0 0.0
    %1087 = vmatpush2.msra.mxu0 0.0
    %1088 = vmatprep.subr.mxu0 0.0
    %1089 = vmatpush2.msra.mxu0 0.0
    %1090 = vmatprep.subr.mxu0 0.0
    %1091 = vmatpush2.msra.mxu0 0.0
    %1092 = vmatprep.subr.mxu0 0.0
    %1093 = vmatpush2.msra.mxu0 0.0
    %1094 = vmatprep.subr.mxu0 0.0
    %1095 = vmatpush2.msra.mxu0 0.0
    %1096 = vmatprep.subr.mxu0 0.0
    %1097 = vmatpush2.msra.mxu0 0.0
    %1098 = vmatprep.subr.mxu0 0.0
    %1099 = vmatpush2.msra.mxu0 0.0
    %1100 = vmatprep.subr.mxu0 0.0
    %1101 = vmatpush2.msra.mxu0 0.0
    %1102 = vmatprep.subr.mxu0 0.0
    %1103 = vmatpush2.msra.mxu0 0.0
    %1104 = vmatprep.subr.mxu0 0.0
    %1105 = vmatpush2.msra.mxu0 0.0
    %1106 = vmatprep.subr.mxu0 0.0
    %1107 = vmatpush2.msra.mxu0 0.0
    %1108 = vmatprep.subr.mxu0 0.0
    %1109 = vmatpush2.msra.mxu0 0.0
    %1110 = vmatprep.subr.mxu0 0.0
    %1111 = vmatpush2.msra.mxu0 0.0
    %1112 = vmatprep.subr.mxu0 0.0
    %1113 = vmatpush2.msra.mxu0 0.0
    %1114 = vmatprep.subr.mxu0 0.0
    %1115 = vmatpush2.msra.mxu0 0.0
    %1116 = vmatprep.mubr.f32.mxu0 0.0
    %1117 = vmatmul.mubr.f32.gmra.mxu0 %v1050
    %v1118 = vpop.f32.mrf.mxu0
    %v1119 = vadd.f32 %v353, %v1118
    %v1120 = vpop.f32.mrf.mxu0
    %1121 = vdwg.mxu0
    %v1122 = vadd.f32 %v346, %v1119
    %v1123 = vmul.f32 %v1122, 0.5
    %v1124 = vtanh.pop %v1123
    %v1125 = vadd.f32 %v1124, 1.0
    %v1126 = vmul.f32 %v1125, 0.5
    %1128 = vrot.lane.b32.xlu0 %v1119, 64
    %v1129 = vpop.permute.xlu0 %1128
    %v1131 = vmul.f32 %v1126, %v1129
    %1133 = vrot.lane.b32.xlu0 %v1131, 64
    %v1134 = vpop.permute.xlu0 %1133
    %v1136 = vadd.f32 %v346, %v1134
    %v1137 = vtanh.pop %v1136
    %v1138 = vsub.f32 1.0, %v1126
    %1140 = vrot.lane.b32.xlu0 %v1137, 96
    %v1141 = vpop.permute.xlu0 %1140
    %v1143 = vmul.f32 %v1138, %v1141
    %v1144 = vmul.f32 %v1126, %v1046
    %v1145 = vadd.f32 %v1143, %v1144
    %v1147 = vlaneseq
    %v1148 = vshrl.u32 %v1147, 7
    %v1149 = vsub.s32 0, %v1148
    %v1150 = vrot.slane %v182, %v1149
    %1153 = vrot.lane.b32.xlu0 %v1145, 96
    %v1154 = vpop.permute.xlu0 %1153
    %v1155 = vsel %vm355, %v1154, 0
    %1157 = vmatprep.subr.mxu0 0.0
    %1158 = vmatpush1.msra.mxu0 0.0
    %1159 = vmatprep.subr.mxu0 0.0
    %1160 = vmatpush1.msra.mxu0 0.0
    %1161 = vmatprep.subr.mxu0 0.0
    %1162 = vmatpush1.msra.mxu0 0.0
    %1163 = vmatprep.subr.mxu0 0.0
    %1164 = vmatpush1.msra.mxu0 0.0
    %1165 = vmatprep.subr.mxu0 0.0
    %1166 = vmatpush1.msra.mxu0 0.0
    %1167 = vmatprep.subr.mxu0 0.0
    %1168 = vmatpush1.msra.mxu0 0.0
    %1169 = vmatprep.subr.mxu0 0.0
    %1170 = vmatpush1.msra.mxu0 0.0
    %1171 = vmatprep.subr.mxu0 0.0
    %1172 = vmatpush1.msra.mxu0 0.0
    %1173 = vmatprep.subr.mxu0 0.0
    %1174 = vmatpush1.msra.mxu0 0.0
    %1175 = vmatprep.subr.mxu0 0.0
    %1176 = vmatpush1.msra.mxu0 0.0
    %1177 = vmatprep.subr.mxu0 0.0
    %1178 = vmatpush1.msra.mxu0 0.0
    %1179 = vmatprep.subr.mxu0 0.0
    %1180 = vmatpush1.msra.mxu0 0.0
    %1181 = vmatprep.subr.mxu0 0.0
    %1182 = vmatpush1.msra.mxu0 %v181
    %1183 = vmatprep.subr.mxu0 0.0
    %1184 = vmatpush1.msra.mxu0 %v180
    %1185 = vmatprep.subr.mxu0 0.0
    %1186 = vmatpush1.msra.mxu0 %v179
    %1187 = vmatprep.subr.mxu0 0.0
    %1188 = vmatpush1.msra.mxu0 %v178
    %1189 = vmatprep.subr.mxu0 0.0
    %1190 = vmatpush2.msra.mxu0 0.0
    %1191 = vmatprep.subr.mxu0 0.0
    %1192 = vmatpush2.msra.mxu0 0.0
    %1193 = vmatprep.subr.mxu0 0.0
    %1194 = vmatpush2.msra.mxu0 0.0
    %1195 = vmatprep.subr.mxu0 0.0
    %1196 = vmatpush2.msra.mxu0 0.0
    %1197 = vmatprep.subr.mxu0 0.0
    %1198 = vmatpush2.msra.mxu0 0.0
    %1199 = vmatprep.subr.mxu0 0.0
    %1200 = vmatpush2.msra.mxu0 0.0
    %1201 = vmatprep.subr.mxu0 0.0
    %1202 = vmatpush2.msra.mxu0 0.0
    %1203 = vmatprep.subr.mxu0 0.0
    %1204 = vmatpush2.msra.mxu0 0.0
    %1205 = vmatprep.subr.mxu0 0.0
    %1206 = vmatpush2.msra.mxu0 0.0
    %1207 = vmatprep.subr.mxu0 0.0
    %1208 = vmatpush2.msra.mxu0 0.0
    %1209 = vmatprep.subr.mxu0 0.0
    %1210 = vmatpush2.msra.mxu0 0.0
    %1211 = vmatprep.subr.mxu0 0.0
    %1212 = vmatpush2.msra.mxu0 0.0
    %1213 = vmatprep.subr.mxu0 0.0
    %1214 = vmatpush2.msra.mxu0 0.0
    %1215 = vmatprep.subr.mxu0 0.0
    %1216 = vmatpush2.msra.mxu0 0.0
    %1217 = vmatprep.subr.mxu0 0.0
    %1218 = vmatpush2.msra.mxu0 0.0
    %1219 = vmatprep.subr.mxu0 0.0
    %1220 = vmatpush2.msra.mxu0 0.0
    %1221 = vmatprep.mubr.f32.mxu0 0.0
    %1222 = vmatmul.mubr.f32.gmra.mxu0 %v456
    %v1223 = vpop.f32.mrf.mxu0
    %v1224 = vadd.f32 %v1150, %v1223
    %v1225 = vpop.f32.mrf.mxu0
    %1226 = vmatprep.mubr.f32.mxu0 0.0
    %1227 = vmatmul.mubr.f32.gmra.mxu0 %v555
    %v1228 = vpop.f32.mrf.mxu0
    %v1229 = vadd.f32 %v1150, %v1228
    %v1230 = vpop.f32.mrf.mxu0
    %1231 = vmatprep.mubr.f32.mxu0 0.0
    %1232 = vmatmul.mubr.f32.gmra.mxu0 %v654
    %v1233 = vpop.f32.mrf.mxu0
    %v1234 = vadd.f32 %v1150, %v1233
    %v1235 = vpop.f32.mrf.mxu0
    %1236 = vmatprep.mubr.f32.mxu0 0.0
    %1237 = vmatmul.mubr.f32.gmra.mxu0 %v753
    %v1238 = vpop.f32.mrf.mxu0
    %v1239 = vadd.f32 %v1150, %v1238
    %v1240 = vpop.f32.mrf.mxu0
    %1241 = vmatprep.mubr.f32.mxu0 0.0
    %1242 = vmatmul.mubr.f32.gmra.mxu0 %v852
    %v1243 = vpop.f32.mrf.mxu0
    %v1244 = vadd.f32 %v1150, %v1243
    %v1245 = vpop.f32.mrf.mxu0
    %1246 = vmatprep.mubr.f32.mxu0 0.0
    %1247 = vmatmul.mubr.f32.gmra.mxu0 %v951
    %v1248 = vpop.f32.mrf.mxu0
    %v1249 = vadd.f32 %v1150, %v1248
    %v1250 = vpop.f32.mrf.mxu0
    %1251 = vmatprep.mubr.f32.mxu0 0.0
    %1252 = vmatmul.mubr.f32.gmra.mxu0 %v1050
    %v1253 = vpop.f32.mrf.mxu0
    %v1254 = vadd.f32 %v1150, %v1253
    %v1255 = vpop.f32.mrf.mxu0
    %1256 = vmatprep.mubr.f32.mxu0 0.0
    %1257 = vmatmul.mubr.f32.gmra.mxu0 %v1155
    %v1258 = vpop.f32.mrf.mxu0
    %v1259 = vadd.f32 %v1150, %v1258
    %v1260 = vpop.f32.mrf.mxu0
    %1261 = vdwg.mxu0
    %v1263 = vsel %vm355, %v185, 0
    %v1266 = vsel %vm355, %v186, 0
    %v1269 = vsel %vm355, %v187, 0
    %v1272 = vsel %vm355, %v188, 0
    %1274 = vmatprep.subr.mxu0 0.0
    %1275 = vmatpush1.msra.mxu0 0.0
    %1276 = vmatprep.subr.mxu0 0.0
    %1277 = vmatpush1.msra.mxu0 0.0
    %1278 = vmatprep.subr.mxu0 0.0
    %1279 = vmatpush1.msra.mxu0 0.0
    %1280 = vmatprep.subr.mxu0 0.0
    %1281 = vmatpush1.msra.mxu0 0.0
    %1282 = vmatprep.subr.mxu0 0.0
    %1283 = vmatpush1.msra.mxu0 0.0
    %1284 = vmatprep.subr.mxu0 0.0
    %1285 = vmatpush1.msra.mxu0 0.0
    %1286 = vmatprep.subr.mxu0 0.0
    %1287 = vmatpush1.msra.mxu0 0.0
    %1288 = vmatprep.subr.mxu0 0.0
    %1289 = vmatpush1.msra.mxu0 0.0
    %1290 = vmatprep.subr.mxu0 0.0
    %1291 = vmatpush1.msra.mxu0 0.0
    %1292 = vmatprep.subr.mxu0 0.0
    %1293 = vmatpush1.msra.mxu0 0.0
    %1294 = vmatprep.subr.mxu0 0.0
    %1295 = vmatpush1.msra.mxu0 0.0
    %1296 = vmatprep.subr.mxu0 0.0
    %1297 = vmatpush1.msra.mxu0 0.0
    %1298 = vmatprep.subr.mxu0 0.0
    %1299 = vmatpush1.msra.mxu0 %v193
    %1300 = vmatprep.subr.mxu0 0.0
    %1301 = vmatpush1.msra.mxu0 %v192
    %1302 = vmatprep.subr.mxu0 0.0
    %1303 = vmatpush1.msra.mxu0 %v191
    %1304 = vmatprep.subr.mxu0 0.0
    %1305 = vmatpush1.msra.mxu0 %v190
    %1306 = vmatprep.subr.mxu0 0.0
    %1307 = vmatpush2.msra.mxu0 0.0
    %1308 = vmatprep.subr.mxu0 0.0
    %1309 = vmatpush2.msra.mxu0 0.0
    %1310 = vmatprep.subr.mxu0 0.0
    %1311 = vmatpush2.msra.mxu0 0.0
    %1312 = vmatprep.subr.mxu0 0.0
    %1313 = vmatpush2.msra.mxu0 0.0
    %1314 = vmatprep.subr.mxu0 0.0
    %1315 = vmatpush2.msra.mxu0 0.0
    %1316 = vmatprep.subr.mxu0 0.0
    %1317 = vmatpush2.msra.mxu0 0.0
    %1318 = vmatprep.subr.mxu0 0.0
    %1319 = vmatpush2.msra.mxu0 0.0
    %1320 = vmatprep.subr.mxu0 0.0
    %1321 = vmatpush2.msra.mxu0 0.0
    %1322 = vmatprep.subr.mxu0 0.0
    %1323 = vmatpush2.msra.mxu0 0.0
    %1324 = vmatprep.subr.mxu0 0.0
    %1325 = vmatpush2.msra.mxu0 0.0
    %1326 = vmatprep.subr.mxu0 0.0
    %1327 = vmatpush2.msra.mxu0 0.0
    %1328 = vmatprep.subr.mxu0 0.0
    %1329 = vmatpush2.msra.mxu0 0.0
    %1330 = vmatprep.subr.mxu0 0.0
    %1331 = vmatpush2.msra.mxu0 0.0
    %1332 = vmatprep.subr.mxu0 0.0
    %1333 = vmatpush2.msra.mxu0 0.0
    %1334 = vmatprep.subr.mxu0 0.0
    %1335 = vmatpush2.msra.mxu0 0.0
    %1336 = vmatprep.subr.mxu0 0.0
    %1337 = vmatpush2.msra.mxu0 0.0
    %1338 = vmatprep.mubr.f32.mxu0 0.0
    %1339 = vmatmul.mubr.f32.gmra.mxu0 %v1263
    %v1340 = vpop.f32.mrf.mxu0
    %v1341 = vadd.f32 0.0, %v1340
    %v1342 = vpop.f32.mrf.mxu0
    %1343 = vmatprep.mubr.f32.mxu0 0.0
    %1344 = vmatmul.mubr.f32.gmra.mxu0 %v1266
    %v1345 = vpop.f32.mrf.mxu0
    %v1346 = vadd.f32 0.0, %v1345
    %v1347 = vpop.f32.mrf.mxu0
    %1348 = vmatprep.mubr.f32.mxu0 0.0
    %1349 = vmatmul.mubr.f32.gmra.mxu0 %v1269
    %v1350 = vpop.f32.mrf.mxu0
    %v1351 = vadd.f32 0.0, %v1350
    %v1352 = vpop.f32.mrf.mxu0
    %1353 = vmatprep.mubr.f32.mxu0 0.0
    %1354 = vmatmul.mubr.f32.gmra.mxu0 %v1272
    %v1355 = vpop.f32.mrf.mxu0
    %v1356 = vadd.f32 0.0, %v1355
    %v1357 = vpop.f32.mrf.mxu0
    %1358 = vdwg.mxu0
    %v1360 = vsel %vm355, %v189, 0
    %1362 = vmatprep.subr.mxu0 0.0
    %1363 = vmatpush1.msra.mxu0 0.0
    %1364 = vmatprep.subr.mxu0 0.0
    %1365 = vmatpush1.msra.mxu0 0.0
    %1366 = vmatprep.subr.mxu0 0.0
    %1367 = vmatpush1.msra.mxu0 0.0
    %1368 = vmatprep.subr.mxu0 0.0
    %1369 = vmatpush1.msra.mxu0 0.0
    %1370 = vmatprep.subr.mxu0 0.0
    %1371 = vmatpush1.msra.mxu0 0.0
    %1372 = vmatprep.subr.mxu0 0.0
    %1373 = vmatpush1.msra.mxu0 0.0
    %1374 = vmatprep.subr.mxu0 0.0
    %1375 = vmatpush1.msra.mxu0 0.0
    %1376 = vmatprep.subr.mxu0 0.0
    %1377 = vmatpush1.msra.mxu0 0.0
    %1378 = vmatprep.subr.mxu0 0.0
    %1379 = vmatpush1.msra.mxu0 0.0
    %1380 = vmatprep.subr.mxu0 0.0
    %1381 = vmatpush1.msra.mxu0 0.0
    %1382 = vmatprep.subr.mxu0 0.0
    %1383 = vmatpush1.msra.mxu0 0.0
    %1384 = vmatprep.subr.mxu0 0.0
    %1385 = vmatpush1.msra.mxu0 0.0
    %1386 = vmatprep.subr.mxu0 0.0
    %1387 = vmatpush1.msra.mxu0 %v193
    %1388 = vmatprep.subr.mxu0 0.0
    %1389 = vmatpush1.msra.mxu0 %v192
    %1390 = vmatprep.subr.mxu0 0.0
    %1391 = vmatpush1.msra.mxu0 %v191
    %1392 = vmatprep.subr.mxu0 0.0
    %1393 = vmatpush1.msra.mxu0 %v190
    %1394 = vmatprep.subr.mxu0 0.0
    %1395 = vmatpush2.msra.mxu0 0.0
    %1396 = vmatprep.subr.mxu0 0.0
    %1397 = vmatpush2.msra.mxu0 0.0
    %1398 = vmatprep.subr.mxu0 0.0
    %1399 = vmatpush2.msra.mxu0 0.0
    %1400 = vmatprep.subr.mxu0 0.0
    %1401 = vmatpush2.msra.mxu0 0.0
    %1402 = vmatprep.subr.mxu0 0.0
    %1403 = vmatpush2.msra.mxu0 0.0
    %1404 = vmatprep.subr.mxu0 0.0
    %1405 = vmatpush2.msra.mxu0 0.0
    %1406 = vmatprep.subr.mxu0 0.0
    %1407 = vmatpush2.msra.mxu0 0.0
    %1408 = vmatprep.subr.mxu0 0.0
    %1409 = vmatpush2.msra.mxu0 0.0
    %1410 = vmatprep.subr.mxu0 0.0
    %1411 = vmatpush2.msra.mxu0 0.0
    %1412 = vmatprep.subr.mxu0 0.0
    %1413 = vmatpush2.msra.mxu0 0.0
    %1414 = vmatprep.subr.mxu0 0.0
    %1415 = vmatpush2.msra.mxu0 0.0
    %1416 = vmatprep.subr.mxu0 0.0
    %1417 = vmatpush2.msra.mxu0 0.0
    %1418 = vmatprep.subr.mxu0 0.0
    %1419 = vmatpush2.msra.mxu0 0.0
    %1420 = vmatprep.subr.mxu0 0.0
    %1421 = vmatpush2.msra.mxu0 0.0
    %1422 = vmatprep.subr.mxu0 0.0
    %1423 = vmatpush2.msra.mxu0 0.0
    %1424 = vmatprep.subr.mxu0 0.0
    %1425 = vmatpush2.msra.mxu0 0.0
    %1426 = vmatprep.mubr.f32.mxu0 0.0
    %1427 = vmatmul.mubr.f32.gmra.mxu0 %v1360
    %v1428 = vpop.f32.mrf.mxu0
    %v1429 = vadd.f32 0.0, %v1428
    %v1430 = vpop.f32.mrf.mxu0
    %1431 = vdwg.mxu0
    %v1432 = vtanh.pop %v1224
    %v1433 = vtanh.pop %v1229
    %v1434 = vtanh.pop %v1234
    %v1435 = vtanh.pop %v1239
    %v1436 = vtanh.pop %v1244
    %v1437 = vtanh.pop %v1249
    %v1438 = vtanh.pop %v1254
    %v1439 = vtanh.pop %v1259
    %v1440 = vlaneseq
    %v1441 = vshrl.u32 %v1440, 7
    %v1442 = vsub.s32 0, %v1441
    %v1443 = vrot.slane %v1429, %v1442
    %v1445 = vsel %vm355, %v1432, 0
    %v1448 = vsel %vm355, %v1433, 0
    %v1451 = vsel %vm355, %v1434, 0
    %v1454 = vsel %vm355, %v1435, 0
    %v1457 = vsel %vm355, %v1436, 0
    %v1460 = vsel %vm355, %v1437, 0
    %v1463 = vsel %vm355, %v1438, 0
    %v1466 = vsel %vm355, %v1439, 0
    %1468 = vmatprep.subr.mxu0 0.0
    %1469 = vmatpush1.msra.mxu0 0.0
    %1470 = vmatprep.subr.mxu0 0.0
    %1471 = vmatpush1.msra.mxu0 0.0
    %1472 = vmatprep.subr.mxu0 0.0
    %1473 = vmatpush1.msra.mxu0 0.0
    %1474 = vmatprep.subr.mxu0 0.0
    %1475 = vmatpush1.msra.mxu0 0.0
    %1476 = vmatprep.subr.mxu0 0.0
    %1477 = vmatpush1.msra.mxu0 0.0
    %1478 = vmatprep.subr.mxu0 0.0
    %1479 = vmatpush1.msra.mxu0 0.0
    %1480 = vmatprep.subr.mxu0 0.0
    %1481 = vmatpush1.msra.mxu0 0.0
    %1482 = vmatprep.subr.mxu0 0.0
    %1483 = vmatpush1.msra.mxu0 0.0
    %1484 = vmatprep.subr.mxu0 0.0
    %1485 = vmatpush1.msra.mxu0 0.0
    %1486 = vmatprep.subr.mxu0 0.0
    %1487 = vmatpush1.msra.mxu0 0.0
    %1488 = vmatprep.subr.mxu0 0.0
    %1489 = vmatpush1.msra.mxu0 0.0
    %1490 = vmatprep.subr.mxu0 0.0
    %1491 = vmatpush1.msra.mxu0 0.0
    %1492 = vmatprep.subr.mxu0 0.0
    %1493 = vmatpush1.msra.mxu0 %v1356
    %1494 = vmatprep.subr.mxu0 0.0
    %1495 = vmatpush1.msra.mxu0 %v1351
    %1496 = vmatprep.subr.mxu0 0.0
    %1497 = vmatpush1.msra.mxu0 %v1346
    %1498 = vmatprep.subr.mxu0 0.0
    %1499 = vmatpush1.msra.mxu0 %v1341
    %1500 = vmatprep.subr.mxu0 0.0
    %1501 = vmatpush2.msra.mxu0 0.0
    %1502 = vmatprep.subr.mxu0 0.0
    %1503 = vmatpush2.msra.mxu0 0.0
    %1504 = vmatprep.subr.mxu0 0.0
    %1505 = vmatpush2.msra.mxu0 0.0
    %1506 = vmatprep.subr.mxu0 0.0
    %1507 = vmatpush2.msra.mxu0 0.0
    %1508 = vmatprep.subr.mxu0 0.0
    %1509 = vmatpush2.msra.mxu0 0.0
    %1510 = vmatprep.subr.mxu0 0.0
    %1511 = vmatpush2.msra.mxu0 0.0
    %1512 = vmatprep.subr.mxu0 0.0
    %1513 = vmatpush2.msra.mxu0 0.0
    %1514 = vmatprep.subr.mxu0 0.0
    %1515 = vmatpush2.msra.mxu0 0.0
    %1516 = vmatprep.subr.mxu0 0.0
    %1517 = vmatpush2.msra.mxu0 0.0
    %1518 = vmatprep.subr.mxu0 0.0
    %1519 = vmatpush2.msra.mxu0 0.0
    %1520 = vmatprep.subr.mxu0 0.0
    %1521 = vmatpush2.msra.mxu0 0.0
    %1522 = vmatprep.subr.mxu0 0.0
    %1523 = vmatpush2.msra.mxu0 0.0
    %1524 = vmatprep.subr.mxu0 0.0
    %1525 = vmatpush2.msra.mxu0 0.0
    %1526 = vmatprep.subr.mxu0 0.0
    %1527 = vmatpush2.msra.mxu0 0.0
    %1528 = vmatprep.subr.mxu0 0.0
    %1529 = vmatpush2.msra.mxu0 0.0
    %1530 = vmatprep.subr.mxu0 0.0
    %1531 = vmatpush2.msra.mxu0 0.0
    %1532 = vmatprep.mubr.f32.mxu0 0.0
    %1533 = vmatmul.mubr.f32.gmra.mxu0 %v1445
    %v1534 = vpop.f32.mrf.mxu0
    %v1535 = vadd.f32 %v1443, %v1534
    %v1536 = vpop.f32.mrf.mxu0
    %1537 = vmatprep.mubr.f32.mxu0 0.0
    %1538 = vmatmul.mubr.f32.gmra.mxu0 %v1448
    %v1539 = vpop.f32.mrf.mxu0
    %v1540 = vadd.f32 %v1443, %v1539
    %v1541 = vpop.f32.mrf.mxu0
    %1542 = vmatprep.mubr.f32.mxu0 0.0
    %1543 = vmatmul.mubr.f32.gmra.mxu0 %v1451
    %v1544 = vpop.f32.mrf.mxu0
    %v1545 = vadd.f32 %v1443, %v1544
    %v1546 = vpop.f32.mrf.mxu0
    %1547 = vmatprep.mubr.f32.mxu0 0.0
    %1548 = vmatmul.mubr.f32.gmra.mxu0 %v1454
    %v1549 = vpop.f32.mrf.mxu0
    %v1550 = vadd.f32 %v1443, %v1549
    %v1551 = vpop.f32.mrf.mxu0
    %1552 = vmatprep.mubr.f32.mxu0 0.0
    %1553 = vmatmul.mubr.f32.gmra.mxu0 %v1457
    %v1554 = vpop.f32.mrf.mxu0
    %v1555 = vadd.f32 %v1443, %v1554
    %v1556 = vpop.f32.mrf.mxu0
    %1557 = vmatprep.mubr.f32.mxu0 0.0
    %1558 = vmatmul.mubr.f32.gmra.mxu0 %v1460
    %v1559 = vpop.f32.mrf.mxu0
    %v1560 = vadd.f32 %v1443, %v1559
    %v1561 = vpop.f32.mrf.mxu0
    %1562 = vmatprep.mubr.f32.mxu0 0.0
    %1563 = vmatmul.mubr.f32.gmra.mxu0 %v1463
    %v1564 = vpop.f32.mrf.mxu0
    %v1565 = vadd.f32 %v1443, %v1564
    %v1566 = vpop.f32.mrf.mxu0
    %1567 = vmatprep.mubr.f32.mxu0 0.0
    %1568 = vmatmul.mubr.f32.gmra.mxu0 %v1466
    %v1569 = vpop.f32.mrf.mxu0
    %v1570 = vadd.f32 %v1443, %v1569
    %v1571 = vpop.f32.mrf.mxu0
    %1572 = vdwg.mxu0
    %1574 = vrot.lane.b32.xlu0 %v1540, 1
    %v1575 = vpop.permute.xlu0 %1574
    %1578 = vrot.lane.b32.xlu0 %v1545, 2
    %v1579 = vpop.permute.xlu0 %1578
    %1582 = vrot.lane.b32.xlu0 %v1550, 3
    %v1583 = vpop.permute.xlu0 %1582
    %1586 = vrot.lane.b32.xlu0 %v1555, 4
    %v1587 = vpop.permute.xlu0 %1586
    %1590 = vrot.lane.b32.xlu0 %v1560, 5
    %v1591 = vpop.permute.xlu0 %1590
    %1594 = vrot.lane.b32.xlu0 %v1565, 6
    %v1595 = vpop.permute.xlu0 %1594
    %1598 = vrot.lane.b32.xlu0 %v1570, 7
    %v1599 = vpop.permute.xlu0 %1598
    %vm1601 = vcmask 7168
    %v1602 = vsel %vm1601, %v1535, %v1575
    %vm1603 = vcmask 15360
    %v1604 = vsel %vm1603, %v1602, %v1579
    %vm1605 = vcmask 23552
    %v1606 = vsel %vm1605, %v1604, %v1583
    %v1607 = vsel %vm215, %v1606, %v1587
    %vm1608 = vcmask 39936
    %v1609 = vsel %vm1608, %v1607, %v1591
    %vm1610 = vcmask 48128
    %v1611 = vsel %vm1610, %v1609, %v1595
    %vm1612 = vcmask 56320
    %v1613 = vsel %vm1612, %v1611, %v1599
    %vm1614 = vcmask 64512
    %v1615 = vsel %vm1614, %v1613, -inf
    %1616 = vmax.xlane.f32.xlu0 %v1615
    %v1617 = vpop.xlane.xlu0 %1616
    %v1618 = vsub.f32 %v1613, %v1617
    %v1619 = vmul.f32 %v1618, 1.442695
    %v1620 = vpow.pop %v1619
    %v1621 = vsel %vm1614, %v1620, 0.0
    %1622 = vadd.xlane.f32.xlu0 %v1621
    %v1623 = vpop.xlane.xlu0 %1622
    %v1624 = vrcp.pop %v1623
    %v1625 = vmul.f32 %v1620, %v1624
    %1627 = vset.pattern.permute.xlu0 0
    %1628 = vperm.xlu0 %1627, %v1625
    %v1629 = vpop.permute.xlu0 %1628
    %v1631 = vmul.f32 %v1629, %v1224
    %1632 = vset.pattern.permute.xlu0 1
    %1633 = vperm.xlu0 %1632, %v1625
    %v1634 = vpop.permute.xlu0 %1633
    %v1636 = vmul.f32 %v1634, %v1229
    %v1637 = vadd.f32 %v1631, %v1636
    %1638 = vset.pattern.permute.xlu0 2
    %1639 = vperm.xlu0 %1638, %v1625
    %v1640 = vpop.permute.xlu0 %1639
    %v1642 = vmul.f32 %v1640, %v1234
    %v1643 = vadd.f32 %v1637, %v1642
    %1644 = vset.pattern.permute.xlu0 3
    %1645 = vperm.xlu0 %1644, %v1625
    %v1646 = vpop.permute.xlu0 %1645
    %v1648 = vmul.f32 %v1646, %v1239
    %v1649 = vadd.f32 %v1643, %v1648
    %1650 = vset.pattern.permute.xlu0 4
    %1651 = vperm.xlu0 %1650, %v1625
    %v1652 = vpop.permute.xlu0 %1651
    %v1654 = vmul.f32 %v1652, %v1244
    %v1655 = vadd.f32 %v1649, %v1654
    %1656 = vset.pattern.permute.xlu0 5
    %1657 = vperm.xlu0 %1656, %v1625
    %v1658 = vpop.permute.xlu0 %1657
    %v1660 = vmul.f32 %v1658, %v1249
    %v1661 = vadd.f32 %v1655, %v1660
    %1662 = vset.pattern.permute.xlu0 6
    %1663 = vperm.xlu0 %1662, %v1625
    %v1664 = vpop.permute.xlu0 %1663
    %v1666 = vmul.f32 %v1664, %v1254
    %v1667 = vadd.f32 %v1661, %v1666
    %1668 = vset.pattern.permute.xlu0 7
    %1669 = vperm.xlu0 %1668, %v1625
    %v1670 = vpop.permute.xlu0 %1669
    %v1672 = vmul.f32 %v1670, %v1259
    %v1673 = vadd.f32 %v1667, %v1672
    %v1675 = vlaneseq
    %v1676 = vshrl.u32 %v1675, 7
    %v1677 = vsub.s32 0, %v1676
    %v1678 = vrot.slane %v184, %v1677
    %v1681 = vsel %vm240, %v183, 0
    %1683 = vmatprep.subr.mxu0 0.0
    %1684 = vmatpush1.msra.mxu0 0.0
    %1685 = vmatprep.subr.mxu0 0.0
    %1686 = vmatpush1.msra.mxu0 0.0
    %1687 = vmatprep.subr.mxu0 0.0
    %1688 = vmatpush1.msra.mxu0 0.0
    %1689 = vmatprep.subr.mxu0 0.0
    %1690 = vmatpush1.msra.mxu0 0.0
    %1691 = vmatprep.subr.mxu0 0.0
    %1692 = vmatpush1.msra.mxu0 0.0
    %1693 = vmatprep.subr.mxu0 0.0
    %1694 = vmatpush1.msra.mxu0 0.0
    %1695 = vmatprep.subr.mxu0 0.0
    %1696 = vmatpush1.msra.mxu0 0.0
    %1697 = vmatprep.subr.mxu0 0.0
    %1698 = vmatpush1.msra.mxu0 0.0
    %1699 = vmatprep.subr.mxu0 0.0
    %1700 = vmatpush1.msra.mxu0 0.0
    %1701 = vmatprep.subr.mxu0 0.0
    %1702 = vmatpush1.msra.mxu0 0.0
    %1703 = vmatprep.subr.mxu0 0.0
    %1704 = vmatpush1.msra.mxu0 0.0
    %1705 = vmatprep.subr.mxu0 0.0
    %1706 = vmatpush1.msra.mxu0 0.0
    %1707 = vmatprep.subr.mxu0 0.0
    %1708 = vmatpush1.msra.mxu0 0.0
    %1709 = vmatprep.subr.mxu0 0.0
    %1710 = vmatpush1.msra.mxu0 0.0
    %1711 = vmatprep.subr.mxu0 0.0
    %1712 = vmatpush1.msra.mxu0 0.0
    %1713 = vmatprep.subr.mxu0 0.0
    %1714 = vmatpush1.msra.mxu0 %v1681
    %1715 = vmatprep.subr.mxu0 0.0
    %1716 = vmatpush2.msra.mxu0 0.0
    %1717 = vmatprep.subr.mxu0 0.0
    %1718 = vmatpush2.msra.mxu0 0.0
    %1719 = vmatprep.subr.mxu0 0.0
    %1720 = vmatpush2.msra.mxu0 0.0
    %1721 = vmatprep.subr.mxu0 0.0
    %1722 = vmatpush2.msra.mxu0 0.0
    %1723 = vmatprep.subr.mxu0 0.0
    %1724 = vmatpush2.msra.mxu0 0.0
    %1725 = vmatprep.subr.mxu0 0.0
    %1726 = vmatpush2.msra.mxu0 0.0
    %1727 = vmatprep.subr.mxu0 0.0
    %1728 = vmatpush2.msra.mxu0 0.0
    %1729 = vmatprep.subr.mxu0 0.0
    %1730 = vmatpush2.msra.mxu0 0.0
    %1731 = vmatprep.subr.mxu0 0.0
    %1732 = vmatpush2.msra.mxu0 0.0
    %1733 = vmatprep.subr.mxu0 0.0
    %1734 = vmatpush2.msra.mxu0 0.0
    %1735 = vmatprep.subr.mxu0 0.0
    %1736 = vmatpush2.msra.mxu0 0.0
    %1737 = vmatprep.subr.mxu0 0.0
    %1738 = vmatpush2.msra.mxu0 0.0
    %1739 = vmatprep.subr.mxu0 0.0
    %1740 = vmatpush2.msra.mxu0 0.0
    %1741 = vmatprep.subr.mxu0 0.0
    %1742 = vmatpush2.msra.mxu0 0.0
    %1743 = vmatprep.subr.mxu0 0.0
    %1744 = vmatpush2.msra.mxu0 0.0
    %1745 = vmatprep.subr.mxu0 0.0
    %1746 = vmatpush2.msra.mxu0 0.0
    %1747 = vmatprep.mubr.f32.mxu0 0.0
    %1748 = vmatmul.mubr.f32.gmra.mxu0 %v238
    %v1749 = vpop.f32.mrf.mxu0
    %v1750 = vadd.f32 %v1678, %v1749
    %v1751 = vpop.f32.mrf.mxu0
    %1752 = vdwg.mxu0
    %v1753 = vtanh.pop %v1750
    %v1754 = vadd.f32 %v1673, %v1753
    %v1756 = vlaneseq
    %v1757 = vshrl.u32 %v1756, 7
    %v1758 = vsub.s32 0, %v1757
    %v1759 = vrot.slane %v202, %v1758
    %v1762 = vsel %vm355, %v1754, 0
    %1764 = vmatprep.subr.mxu0 0.0
    %1765 = vmatpush1.msra.mxu0 0.0
    %1766 = vmatprep.subr.mxu0 0.0
    %1767 = vmatpush1.msra.mxu0 0.0
    %1768 = vmatprep.subr.mxu0 0.0
    %1769 = vmatpush1.msra.mxu0 0.0
    %1770 = vmatprep.subr.mxu0 0.0
    %1771 = vmatpush1.msra.mxu0 0.0
    %1772 = vmatprep.subr.mxu0 0.0
    %1773 = vmatpush1.msra.mxu0 0.0
    %1774 = vmatprep.subr.mxu0 0.0
    %1775 = vmatpush1.msra.mxu0 0.0
    %1776 = vmatprep.subr.mxu0 0.0
    %1777 = vmatpush1.msra.mxu0 0.0
    %1778 = vmatprep.subr.mxu0 0.0
    %1779 = vmatpush1.msra.mxu0 0.0
    %1780 = vmatprep.subr.mxu0 0.0
    %1781 = vmatpush1.msra.mxu0 0.0
    %1782 = vmatprep.subr.mxu0 0.0
    %1783 = vmatpush1.msra.mxu0 0.0
    %1784 = vmatprep.subr.mxu0 0.0
    %1785 = vmatpush1.msra.mxu0 0.0
    %1786 = vmatprep.subr.mxu0 0.0
    %1787 = vmatpush1.msra.mxu0 0.0
    %1788 = vmatprep.subr.mxu0 0.0
    %1789 = vmatpush1.msra.mxu0 %v197
    %1790 = vmatprep.subr.mxu0 0.0
    %1791 = vmatpush1.msra.mxu0 %v196
    %1792 = vmatprep.subr.mxu0 0.0
    %1793 = vmatpush1.msra.mxu0 %v195
    %1794 = vmatprep.subr.mxu0 0.0
    %1795 = vmatpush1.msra.mxu0 %v194
    %1796 = vmatprep.subr.mxu0 0.0
    %1797 = vmatpush2.msra.mxu0 0.0
    %1798 = vmatprep.subr.mxu0 0.0
    %1799 = vmatpush2.msra.mxu0 0.0
    %1800 = vmatprep.subr.mxu0 0.0
    %1801 = vmatpush2.msra.mxu0 0.0
    %1802 = vmatprep.subr.mxu0 0.0
    %1803 = vmatpush2.msra.mxu0 0.0
    %1804 = vmatprep.subr.mxu0 0.0
    %1805 = vmatpush2.msra.mxu0 0.0
    %1806 = vmatprep.subr.mxu0 0.0
    %1807 = vmatpush2.msra.mxu0 0.0
    %1808 = vmatprep.subr.mxu0 0.0
    %1809 = vmatpush2.msra.mxu0 0.0
    %1810 = vmatprep.subr.mxu0 0.0
    %1811 = vmatpush2.msra.mxu0 0.0
    %1812 = vmatprep.subr.mxu0 0.0
    %1813 = vmatpush2.msra.mxu0 0.0
    %1814 = vmatprep.subr.mxu0 0.0
    %1815 = vmatpush2.msra.mxu0 0.0
    %1816 = vmatprep.subr.mxu0 0.0
    %1817 = vmatpush2.msra.mxu0 0.0
    %1818 = vmatprep.subr.mxu0 0.0
    %1819 = vmatpush2.msra.mxu0 0.0
    %1820 = vmatprep.subr.mxu0 0.0
    %1821 = vmatpush2.msra.mxu0 0.0
    %1822 = vmatprep.subr.mxu0 0.0
    %1823 = vmatpush2.msra.mxu0 0.0
    %1824 = vmatprep.subr.mxu0 0.0
    %1825 = vmatpush2.msra.mxu0 0.0
    %1826 = vmatprep.subr.mxu0 0.0
    %1827 = vmatpush2.msra.mxu0 0.0
    %1828 = vmatprep.mubr.f32.mxu0 0.0
    %1829 = vmatmul.mubr.f32.gmra.mxu0 %v1762
    %v1830 = vpop.f32.mrf.mxu0
    %v1831 = vadd.f32 %v1759, %v1830
    %v1832 = vpop.f32.mrf.mxu0
    %1833 = vdwg.mxu0
    %v1835 = vlaneseq
    %v1836 = vshrl.u32 %v1835, 7
    %v1837 = vsub.s32 0, %v1836
    %v1838 = vrot.slane %v203, %v1837
    %1840 = vmatprep.subr.mxu0 0.0
    %1841 = vmatpush1.msra.mxu0 0.0
    %1842 = vmatprep.subr.mxu0 0.0
    %1843 = vmatpush1.msra.mxu0 0.0
    %1844 = vmatprep.subr.mxu0 0.0
    %1845 = vmatpush1.msra.mxu0 0.0
    %1846 = vmatprep.subr.mxu0 0.0
    %1847 = vmatpush1.msra.mxu0 0.0
    %1848 = vmatprep.subr.mxu0 0.0
    %1849 = vmatpush1.msra.mxu0 0.0
    %1850 = vmatprep.subr.mxu0 0.0
    %1851 = vmatpush1.msra.mxu0 0.0
    %1852 = vmatprep.subr.mxu0 0.0
    %1853 = vmatpush1.msra.mxu0 0.0
    %1854 = vmatprep.subr.mxu0 0.0
    %1855 = vmatpush1.msra.mxu0 0.0
    %1856 = vmatprep.subr.mxu0 0.0
    %1857 = vmatpush1.msra.mxu0 0.0
    %1858 = vmatprep.subr.mxu0 0.0
    %1859 = vmatpush1.msra.mxu0 0.0
    %1860 = vmatprep.subr.mxu0 0.0
    %1861 = vmatpush1.msra.mxu0 0.0
    %1862 = vmatprep.subr.mxu0 0.0
    %1863 = vmatpush1.msra.mxu0 0.0
    %1864 = vmatprep.subr.mxu0 0.0
    %1865 = vmatpush1.msra.mxu0 %v201
    %1866 = vmatprep.subr.mxu0 0.0
    %1867 = vmatpush1.msra.mxu0 %v200
    %1868 = vmatprep.subr.mxu0 0.0
    %1869 = vmatpush1.msra.mxu0 %v199
    %1870 = vmatprep.subr.mxu0 0.0
    %1871 = vmatpush1.msra.mxu0 %v198
    %1872 = vmatprep.subr.mxu0 0.0
    %1873 = vmatpush2.msra.mxu0 0.0
    %1874 = vmatprep.subr.mxu0 0.0
    %1875 = vmatpush2.msra.mxu0 0.0
    %1876 = vmatprep.subr.mxu0 0.0
    %1877 = vmatpush2.msra.mxu0 0.0
    %1878 = vmatprep.subr.mxu0 0.0
    %1879 = vmatpush2.msra.mxu0 0.0
    %1880 = vmatprep.subr.mxu0 0.0
    %1881 = vmatpush2.msra.mxu0 0.0
    %1882 = vmatprep.subr.mxu0 0.0
    %1883 = vmatpush2.msra.mxu0 0.0
    %1884 = vmatprep.subr.mxu0 0.0
    %1885 = vmatpush2.msra.mxu0 0.0
    %1886 = vmatprep.subr.mxu0 0.0
    %1887 = vmatpush2.msra.mxu0 0.0
    %1888 = vmatprep.subr.mxu0 0.0
    %1889 = vmatpush2.msra.mxu0 0.0
    %1890 = vmatprep.subr.mxu0 0.0
    %1891 = vmatpush2.msra.mxu0 0.0
    %1892 = vmatprep.subr.mxu0 0.0
    %1893 = vmatpush2.msra.mxu0 0.0
    %1894 = vmatprep.subr.mxu0 0.0
    %1895 = vmatpush2.msra.mxu0 0.0
    %1896 = vmatprep.subr.mxu0 0.0
    %1897 = vmatpush2.msra.mxu0 0.0
    %1898 = vmatprep.subr.mxu0 0.0
    %1899 = vmatpush2.msra.mxu0 0.0
    %1900 = vmatprep.subr.mxu0 0.0
    %1901 = vmatpush2.msra.mxu0 0.0
    %1902 = vmatprep.subr.mxu0 0.0
    %1903 = vmatpush2.msra.mxu0 0.0
    %1904 = vmatprep.mubr.f32.mxu0 0.0
    %1905 = vmatmul.mubr.f32.gmra.mxu0 %v1155
    %v1906 = vpop.f32.mrf.mxu0
    %v1907 = vadd.f32 %v1838, %v1906
    %v1908 = vpop.f32.mrf.mxu0
    %1909 = vdwg.mxu0
    %v1910 = vadd.f32 %v1831, %v1907
    %v1911 = vmul.f32 %v1910, 0.5
    %v1912 = vtanh.pop %v1911
    %v1913 = vadd.f32 %v1912, 1.0
    %v1914 = vmul.f32 %v1913, 0.5
    %1916 = vrot.lane.b32.xlu0 %v1907, 64
    %v1917 = vpop.permute.xlu0 %1916
    %v1919 = vmul.f32 %v1914, %v1917
    %1921 = vrot.lane.b32.xlu0 %v1919, 64
    %v1922 = vpop.permute.xlu0 %1921
    %v1924 = vadd.f32 %v1831, %v1922
    %v1925 = vtanh.pop %v1924
    %v1926 = vsub.f32 1.0, %v1914
    %1928 = vrot.lane.b32.xlu0 %v1925, 96
    %v1929 = vpop.permute.xlu0 %1928
    %v1931 = vmul.f32 %v1926, %v1929
    %v1932 = vmul.f32 %v1914, %v1145
    %v1933 = vadd.f32 %v1931, %v1932
    %v1935 = vlaneseq
    %v1936 = vshrl.u32 %v1935, 7
    %v1937 = vsub.s32 0, %v1936
    %v1938 = vrot.slane %v208, %v1937
    %1941 = vrot.lane.b32.xlu0 %v1933, 96
    %v1942 = vpop.permute.xlu0 %1941
    %v1943 = vsel %vm355, %v1942, 0
    %1945 = vmatprep.subr.mxu0 0.0
    %1946 = vmatpush1.msra.mxu0 0.0
    %1947 = vmatprep.subr.mxu0 0.0
    %1948 = vmatpush1.msra.mxu0 0.0
    %1949 = vmatprep.subr.mxu0 0.0
    %1950 = vmatpush1.msra.mxu0 0.0
    %1951 = vmatprep.subr.mxu0 0.0
    %1952 = vmatpush1.msra.mxu0 0.0
    %1953 = vmatprep.subr.mxu0 0.0
    %1954 = vmatpush1.msra.mxu0 0.0
    %1955 = vmatprep.subr.mxu0 0.0
    %1956 = vmatpush1.msra.mxu0 0.0
    %1957 = vmatprep.subr.mxu0 0.0
    %1958 = vmatpush1.msra.mxu0 0.0
    %1959 = vmatprep.subr.mxu0 0.0
    %1960 = vmatpush1.msra.mxu0 0.0
    %1961 = vmatprep.subr.mxu0 0.0
    %1962 = vmatpush1.msra.mxu0 0.0
    %1963 = vmatprep.subr.mxu0 0.0
    %1964 = vmatpush1.msra.mxu0 0.0
    %1965 = vmatprep.subr.mxu0 0.0
    %1966 = vmatpush1.msra.mxu0 0.0
    %1967 = vmatprep.subr.mxu0 0.0
    %1968 = vmatpush1.msra.mxu0 0.0
    %1969 = vmatprep.subr.mxu0 0.0
    %1970 = vmatpush1.msra.mxu0 %v207
    %1971 = vmatprep.subr.mxu0 0.0
    %1972 = vmatpush1.msra.mxu0 %v206
    %1973 = vmatprep.subr.mxu0 0.0
    %1974 = vmatpush1.msra.mxu0 %v205
    %1975 = vmatprep.subr.mxu0 0.0
    %1976 = vmatpush1.msra.mxu0 %v204
    %1977 = vmatprep.subr.mxu0 0.0
    %1978 = vmatpush2.msra.mxu0 0.0
    %1979 = vmatprep.subr.mxu0 0.0
    %1980 = vmatpush2.msra.mxu0 0.0
    %1981 = vmatprep.subr.mxu0 0.0
    %1982 = vmatpush2.msra.mxu0 0.0
    %1983 = vmatprep.subr.mxu0 0.0
    %1984 = vmatpush2.msra.mxu0 0.0
    %1985 = vmatprep.subr.mxu0 0.0
    %1986 = vmatpush2.msra.mxu0 0.0
    %1987 = vmatprep.subr.mxu0 0.0
    %1988 = vmatpush2.msra.mxu0 0.0
    %1989 = vmatprep.subr.mxu0 0.0
    %1990 = vmatpush2.msra.mxu0 0.0
    %1991 = vmatprep.subr.mxu0 0.0
    %1992 = vmatpush2.msra.mxu0 0.0
    %1993 = vmatprep.subr.mxu0 0.0
    %1994 = vmatpush2.msra.mxu0 0.0
    %1995 = vmatprep.subr.mxu0 0.0
    %1996 = vmatpush2.msra.mxu0 0.0
    %1997 = vmatprep.subr.mxu0 0.0
    %1998 = vmatpush2.msra.mxu0 0.0
    %1999 = vmatprep.subr.mxu0 0.0
    %2000 = vmatpush2.msra.mxu0 0.0
    %2001 = vmatprep.subr.mxu0 0.0
    %2002 = vmatpush2.msra.mxu0 0.0
    %2003 = vmatprep.subr.mxu0 0.0
    %2004 = vmatpush2.msra.mxu0 0.0
    %2005 = vmatprep.subr.mxu0 0.0
    %2006 = vmatpush2.msra.mxu0 0.0
    %2007 = vmatprep.subr.mxu0 0.0
    %2008 = vmatpush2.msra.mxu0 0.0
    %2009 = vmatprep.mubr.f32.mxu0 0.0
    %2010 = vmatmul.mubr.f32.gmra.mxu0 %v1943
    %v2011 = vpop.f32.mrf.mxu0
    %v2012 = vadd.f32 %v1938, %v2011
    %v2013 = vpop.f32.mrf.mxu0
    %2014 = vdwg.mxu0
    %2015 = vst.msk [vmem:[%s18] sm:$0xff] %vm215, %v2012
    %v2017 = vsel %vm215, %v2012, 0
    %2019 = vmatprep.subr.mxu0 0.0
    %2020 = vmatpush1.msra.mxu0 0.0
    %2021 = vmatprep.subr.mxu0 0.0
    %2022 = vmatpush1.msra.mxu0 0.0
    %2023 = vmatprep.subr.mxu0 0.0
    %2024 = vmatpush1.msra.mxu0 0.0
    %2025 = vmatprep.subr.mxu0 0.0
    %2026 = vmatpush1.msra.mxu0 0.0
    %2027 = vmatprep.subr.mxu0 0.0
    %2028 = vmatpush1.msra.mxu0 0.0
    %2029 = vmatprep.subr.mxu0 0.0
    %2030 = vmatpush1.msra.mxu0 0.0
    %2031 = vmatprep.subr.mxu0 0.0
    %2032 = vmatpush1.msra.mxu0 0.0
    %2033 = vmatprep.subr.mxu0 0.0
    %2034 = vmatpush1.msra.mxu0 0.0
    %2035 = vmatprep.subr.mxu0 0.0
    %2036 = vmatpush1.msra.mxu0 0.0
    %2037 = vmatprep.subr.mxu0 0.0
    %2038 = vmatpush1.msra.mxu0 0.0
    %2039 = vmatprep.subr.mxu0 0.0
    %2040 = vmatpush1.msra.mxu0 0.0
    %2041 = vmatprep.subr.mxu0 0.0
    %2042 = vmatpush1.msra.mxu0 0.0
    %2043 = vmatprep.subr.mxu0 0.0
    %2044 = vmatpush1.msra.mxu0 0.0
    %2045 = vmatprep.subr.mxu0 0.0
    %2046 = vmatpush1.msra.mxu0 0.0
    %2047 = vmatprep.subr.mxu0 0.0
    %2048 = vmatpush1.msra.mxu0 0.0
    %2049 = vmatprep.subr.mxu0 0.0
    %2050 = vmatpush1.msra.mxu0 %v1681
    %2051 = vmatprep.subr.mxu0 0.0
    %2052 = vmatpush2.msra.mxu0 0.0
    %2053 = vmatprep.subr.mxu0 0.0
    %2054 = vmatpush2.msra.mxu0 0.0
    %2055 = vmatprep.subr.mxu0 0.0
    %2056 = vmatpush2.msra.mxu0 0.0
    %2057 = vmatprep.subr.mxu0 0.0
    %2058 = vmatpush2.msra.mxu0 0.0
    %2059 = vmatprep.subr.mxu0 0.0
    %2060 = vmatpush2.msra.mxu0 0.0
    %2061 = vmatprep.subr.mxu0 0.0
    %2062 = vmatpush2.msra.mxu0 0.0
    %2063 = vmatprep.subr.mxu0 0.0
    %2064 = vmatpush2.msra.mxu0 0.0
    %2065 = vmatprep.subr.mxu0 0.0
    %2066 = vmatpush2.msra.mxu0 0.0
    %2067 = vmatprep.subr.mxu0 0.0
    %2068 = vmatpush2.msra.mxu0 0.0
    %2069 = vmatprep.subr.mxu0 0.0
    %2070 = vmatpush2.msra.mxu0 0.0
    %2071 = vmatprep.subr.mxu0 0.0
    %2072 = vmatpush2.msra.mxu0 0.0
    %2073 = vmatprep.subr.mxu0 0.0
    %2074 = vmatpush2.msra.mxu0 0.0
    %2075 = vmatprep.subr.mxu0 0.0
    %2076 = vmatpush2.msra.mxu0 0.0
    %2077 = vmatprep.subr.mxu0 0.0
    %2078 = vmatpush2.msra.mxu0 0.0
    %2079 = vmatprep.subr.mxu0 0.0
    %2080 = vmatpush2.msra.mxu0 0.0
    %2081 = vmatprep.subr.mxu0 0.0
    %2082 = vmatpush2.msra.mxu0 0.0
    %2083 = vmatprep.mubr.f32.mxu0 0.0
    %2084 = vmatmul.mubr.f32.gmra.mxu0 %v2017
    %v2085 = vpop.f32.mrf.mxu0
    %v2086 = vadd.f32 %v1678, %v2085
    %v2087 = vpop.f32.mrf.mxu0
    %2088 = vdwg.mxu0
    %v2089 = vtanh.pop %v2086
    %v2090 = vadd.f32 %v1673, %v2089
    %v2092 = vsel %vm355, %v2090, 0
    %2094 = vmatprep.subr.mxu0 0.0
    %2095 = vmatpush1.msra.mxu0 0.0
    %2096 = vmatprep.subr.mxu0 0.0
    %2097 = vmatpush1.msra.mxu0 0.0
    %2098 = vmatprep.subr.mxu0 0.0
    %2099 = vmatpush1.msra.mxu0 0.0
    %2100 = vmatprep.subr.mxu0 0.0
    %2101 = vmatpush1.msra.mxu0 0.0
    %2102 = vmatprep.subr.mxu0 0.0
    %2103 = vmatpush1.msra.mxu0 0.0
    %2104 = vmatprep.subr.mxu0 0.0
    %2105 = vmatpush1.msra.mxu0 0.0
    %2106 = vmatprep.subr.mxu0 0.0
    %2107 = vmatpush1.msra.mxu0 0.0
    %2108 = vmatprep.subr.mxu0 0.0
    %2109 = vmatpush1.msra.mxu0 0.0
    %2110 = vmatprep.subr.mxu0 0.0
    %2111 = vmatpush1.msra.mxu0 0.0
    %2112 = vmatprep.subr.mxu0 0.0
    %2113 = vmatpush1.msra.mxu0 0.0
    %2114 = vmatprep.subr.mxu0 0.0
    %2115 = vmatpush1.msra.mxu0 0.0
    %2116 = vmatprep.subr.mxu0 0.0
    %2117 = vmatpush1.msra.mxu0 0.0
    %2118 = vmatprep.subr.mxu0 0.0
    %2119 = vmatpush1.msra.mxu0 %v197
    %2120 = vmatprep.subr.mxu0 0.0
    %2121 = vmatpush1.msra.mxu0 %v196
    %2122 = vmatprep.subr.mxu0 0.0
    %2123 = vmatpush1.msra.mxu0 %v195
    %2124 = vmatprep.subr.mxu0 0.0
    %2125 = vmatpush1.msra.mxu0 %v194
    %2126 = vmatprep.subr.mxu0 0.0
    %2127 = vmatpush2.msra.mxu0 0.0
    %2128 = vmatprep.subr.mxu0 0.0
    %2129 = vmatpush2.msra.mxu0 0.0
    %2130 = vmatprep.subr.mxu0 0.0
    %2131 = vmatpush2.msra.mxu0 0.0
    %2132 = vmatprep.subr.mxu0 0.0
    %2133 = vmatpush2.msra.mxu0 0.0
    %2134 = vmatprep.subr.mxu0 0.0
    %2135 = vmatpush2.msra.mxu0 0.0
    %2136 = vmatprep.subr.mxu0 0.0
    %2137 = vmatpush2.msra.mxu0 0.0
    %2138 = vmatprep.subr.mxu0 0.0
    %2139 = vmatpush2.msra.mxu0 0.0
    %2140 = vmatprep.subr.mxu0 0.0
    %2141 = vmatpush2.msra.mxu0 0.0
    %2142 = vmatprep.subr.mxu0 0.0
    %2143 = vmatpush2.msra.mxu0 0.0
    %2144 = vmatprep.subr.mxu0 0.0
    %2145 = vmatpush2.msra.mxu0 0.0
    %2146 = vmatprep.subr.mxu0 0.0
    %2147 = vmatpush2.msra.mxu0 0.0
    %2148 = vmatprep.subr.mxu0 0.0
    %2149 = vmatpush2.msra.mxu0 0.0
    %2150 = vmatprep.subr.mxu0 0.0
    %2151 = vmatpush2.msra.mxu0 0.0
    %2152 = vmatprep.subr.mxu0 0.0
    %2153 = vmatpush2.msra.mxu0 0.0
    %2154 = vmatprep.subr.mxu0 0.0
    %2155 = vmatpush2.msra.mxu0 0.0
    %2156 = vmatprep.subr.mxu0 0.0
    %2157 = vmatpush2.msra.mxu0 0.0
    %2158 = vmatprep.mubr.f32.mxu0 0.0
    %2159 = vmatmul.mubr.f32.gmra.mxu0 %v2092
    %v2160 = vpop.f32.mrf.mxu0
    %v2161 = vadd.f32 %v1759, %v2160
    %v2162 = vpop.f32.mrf.mxu0
    %2163 = vdwg.mxu0
    %2164 = vmatprep.subr.mxu0 0.0
    %2165 = vmatpush1.msra.mxu0 0.0
    %2166 = vmatprep.subr.mxu0 0.0
    %2167 = vmatpush1.msra.mxu0 0.0
    %2168 = vmatprep.subr.mxu0 0.0
    %2169 = vmatpush1.msra.mxu0 0.0
    %2170 = vmatprep.subr.mxu0 0.0
    %2171 = vmatpush1.msra.mxu0 0.0
    %2172 = vmatprep.subr.mxu0 0.0
    %2173 = vmatpush1.msra.mxu0 0.0
    %2174 = vmatprep.subr.mxu0 0.0
    %2175 = vmatpush1.msra.mxu0 0.0
    %2176 = vmatprep.subr.mxu0 0.0
    %2177 = vmatpush1.msra.mxu0 0.0
    %2178 = vmatprep.subr.mxu0 0.0
    %2179 = vmatpush1.msra.mxu0 0.0
    %2180 = vmatprep.subr.mxu0 0.0
    %2181 = vmatpush1.msra.mxu0 0.0
    %2182 = vmatprep.subr.mxu0 0.0
    %2183 = vmatpush1.msra.mxu0 0.0
    %2184 = vmatprep.subr.mxu0 0.0
    %2185 = vmatpush1.msra.mxu0 0.0
    %2186 = vmatprep.subr.mxu0 0.0
    %2187 = vmatpush1.msra.mxu0 0.0
    %2188 = vmatprep.subr.mxu0 0.0
    %2189 = vmatpush1.msra.mxu0 %v201
    %2190 = vmatprep.subr.mxu0 0.0
    %2191 = vmatpush1.msra.mxu0 %v200
    %2192 = vmatprep.subr.mxu0 0.0
    %2193 = vmatpush1.msra.mxu0 %v199
    %2194 = vmatprep.subr.mxu0 0.0
    %2195 = vmatpush1.msra.mxu0 %v198
    %2196 = vmatprep.subr.mxu0 0.0
    %2197 = vmatpush2.msra.mxu0 0.0
    %2198 = vmatprep.subr.mxu0 0.0
    %2199 = vmatpush2.msra.mxu0 0.0
    %2200 = vmatprep.subr.mxu0 0.0
    %2201 = vmatpush2.msra.mxu0 0.0
    %2202 = vmatprep.subr.mxu0 0.0
    %2203 = vmatpush2.msra.mxu0 0.0
    %2204 = vmatprep.subr.mxu0 0.0
    %2205 = vmatpush2.msra.mxu0 0.0
    %2206 = vmatprep.subr.mxu0 0.0
    %2207 = vmatpush2.msra.mxu0 0.0
    %2208 = vmatprep.subr.mxu0 0.0
    %2209 = vmatpush2.msra.mxu0 0.0
    %2210 = vmatprep.subr.mxu0 0.0
    %2211 = vmatpush2.msra.mxu0 0.0
    %2212 = vmatprep.subr.mxu0 0.0
    %2213 = vmatpush2.msra.mxu0 0.0
    %2214 = vmatprep.subr.mxu0 0.0
    %2215 = vmatpush2.msra.mxu0 0.0
    %2216 = vmatprep.subr.mxu0 0.0
    %2217 = vmatpush2.msra.mxu0 0.0
    %2218 = vmatprep.subr.mxu0 0.0
    %2219 = vmatpush2.msra.mxu0 0.0
    %2220 = vmatprep.subr.mxu0 0.0
    %2221 = vmatpush2.msra.mxu0 0.0
    %2222 = vmatprep.subr.mxu0 0.0
    %2223 = vmatpush2.msra.mxu0 0.0
    %2224 = vmatprep.subr.mxu0 0.0
    %2225 = vmatpush2.msra.mxu0 0.0
    %2226 = vmatprep.subr.mxu0 0.0
    %2227 = vmatpush2.msra.mxu0 0.0
    %2228 = vmatprep.mubr.f32.mxu0 0.0
    %2229 = vmatmul.mubr.f32.gmra.mxu0 %v1943
    %v2230 = vpop.f32.mrf.mxu0
    %v2231 = vadd.f32 %v1838, %v2230
    %v2232 = vpop.f32.mrf.mxu0
    %2233 = vdwg.mxu0
    %v2234 = vadd.f32 %v2161, %v2231
    %v2235 = vmul.f32 %v2234, 0.5
    %v2236 = vtanh.pop %v2235
    %v2237 = vadd.f32 %v2236, 1.0
    %v2238 = vmul.f32 %v2237, 0.5
    %2240 = vrot.lane.b32.xlu0 %v2231, 64
    %v2241 = vpop.permute.xlu0 %2240
    %v2243 = vmul.f32 %v2238, %v2241
    %2245 = vrot.lane.b32.xlu0 %v2243, 64
    %v2246 = vpop.permute.xlu0 %2245
    %v2248 = vadd.f32 %v2161, %v2246
    %v2249 = vtanh.pop %v2248
    %v2250 = vsub.f32 1.0, %v2238
    %2252 = vrot.lane.b32.xlu0 %v2249, 96
    %v2253 = vpop.permute.xlu0 %2252
    %v2255 = vmul.f32 %v2250, %v2253
    %v2256 = vmul.f32 %v2238, %v1933
    %v2257 = vadd.f32 %v2255, %v2256
    %2259 = vrot.lane.b32.xlu0 %v2257, 96
    %v2260 = vpop.permute.xlu0 %2259
    %v2261 = vsel %vm355, %v2260, 0
    %2263 = vmatprep.subr.mxu0 0.0
    %2264 = vmatpush1.msra.mxu0 0.0
    %2265 = vmatprep.subr.mxu0 0.0
    %2266 = vmatpush1.msra.mxu0 0.0
    %2267 = vmatprep.subr.mxu0 0.0
    %2268 = vmatpush1.msra.mxu0 0.0
    %2269 = vmatprep.subr.mxu0 0.0
    %2270 = vmatpush1.msra.mxu0 0.0
    %2271 = vmatprep.subr.mxu0 0.0
    %2272 = vmatpush1.msra.mxu0 0.0
    %2273 = vmatprep.subr.mxu0 0.0
    %2274 = vmatpush1.msra.mxu0 0.0
    %2275 = vmatprep.subr.mxu0 0.0
    %2276 = vmatpush1.msra.mxu0 0.0
    %2277 = vmatprep.subr.mxu0 0.0
    %2278 = vmatpush1.msra.mxu0 0.0
    %2279 = vmatprep.subr.mxu0 0.0
    %2280 = vmatpush1.msra.mxu0 0.0
    %2281 = vmatprep.subr.mxu0 0.0
    %2282 = vmatpush1.msra.mxu0 0.0
    %2283 = vmatprep.subr.mxu0 0.0
    %2284 = vmatpush1.msra.mxu0 0.0
    %2285 = vmatprep.subr.mxu0 0.0
    %2286 = vmatpush1.msra.mxu0 0.0
    %2287 = vmatprep.subr.mxu0 0.0
    %2288 = vmatpush1.msra.mxu0 %v207
    %2289 = vmatprep.subr.mxu0 0.0
    %2290 = vmatpush1.msra.mxu0 %v206
    %2291 = vmatprep.subr.mxu0 0.0
    %2292 = vmatpush1.msra.mxu0 %v205
    %2293 = vmatprep.subr.mxu0 0.0
    %2294 = vmatpush1.msra.mxu0 %v204
    %2295 = vmatprep.subr.mxu0 0.0
    %2296 = vmatpush2.msra.mxu0 0.0
    %2297 = vmatprep.subr.mxu0 0.0
    %2298 = vmatpush2.msra.mxu0 0.0
    %2299 = vmatprep.subr.mxu0 0.0
    %2300 = vmatpush2.msra.mxu0 0.0
    %2301 = vmatprep.subr.mxu0 0.0
    %2302 = vmatpush2.msra.mxu0 0.0
    %2303 = vmatprep.subr.mxu0 0.0
    %2304 = vmatpush2.msra.mxu0 0.0
    %2305 = vmatprep.subr.mxu0 0.0
    %2306 = vmatpush2.msra.mxu0 0.0
    %2307 = vmatprep.subr.mxu0 0.0
    %2308 = vmatpush2.msra.mxu0 0.0
    %2309 = vmatprep.subr.mxu0 0.0
    %2310 = vmatpush2.msra.mxu0 0.0
    %2311 = vmatprep.subr.mxu0 0.0
    %2312 = vmatpush2.msra.mxu0 0.0
    %2313 = vmatprep.subr.mxu0 0.0
    %2314 = vmatpush2.msra.mxu0 0.0
    %2315 = vmatprep.subr.mxu0 0.0
    %2316 = vmatpush2.msra.mxu0 0.0
    %2317 = vmatprep.subr.mxu0 0.0
    %2318 = vmatpush2.msra.mxu0 0.0
    %2319 = vmatprep.subr.mxu0 0.0
    %2320 = vmatpush2.msra.mxu0 0.0
    %2321 = vmatprep.subr.mxu0 0.0
    %2322 = vmatpush2.msra.mxu0 0.0
    %2323 = vmatprep.subr.mxu0 0.0
    %2324 = vmatpush2.msra.mxu0 0.0
    %2325 = vmatprep.subr.mxu0 0.0
    %2326 = vmatpush2.msra.mxu0 0.0
    %2327 = vmatprep.mubr.f32.mxu0 0.0
    %2328 = vmatmul.mubr.f32.gmra.mxu0 %v2261
    %v2329 = vpop.f32.mrf.mxu0
    %v2330 = vadd.f32 %v1938, %v2329
    %v2331 = vpop.f32.mrf.mxu0
    %2332 = vdwg.mxu0
    %s2333 = scalar_lea.vmem %s18, 8
    %2334 = vst.msk [vmem:[%s2333] sm:$0xff] %vm215, %v2330
    %v2336 = vsel %vm215, %v2330, 0
    %2338 = vmatprep.subr.mxu0 0.0
    %2339 = vmatpush1.msra.mxu0 0.0
    %2340 = vmatprep.subr.mxu0 0.0
    %2341 = vmatpush1.msra.mxu0 0.0
    %2342 = vmatprep.subr.mxu0 0.0
    %2343 = vmatpush1.msra.mxu0 0.0
    %2344 = vmatprep.subr.mxu0 0.0
    %2345 = vmatpush1.msra.mxu0 0.0
    %2346 = vmatprep.subr.mxu0 0.0
    %2347 = vmatpush1.msra.mxu0 0.0
    %2348 = vmatprep.subr.mxu0 0.0
    %2349 = vmatpush1.msra.mxu0 0.0
    %2350 = vmatprep.subr.mxu0 0.0
    %2351 = vmatpush1.msra.mxu0 0.0
    %2352 = vmatprep.subr.mxu0 0.0
    %2353 = vmatpush1.msra.mxu0 0.0
    %2354 = vmatprep.subr.mxu0 0.0
    %2355 = vmatpush1.msra.mxu0 0.0
    %2356 = vmatprep.subr.mxu0 0.0
    %2357 = vmatpush1.msra.mxu0 0.0
    %2358 = vmatprep.subr.mxu0 0.0
    %2359 = vmatpush1.msra.mxu0 0.0
    %2360 = vmatprep.subr.mxu0 0.0
    %2361 = vmatpush1.msra.mxu0 0.0
    %2362 = vmatprep.subr.mxu0 0.0
    %2363 = vmatpush1.msra.mxu0 0.0
    %2364 = vmatprep.subr.mxu0 0.0
    %2365 = vmatpush1.msra.mxu0 0.0
    %2366 = vmatprep.subr.mxu0 0.0
    %2367 = vmatpush1.msra.mxu0 0.0
    %2368 = vmatprep.subr.mxu0 0.0
    %2369 = vmatpush1.msra.mxu0 %v1681
    %2370 = vmatprep.subr.mxu0 0.0
    %2371 = vmatpush2.msra.mxu0 0.0
    %2372 = vmatprep.subr.mxu0 0.0
    %2373 = vmatpush2.msra.mxu0 0.0
    %2374 = vmatprep.subr.mxu0 0.0
    %2375 = vmatpush2.msra.mxu0 0.0
    %2376 = vmatprep.subr.mxu0 0.0
    %2377 = vmatpush2.msra.mxu0 0.0
    %2378 = vmatprep.subr.mxu0 0.0
    %2379 = vmatpush2.msra.mxu0 0.0
    %2380 = vmatprep.subr.mxu0 0.0
    %2381 = vmatpush2.msra.mxu0 0.0
    %2382 = vmatprep.subr.mxu0 0.0
    %2383 = vmatpush2.msra.mxu0 0.0
    %2384 = vmatprep.subr.mxu0 0.0
    %2385 = vmatpush2.msra.mxu0 0.0
    %2386 = vmatprep.subr.mxu0 0.0
    %2387 = vmatpush2.msra.mxu0 0.0
    %2388 = vmatprep.subr.mxu0 0.0
    %2389 = vmatpush2.msra.mxu0 0.0
    %2390 = vmatprep.subr.mxu0 0.0
    %2391 = vmatpush2.msra.mxu0 0.0
    %2392 = vmatprep.subr.mxu0 0.0
    %2393 = vmatpush2.msra.mxu0 0.0
    %2394 = vmatprep.subr.mxu0 0.0
    %2395 = vmatpush2.msra.mxu0 0.0
    %2396 = vmatprep.subr.mxu0 0.0
    %2397 = vmatpush2.msra.mxu0 0.0
    %2398 = vmatprep.subr.mxu0 0.0
    %2399 = vmatpush2.msra.mxu0 0.0
    %2400 = vmatprep.subr.mxu0 0.0
    %2401 = vmatpush2.msra.mxu0 0.0
    %2402 = vmatprep.mubr.f32.mxu0 0.0
    %2403 = vmatmul.mubr.f32.gmra.mxu0 %v2336
    %v2404 = vpop.f32.mrf.mxu0
    %v2405 = vadd.f32 %v1678, %v2404
    %v2406 = vpop.f32.mrf.mxu0
    %2407 = vdwg.mxu0
    %v2408 = vtanh.pop %v2405
    %v2409 = vadd.f32 %v1673, %v2408
    %v2411 = vsel %vm355, %v2409, 0
    %2413 = vmatprep.subr.mxu0 0.0
    %2414 = vmatpush1.msra.mxu0 0.0
    %2415 = vmatprep.subr.mxu0 0.0
    %2416 = vmatpush1.msra.mxu0 0.0
    %2417 = vmatprep.subr.mxu0 0.0
    %2418 = vmatpush1.msra.mxu0 0.0
    %2419 = vmatprep.subr.mxu0 0.0
    %2420 = vmatpush1.msra.mxu0 0.0
    %2421 = vmatprep.subr.mxu0 0.0
    %2422 = vmatpush1.msra.mxu0 0.0
    %2423 = vmatprep.subr.mxu0 0.0
    %2424 = vmatpush1.msra.mxu0 0.0
    %2425 = vmatprep.subr.mxu0 0.0
    %2426 = vmatpush1.msra.mxu0 0.0
    %2427 = vmatprep.subr.mxu0 0.0
    %2428 = vmatpush1.msra.mxu0 0.0
    %2429 = vmatprep.subr.mxu0 0.0
    %2430 = vmatpush1.msra.mxu0 0.0
    %2431 = vmatprep.subr.mxu0 0.0
    %2432 = vmatpush1.msra.mxu0 0.0
    %2433 = vmatprep.subr.mxu0 0.0
    %2434 = vmatpush1.msra.mxu0 0.0
    %2435 = vmatprep.subr.mxu0 0.0
    %2436 = vmatpush1.msra.mxu0 0.0
    %2437 = vmatprep.subr.mxu0 0.0
    %2438 = vmatpush1.msra.mxu0 %v197
    %2439 = vmatprep.subr.mxu0 0.0
    %2440 = vmatpush1.msra.mxu0 %v196
    %2441 = vmatprep.subr.mxu0 0.0
    %2442 = vmatpush1.msra.mxu0 %v195
    %2443 = vmatprep.subr.mxu0 0.0
    %2444 = vmatpush1.msra.mxu0 %v194
    %2445 = vmatprep.subr.mxu0 0.0
    %2446 = vmatpush2.msra.mxu0 0.0
    %2447 = vmatprep.subr.mxu0 0.0
    %2448 = vmatpush2.msra.mxu0 0.0
    %2449 = vmatprep.subr.mxu0 0.0
    %2450 = vmatpush2.msra.mxu0 0.0
    %2451 = vmatprep.subr.mxu0 0.0
    %2452 = vmatpush2.msra.mxu0 0.0
    %2453 = vmatprep.subr.mxu0 0.0
    %2454 = vmatpush2.msra.mxu0 0.0
    %2455 = vmatprep.subr.mxu0 0.0
    %2456 = vmatpush2.msra.mxu0 0.0
    %2457 = vmatprep.subr.mxu0 0.0
    %2458 = vmatpush2.msra.mxu0 0.0
    %2459 = vmatprep.subr.mxu0 0.0
    %2460 = vmatpush2.msra.mxu0 0.0
    %2461 = vmatprep.subr.mxu0 0.0
    %2462 = vmatpush2.msra.mxu0 0.0
    %2463 = vmatprep.subr.mxu0 0.0
    %2464 = vmatpush2.msra.mxu0 0.0
    %2465 = vmatprep.subr.mxu0 0.0
    %2466 = vmatpush2.msra.mxu0 0.0
    %2467 = vmatprep.subr.mxu0 0.0
    %2468 = vmatpush2.msra.mxu0 0.0
    %2469 = vmatprep.subr.mxu0 0.0
    %2470 = vmatpush2.msra.mxu0 0.0
    %2471 = vmatprep.subr.mxu0 0.0
    %2472 = vmatpush2.msra.mxu0 0.0
    %2473 = vmatprep.subr.mxu0 0.0
    %2474 = vmatpush2.msra.mxu0 0.0
    %2475 = vmatprep.subr.mxu0 0.0
    %2476 = vmatpush2.msra.mxu0 0.0
    %2477 = vmatprep.mubr.f32.mxu0 0.0
    %2478 = vmatmul.mubr.f32.gmra.mxu0 %v2411
    %v2479 = vpop.f32.mrf.mxu0
    %v2480 = vadd.f32 %v1759, %v2479
    %v2481 = vpop.f32.mrf.mxu0
    %2482 = vdwg.mxu0
    %2483 = vmatprep.subr.mxu0 0.0
    %2484 = vmatpush1.msra.mxu0 0.0
    %2485 = vmatprep.subr.mxu0 0.0
    %2486 = vmatpush1.msra.mxu0 0.0
    %2487 = vmatprep.subr.mxu0 0.0
    %2488 = vmatpush1.msra.mxu0 0.0
    %2489 = vmatprep.subr.mxu0 0.0
    %2490 = vmatpush1.msra.mxu0 0.0
    %2491 = vmatprep.subr.mxu0 0.0
    %2492 = vmatpush1.msra.mxu0 0.0
    %2493 = vmatprep.subr.mxu0 0.0
    %2494 = vmatpush1.msra.mxu0 0.0
    %2495 = vmatprep.subr.mxu0 0.0
    %2496 = vmatpush1.msra.mxu0 0.0
    %2497 = vmatprep.subr.mxu0 0.0
    %2498 = vmatpush1.msra.mxu0 0.0
    %2499 = vmatprep.subr.mxu0 0.0
    %2500 = vmatpush1.msra.mxu0 0.0
    %2501 = vmatprep.subr.mxu0 0.0
    %2502 = vmatpush1.msra.mxu0 0.0
    %2503 = vmatprep.subr.mxu0 0.0
    %2504 = vmatpush1.msra.mxu0 0.0
    %2505 = vmatprep.subr.mxu0 0.0
    %2506 = vmatpush1.msra.mxu0 0.0
    %2507 = vmatprep.subr.mxu0 0.0
    %2508 = vmatpush1.msra.mxu0 %v201
    %2509 = vmatprep.subr.mxu0 0.0
    %2510 = vmatpush1.msra.mxu0 %v200
    %2511 = vmatprep.subr.mxu0 0.0
    %2512 = vmatpush1.msra.mxu0 %v199
    %2513 = vmatprep.subr.mxu0 0.0
    %2514 = vmatpush1.msra.mxu0 %v198
    %2515 = vmatprep.subr.mxu0 0.0
    %2516 = vmatpush2.msra.mxu0 0.0
    %2517 = vmatprep.subr.mxu0 0.0
    %2518 = vmatpush2.msra.mxu0 0.0
    %2519 = vmatprep.subr.mxu0 0.0
    %2520 = vmatpush2.msra.mxu0 0.0
    %2521 = vmatprep.subr.mxu0 0.0
    %2522 = vmatpush2.msra.mxu0 0.0
    %2523 = vmatprep.subr.mxu0 0.0
    %2524 = vmatpush2.msra.mxu0 0.0
    %2525 = vmatprep.subr.mxu0 0.0
    %2526 = vmatpush2.msra.mxu0 0.0
    %2527 = vmatprep.subr.mxu0 0.0
    %2528 = vmatpush2.msra.mxu0 0.0
    %2529 = vmatprep.subr.mxu0 0.0
    %2530 = vmatpush2.msra.mxu0 0.0
    %2531 = vmatprep.subr.mxu0 0.0
    %2532 = vmatpush2.msra.mxu0 0.0
    %2533 = vmatprep.subr.mxu0 0.0
    %2534 = vmatpush2.msra.mxu0 0.0
    %2535 = vmatprep.subr.mxu0 0.0
    %2536 = vmatpush2.msra.mxu0 0.0
    %2537 = vmatprep.subr.mxu0 0.0
    %2538 = vmatpush2.msra.mxu0 0.0
    %2539 = vmatprep.subr.mxu0 0.0
    %2540 = vmatpush2.msra.mxu0 0.0
    %2541 = vmatprep.subr.mxu0 0.0
    %2542 = vmatpush2.msra.mxu0 0.0
    %2543 = vmatprep.subr.mxu0 0.0
    %2544 = vmatpush2.msra.mxu0 0.0
    %2545 = vmatprep.subr.mxu0 0.0
    %2546 = vmatpush2.msra.mxu0 0.0
    %2547 = vmatprep.mubr.f32.mxu0 0.0
    %2548 = vmatmul.mubr.f32.gmra.mxu0 %v2261
    %v2549 = vpop.f32.mrf.mxu0
    %v2550 = vadd.f32 %v1838, %v2549
    %v2551 = vpop.f32.mrf.mxu0
    %2552 = vdwg.mxu0
    %v2553 = vadd.f32 %v2480, %v2550
    %v2554 = vmul.f32 %v2553, 0.5
    %v2555 = vtanh.pop %v2554
    %v2556 = vadd.f32 %v2555, 1.0
    %v2557 = vmul.f32 %v2556, 0.5
    %2559 = vrot.lane.b32.xlu0 %v2550, 64
    %v2560 = vpop.permute.xlu0 %2559
    %v2562 = vmul.f32 %v2557, %v2560
    %2564 = vrot.lane.b32.xlu0 %v2562, 64
    %v2565 = vpop.permute.xlu0 %2564
    %v2567 = vadd.f32 %v2480, %v2565
    %v2568 = vtanh.pop %v2567
    %v2569 = vsub.f32 1.0, %v2557
    %2571 = vrot.lane.b32.xlu0 %v2568, 96
    %v2572 = vpop.permute.xlu0 %2571
    %v2574 = vmul.f32 %v2569, %v2572
    %v2575 = vmul.f32 %v2557, %v2257
    %v2576 = vadd.f32 %v2574, %v2575
    %2578 = vrot.lane.b32.xlu0 %v2576, 96
    %v2579 = vpop.permute.xlu0 %2578
    %v2580 = vsel %vm355, %v2579, 0
    %2582 = vmatprep.subr.mxu0 0.0
    %2583 = vmatpush1.msra.mxu0 0.0
    %2584 = vmatprep.subr.mxu0 0.0
    %2585 = vmatpush1.msra.mxu0 0.0
    %2586 = vmatprep.subr.mxu0 0.0
    %2587 = vmatpush1.msra.mxu0 0.0
    %2588 = vmatprep.subr.mxu0 0.0
    %2589 = vmatpush1.msra.mxu0 0.0
    %2590 = vmatprep.subr.mxu0 0.0
    %2591 = vmatpush1.msra.mxu0 0.0
    %2592 = vmatprep.subr.mxu0 0.0
    %2593 = vmatpush1.msra.mxu0 0.0
    %2594 = vmatprep.subr.mxu0 0.0
    %2595 = vmatpush1.msra.mxu0 0.0
    %2596 = vmatprep.subr.mxu0 0.0
    %2597 = vmatpush1.msra.mxu0 0.0
    %2598 = vmatprep.subr.mxu0 0.0
    %2599 = vmatpush1.msra.mxu0 0.0
    %2600 = vmatprep.subr.mxu0 0.0
    %2601 = vmatpush1.msra.mxu0 0.0
    %2602 = vmatprep.subr.mxu0 0.0
    %2603 = vmatpush1.msra.mxu0 0.0
    %2604 = vmatprep.subr.mxu0 0.0
    %2605 = vmatpush1.msra.mxu0 0.0
    %2606 = vmatprep.subr.mxu0 0.0
    %2607 = vmatpush1.msra.mxu0 %v207
    %2608 = vmatprep.subr.mxu0 0.0
    %2609 = vmatpush1.msra.mxu0 %v206
    %2610 = vmatprep.subr.mxu0 0.0
    %2611 = vmatpush1.msra.mxu0 %v205
    %2612 = vmatprep.subr.mxu0 0.0
    %2613 = vmatpush1.msra.mxu0 %v204
    %2614 = vmatprep.subr.mxu0 0.0
    %2615 = vmatpush2.msra.mxu0 0.0
    %2616 = vmatprep.subr.mxu0 0.0
    %2617 = vmatpush2.msra.mxu0 0.0
    %2618 = vmatprep.subr.mxu0 0.0
    %2619 = vmatpush2.msra.mxu0 0.0
    %2620 = vmatprep.subr.mxu0 0.0
    %2621 = vmatpush2.msra.mxu0 0.0
    %2622 = vmatprep.subr.mxu0 0.0
    %2623 = vmatpush2.msra.mxu0 0.0
    %2624 = vmatprep.subr.mxu0 0.0
    %2625 = vmatpush2.msra.mxu0 0.0
    %2626 = vmatprep.subr.mxu0 0.0
    %2627 = vmatpush2.msra.mxu0 0.0
    %2628 = vmatprep.subr.mxu0 0.0
    %2629 = vmatpush2.msra.mxu0 0.0
    %2630 = vmatprep.subr.mxu0 0.0
    %2631 = vmatpush2.msra.mxu0 0.0
    %2632 = vmatprep.subr.mxu0 0.0
    %2633 = vmatpush2.msra.mxu0 0.0
    %2634 = vmatprep.subr.mxu0 0.0
    %2635 = vmatpush2.msra.mxu0 0.0
    %2636 = vmatprep.subr.mxu0 0.0
    %2637 = vmatpush2.msra.mxu0 0.0
    %2638 = vmatprep.subr.mxu0 0.0
    %2639 = vmatpush2.msra.mxu0 0.0
    %2640 = vmatprep.subr.mxu0 0.0
    %2641 = vmatpush2.msra.mxu0 0.0
    %2642 = vmatprep.subr.mxu0 0.0
    %2643 = vmatpush2.msra.mxu0 0.0
    %2644 = vmatprep.subr.mxu0 0.0
    %2645 = vmatpush2.msra.mxu0 0.0
    %2646 = vmatprep.mubr.f32.mxu0 0.0
    %2647 = vmatmul.mubr.f32.gmra.mxu0 %v2580
    %v2648 = vpop.f32.mrf.mxu0
    %v2649 = vadd.f32 %v1938, %v2648
    %v2650 = vpop.f32.mrf.mxu0
    %2651 = vdwg.mxu0
    %s2652 = scalar_lea.vmem %s18, 16
    %2653 = vst.msk [vmem:[%s2652] sm:$0xff] %vm215, %v2649
    %v2655 = vsel %vm215, %v2649, 0
    %2657 = vmatprep.subr.mxu0 0.0
    %2658 = vmatpush1.msra.mxu0 0.0
    %2659 = vmatprep.subr.mxu0 0.0
    %2660 = vmatpush1.msra.mxu0 0.0
    %2661 = vmatprep.subr.mxu0 0.0
    %2662 = vmatpush1.msra.mxu0 0.0
    %2663 = vmatprep.subr.mxu0 0.0
    %2664 = vmatpush1.msra.mxu0 0.0
    %2665 = vmatprep.subr.mxu0 0.0
    %2666 = vmatpush1.msra.mxu0 0.0
    %2667 = vmatprep.subr.mxu0 0.0
    %2668 = vmatpush1.msra.mxu0 0.0
    %2669 = vmatprep.subr.mxu0 0.0
    %2670 = vmatpush1.msra.mxu0 0.0
    %2671 = vmatprep.subr.mxu0 0.0
    %2672 = vmatpush1.msra.mxu0 0.0
    %2673 = vmatprep.subr.mxu0 0.0
    %2674 = vmatpush1.msra.mxu0 0.0
    %2675 = vmatprep.subr.mxu0 0.0
    %2676 = vmatpush1.msra.mxu0 0.0
    %2677 = vmatprep.subr.mxu0 0.0
    %2678 = vmatpush1.msra.mxu0 0.0
    %2679 = vmatprep.subr.mxu0 0.0
    %2680 = vmatpush1.msra.mxu0 0.0
    %2681 = vmatprep.subr.mxu0 0.0
    %2682 = vmatpush1.msra.mxu0 0.0
    %2683 = vmatprep.subr.mxu0 0.0
    %2684 = vmatpush1.msra.mxu0 0.0
    %2685 = vmatprep.subr.mxu0 0.0
    %2686 = vmatpush1.msra.mxu0 0.0
    %2687 = vmatprep.subr.mxu0 0.0
    %2688 = vmatpush1.msra.mxu0 %v1681
    %2689 = vmatprep.subr.mxu0 0.0
    %2690 = vmatpush2.msra.mxu0 0.0
    %2691 = vmatprep.subr.mxu0 0.0
    %2692 = vmatpush2.msra.mxu0 0.0
    %2693 = vmatprep.subr.mxu0 0.0
    %2694 = vmatpush2.msra.mxu0 0.0
    %2695 = vmatprep.subr.mxu0 0.0
    %2696 = vmatpush2.msra.mxu0 0.0
    %2697 = vmatprep.subr.mxu0 0.0
    %2698 = vmatpush2.msra.mxu0 0.0
    %2699 = vmatprep.subr.mxu0 0.0
    %2700 = vmatpush2.msra.mxu0 0.0
    %2701 = vmatprep.subr.mxu0 0.0
    %2702 = vmatpush2.msra.mxu0 0.0
    %2703 = vmatprep.subr.mxu0 0.0
    %2704 = vmatpush2.msra.mxu0 0.0
    %2705 = vmatprep.subr.mxu0 0.0
    %2706 = vmatpush2.msra.mxu0 0.0
    %2707 = vmatprep.subr.mxu0 0.0
    %2708 = vmatpush2.msra.mxu0 0.0
    %2709 = vmatprep.subr.mxu0 0.0
    %2710 = vmatpush2.msra.mxu0 0.0
    %2711 = vmatprep.subr.mxu0 0.0
    %2712 = vmatpush2.msra.mxu0 0.0
    %2713 = vmatprep.subr.mxu0 0.0
    %2714 = vmatpush2.msra.mxu0 0.0
    %2715 = vmatprep.subr.mxu0 0.0
    %2716 = vmatpush2.msra.mxu0 0.0
    %2717 = vmatprep.subr.mxu0 0.0
    %2718 = vmatpush2.msra.mxu0 0.0
    %2719 = vmatprep.subr.mxu0 0.0
    %2720 = vmatpush2.msra.mxu0 0.0
    %2721 = vmatprep.mubr.f32.mxu0 0.0
    %2722 = vmatmul.mubr.f32.gmra.mxu0 %v2655
    %v2723 = vpop.f32.mrf.mxu0
    %v2724 = vadd.f32 %v1678, %v2723
    %v2725 = vpop.f32.mrf.mxu0
    %2726 = vdwg.mxu0
    %v2727 = vtanh.pop %v2724
    %v2728 = vadd.f32 %v1673, %v2727
    %v2730 = vsel %vm355, %v2728, 0
    %2732 = vmatprep.subr.mxu0 0.0
    %2733 = vmatpush1.msra.mxu0 0.0
    %2734 = vmatprep.subr.mxu0 0.0
    %2735 = vmatpush1.msra.mxu0 0.0
    %2736 = vmatprep.subr.mxu0 0.0
    %2737 = vmatpush1.msra.mxu0 0.0
    %2738 = vmatprep.subr.mxu0 0.0
    %2739 = vmatpush1.msra.mxu0 0.0
    %2740 = vmatprep.subr.mxu0 0.0
    %2741 = vmatpush1.msra.mxu0 0.0
    %2742 = vmatprep.subr.mxu0 0.0
    %2743 = vmatpush1.msra.mxu0 0.0
    %2744 = vmatprep.subr.mxu0 0.0
    %2745 = vmatpush1.msra.mxu0 0.0
    %2746 = vmatprep.subr.mxu0 0.0
    %2747 = vmatpush1.msra.mxu0 0.0
    %2748 = vmatprep.subr.mxu0 0.0
    %2749 = vmatpush1.msra.mxu0 0.0
    %2750 = vmatprep.subr.mxu0 0.0
    %2751 = vmatpush1.msra.mxu0 0.0
    %2752 = vmatprep.subr.mxu0 0.0
    %2753 = vmatpush1.msra.mxu0 0.0
    %2754 = vmatprep.subr.mxu0 0.0
    %2755 = vmatpush1.msra.mxu0 0.0
    %2756 = vmatprep.subr.mxu0 0.0
    %2757 = vmatpush1.msra.mxu0 %v197
    %2758 = vmatprep.subr.mxu0 0.0
    %2759 = vmatpush1.msra.mxu0 %v196
    %2760 = vmatprep.subr.mxu0 0.0
    %2761 = vmatpush1.msra.mxu0 %v195
    %2762 = vmatprep.subr.mxu0 0.0
    %2763 = vmatpush1.msra.mxu0 %v194
    %2764 = vmatprep.subr.mxu0 0.0
    %2765 = vmatpush2.msra.mxu0 0.0
    %2766 = vmatprep.subr.mxu0 0.0
    %2767 = vmatpush2.msra.mxu0 0.0
    %2768 = vmatprep.subr.mxu0 0.0
    %2769 = vmatpush2.msra.mxu0 0.0
    %2770 = vmatprep.subr.mxu0 0.0
    %2771 = vmatpush2.msra.mxu0 0.0
    %2772 = vmatprep.subr.mxu0 0.0
    %2773 = vmatpush2.msra.mxu0 0.0
    %2774 = vmatprep.subr.mxu0 0.0
    %2775 = vmatpush2.msra.mxu0 0.0
    %2776 = vmatprep.subr.mxu0 0.0
    %2777 = vmatpush2.msra.mxu0 0.0
    %2778 = vmatprep.subr.mxu0 0.0
    %2779 = vmatpush2.msra.mxu0 0.0
    %2780 = vmatprep.subr.mxu0 0.0
    %2781 = vmatpush2.msra.mxu0 0.0
    %2782 = vmatprep.subr.mxu0 0.0
    %2783 = vmatpush2.msra.mxu0 0.0
    %2784 = vmatprep.subr.mxu0 0.0
    %2785 = vmatpush2.msra.mxu0 0.0
    %2786 = vmatprep.subr.mxu0 0.0
    %2787 = vmatpush2.msra.mxu0 0.0
    %2788 = vmatprep.subr.mxu0 0.0
    %2789 = vmatpush2.msra.mxu0 0.0
    %2790 = vmatprep.subr.mxu0 0.0
    %2791 = vmatpush2.msra.mxu0 0.0
    %2792 = vmatprep.subr.mxu0 0.0
    %2793 = vmatpush2.msra.mxu0 0.0
    %2794 = vmatprep.subr.mxu0 0.0
    %2795 = vmatpush2.msra.mxu0 0.0
    %2796 = vmatprep.mubr.f32.mxu0 0.0
    %2797 = vmatmul.mubr.f32.gmra.mxu0 %v2730
    %v2798 = vpop.f32.mrf.mxu0
    %v2799 = vadd.f32 %v1759, %v2798
    %v2800 = vpop.f32.mrf.mxu0
    %2801 = vdwg.mxu0
    %2802 = vmatprep.subr.mxu0 0.0
    %2803 = vmatpush1.msra.mxu0 0.0
    %2804 = vmatprep.subr.mxu0 0.0
    %2805 = vmatpush1.msra.mxu0 0.0
    %2806 = vmatprep.subr.mxu0 0.0
    %2807 = vmatpush1.msra.mxu0 0.0
    %2808 = vmatprep.subr.mxu0 0.0
    %2809 = vmatpush1.msra.mxu0 0.0
    %2810 = vmatprep.subr.mxu0 0.0
    %2811 = vmatpush1.msra.mxu0 0.0
    %2812 = vmatprep.subr.mxu0 0.0
    %2813 = vmatpush1.msra.mxu0 0.0
    %2814 = vmatprep.subr.mxu0 0.0
    %2815 = vmatpush1.msra.mxu0 0.0
    %2816 = vmatprep.subr.mxu0 0.0
    %2817 = vmatpush1.msra.mxu0 0.0
    %2818 = vmatprep.subr.mxu0 0.0
    %2819 = vmatpush1.msra.mxu0 0.0
    %2820 = vmatprep.subr.mxu0 0.0
    %2821 = vmatpush1.msra.mxu0 0.0
    %2822 = vmatprep.subr.mxu0 0.0
    %2823 = vmatpush1.msra.mxu0 0.0
    %2824 = vmatprep.subr.mxu0 0.0
    %2825 = vmatpush1.msra.mxu0 0.0
    %2826 = vmatprep.subr.mxu0 0.0
    %2827 = vmatpush1.msra.mxu0 %v201
    %2828 = vmatprep.subr.mxu0 0.0
    %2829 = vmatpush1.msra.mxu0 %v200
    %2830 = vmatprep.subr.mxu0 0.0
    %2831 = vmatpush1.msra.mxu0 %v199
    %2832 = vmatprep.subr.mxu0 0.0
    %2833 = vmatpush1.msra.mxu0 %v198
    %2834 = vmatprep.subr.mxu0 0.0
    %2835 = vmatpush2.msra.mxu0 0.0
    %2836 = vmatprep.subr.mxu0 0.0
    %2837 = vmatpush2.msra.mxu0 0.0
    %2838 = vmatprep.subr.mxu0 0.0
    %2839 = vmatpush2.msra.mxu0 0.0
    %2840 = vmatprep.subr.mxu0 0.0
    %2841 = vmatpush2.msra.mxu0 0.0
    %2842 = vmatprep.subr.mxu0 0.0
    %2843 = vmatpush2.msra.mxu0 0.0
    %2844 = vmatprep.subr.mxu0 0.0
    %2845 = vmatpush2.msra.mxu0 0.0
    %2846 = vmatprep.subr.mxu0 0.0
    %2847 = vmatpush2.msra.mxu0 0.0
    %2848 = vmatprep.subr.mxu0 0.0
    %2849 = vmatpush2.msra.mxu0 0.0
    %2850 = vmatprep.subr.mxu0 0.0
    %2851 = vmatpush2.msra.mxu0 0.0
    %2852 = vmatprep.subr.mxu0 0.0
    %2853 = vmatpush2.msra.mxu0 0.0
    %2854 = vmatprep.subr.mxu0 0.0
    %2855 = vmatpush2.msra.mxu0 0.0
    %2856 = vmatprep.subr.mxu0 0.0
    %2857 = vmatpush2.msra.mxu0 0.0
    %2858 = vmatprep.subr.mxu0 0.0
    %2859 = vmatpush2.msra.mxu0 0.0
    %2860 = vmatprep.subr.mxu0 0.0
    %2861 = vmatpush2.msra.mxu0 0.0
    %2862 = vmatprep.subr.mxu0 0.0
    %2863 = vmatpush2.msra.mxu0 0.0
    %2864 = vmatprep.subr.mxu0 0.0
    %2865 = vmatpush2.msra.mxu0 0.0
    %2866 = vmatprep.mubr.f32.mxu0 0.0
    %2867 = vmatmul.mubr.f32.gmra.mxu0 %v2580
    %v2868 = vpop.f32.mrf.mxu0
    %v2869 = vadd.f32 %v1838, %v2868
    %v2870 = vpop.f32.mrf.mxu0
    %2871 = vdwg.mxu0
    %v2872 = vadd.f32 %v2799, %v2869
    %v2873 = vmul.f32 %v2872, 0.5
    %v2874 = vtanh.pop %v2873
    %v2875 = vadd.f32 %v2874, 1.0
    %v2876 = vmul.f32 %v2875, 0.5
    %2878 = vrot.lane.b32.xlu0 %v2869, 64
    %v2879 = vpop.permute.xlu0 %2878
    %v2881 = vmul.f32 %v2876, %v2879
    %2883 = vrot.lane.b32.xlu0 %v2881, 64
    %v2884 = vpop.permute.xlu0 %2883
    %v2886 = vadd.f32 %v2799, %v2884
    %v2887 = vtanh.pop %v2886
    %v2888 = vsub.f32 1.0, %v2876
    %2890 = vrot.lane.b32.xlu0 %v2887, 96
    %v2891 = vpop.permute.xlu0 %2890
    %v2893 = vmul.f32 %v2888, %v2891
    %v2894 = vmul.f32 %v2876, %v2576
    %v2895 = vadd.f32 %v2893, %v2894
    %2897 = vrot.lane.b32.xlu0 %v2895, 96
    %v2898 = vpop.permute.xlu0 %2897
    %v2899 = vsel %vm355, %v2898, 0
    %2901 = vmatprep.subr.mxu0 0.0
    %2902 = vmatpush1.msra.mxu0 0.0
    %2903 = vmatprep.subr.mxu0 0.0
    %2904 = vmatpush1.msra.mxu0 0.0
    %2905 = vmatprep.subr.mxu0 0.0
    %2906 = vmatpush1.msra.mxu0 0.0
    %2907 = vmatprep.subr.mxu0 0.0
    %2908 = vmatpush1.msra.mxu0 0.0
    %2909 = vmatprep.subr.mxu0 0.0
    %2910 = vmatpush1.msra.mxu0 0.0
    %2911 = vmatprep.subr.mxu0 0.0
    %2912 = vmatpush1.msra.mxu0 0.0
    %2913 = vmatprep.subr.mxu0 0.0
    %2914 = vmatpush1.msra.mxu0 0.0
    %2915 = vmatprep.subr.mxu0 0.0
    %2916 = vmatpush1.msra.mxu0 0.0
    %2917 = vmatprep.subr.mxu0 0.0
    %2918 = vmatpush1.msra.mxu0 0.0
    %2919 = vmatprep.subr.mxu0 0.0
    %2920 = vmatpush1.msra.mxu0 0.0
    %2921 = vmatprep.subr.mxu0 0.0
    %2922 = vmatpush1.msra.mxu0 0.0
    %2923 = vmatprep.subr.mxu0 0.0
    %2924 = vmatpush1.msra.mxu0 0.0
    %2925 = vmatprep.subr.mxu0 0.0
    %2926 = vmatpush1.msra.mxu0 %v207
    %2927 = vmatprep.subr.mxu0 0.0
    %2928 = vmatpush1.msra.mxu0 %v206
    %2929 = vmatprep.subr.mxu0 0.0
    %2930 = vmatpush1.msra.mxu0 %v205
    %2931 = vmatprep.subr.mxu0 0.0
    %2932 = vmatpush1.msra.mxu0 %v204
    %2933 = vmatprep.subr.mxu0 0.0
    %2934 = vmatpush2.msra.mxu0 0.0
    %2935 = vmatprep.subr.mxu0 0.0
    %2936 = vmatpush2.msra.mxu0 0.0
    %2937 = vmatprep.subr.mxu0 0.0
    %2938 = vmatpush2.msra.mxu0 0.0
    %2939 = vmatprep.subr.mxu0 0.0
    %2940 = vmatpush2.msra.mxu0 0.0
    %2941 = vmatprep.subr.mxu0 0.0
    %2942 = vmatpush2.msra.mxu0 0.0
    %2943 = vmatprep.subr.mxu0 0.0
    %2944 = vmatpush2.msra.mxu0 0.0
    %2945 = vmatprep.subr.mxu0 0.0
    %2946 = vmatpush2.msra.mxu0 0.0
    %2947 = vmatprep.subr.mxu0 0.0
    %2948 = vmatpush2.msra.mxu0 0.0
    %2949 = vmatprep.subr.mxu0 0.0
    %2950 = vmatpush2.msra.mxu0 0.0
    %2951 = vmatprep.subr.mxu0 0.0
    %2952 = vmatpush2.msra.mxu0 0.0
    %2953 = vmatprep.subr.mxu0 0.0
    %2954 = vmatpush2.msra.mxu0 0.0
    %2955 = vmatprep.subr.mxu0 0.0
    %2956 = vmatpush2.msra.mxu0 0.0
    %2957 = vmatprep.subr.mxu0 0.0
    %2958 = vmatpush2.msra.mxu0 0.0
    %2959 = vmatprep.subr.mxu0 0.0
    %2960 = vmatpush2.msra.mxu0 0.0
    %2961 = vmatprep.subr.mxu0 0.0
    %2962 = vmatpush2.msra.mxu0 0.0
    %2963 = vmatprep.subr.mxu0 0.0
    %2964 = vmatpush2.msra.mxu0 0.0
    %2965 = vmatprep.mubr.f32.mxu0 0.0
    %2966 = vmatmul.mubr.f32.gmra.mxu0 %v2899
    %v2967 = vpop.f32.mrf.mxu0
    %v2968 = vadd.f32 %v1938, %v2967
    %v2969 = vpop.f32.mrf.mxu0
    %2970 = vdwg.mxu0
    %s2971 = scalar_lea.vmem %s18, 24
    %2972 = vst.msk [vmem:[%s2971] sm:$0xff] %vm215, %v2968
    // Predicated region
    $region110: #{tpu_custom_call.1} parent=1 // pred_check
      _
    $region111: #{tpu_custom_call.1} parent=1 // pred_check_branch
      %2974 = sbr.rel (0) target = $region113
    $region112: #{tpu_custom_call.1} parent=1 // pred_region
      _
    $region113: #{tpu_custom_call.1} parent=1 // pred_fallthru
      _
    // Predicated region
    $region114: #{tpu_custom_call.1} parent=1 // pred_check
      _
    $region115: #{tpu_custom_call.1} parent=1 // pred_check_branch
      %2976 = sbr.rel (0) target = $region117
    $region116: #{tpu_custom_call.1} parent=1 // pred_region
      _
    $region117: #{tpu_custom_call.1} parent=1 // pred_fallthru
      _
    %2977 = vsyncpa [#allocation3], 1
    %2978 = vsyncpa [#allocation5], 1
    %2979 = vsyncpa [#allocation8], 1
    %2980 = vsyncpa [#allocation11], 1
    %2981 = vsyncpa [#allocation14], 1

</llo_original>
